<compile_context>
chip_gen: v7x
topology: tpu7x:2x2x1
jax: 0.10.0
libtpu: 0.0.40
codegen_flags: <defaults>
</compile_context>

<pallas_src>
import functools

import jax
import jax.numpy as jnp
from jax.experimental import pallas as pl
from jax.experimental.pallas import tpu as pltpu

_LANE = 128


def _resnet_block_kernel(x_ref, w1_ref, w2_ref, o_ref, sh_ref,
                         *, H, W, C, d, eps):
    """One batch element: out = x + IN(conv2(relu(IN(conv1(x))))).

    x_ref:  (1, H, W, C)  f32    activation block (C already lane-padded)
    w*_ref: (3, 3*C, C)   bf16   conv taps packed as Wk[ki, kj*C + ci, co]
    o_ref:  (1, H, W, C)  f32
    sh_ref: (H+2d, W, 3C) bf16   H-padded column-shift scratch (kj on lanes)
    """
    HW = H * W
    Hp = H + 2 * d

    # Zero only the d-row top/bottom borders of the shift scratch (the conv's
    # zero padding in H); interior rows [d, d+H) are fully rewritten per conv.
    if d > 0:
        zb = jnp.zeros((d, W, 3 * C), sh_ref.dtype)
        sh_ref[0:d, :, :] = zb
        sh_ref[d + H:Hp, :, :] = zb

    w_iota = jax.lax.broadcasted_iota(jnp.int32, (1, W, 1), 1)

    def build_shifts(flat_f32):
        # Write the bf16 column-shift variants kj = 0/1/2 of a (HW, C)
        # activation into lane-aligned C-wide slabs of sh_ref rows [d, d+H).
        # Rolls on the flat (HW, C) view are plain sublane rotates; wrapped
        # values land only in columns the masks zero anyway (== the conv's
        # W-direction zero padding).
        center = flat_f32.reshape(H, W, C)
        right = pltpu.roll(flat_f32, shift=d, axis=0).reshape(H, W, C)
        left = pltpu.roll(flat_f32, shift=HW - d, axis=0).reshape(H, W, C)
        right = jnp.where(w_iota >= d, right, 0.0)        # tap kj=0: col w-d
        left = jnp.where(w_iota < W - d, left, 0.0)       # tap kj=2: col w+d
        sh_ref[d:d + H, :, 0 * C:1 * C] = right.astype(sh_ref.dtype)
        sh_ref[d:d + H, :, 1 * C:2 * C] = center.astype(sh_ref.dtype)
        sh_ref[d:d + H, :, 2 * C:3 * C] = left.astype(sh_ref.dtype)

    def conv3x3(w_ref):
        # kj folded into the contraction dim: 3 bf16 MXU dots of
        # (HW, 3C) x (3C, C) with f32 accumulation.  Tap ki = rows
        # [ki*d, ki*d + H) of the scratch -- an H-only slice on the leading
        # dim, so no lane-misaligned relayout copies, and the JAX-level f32
        # accumulator is only touched 3x per conv.
        acc = jnp.zeros((HW, C), jnp.float32)
        for ki in range(3):
            tap = sh_ref[ki * d:ki * d + H, :, :].reshape(HW, 3 * C)
            acc = acc + jnp.dot(tap, w_ref[ki],
                                preferred_element_type=jnp.float32)
        return acc

    def instance_norm(acc):
        # InstanceNorm2d(affine=False): biased variance, single-pass stats,
        # clamped at 0 to guard E[x^2]-E[x]^2 cancellation.
        inv_hw = 1.0 / HW
        s = jnp.sum(acc, axis=0, keepdims=True)
        s2 = jnp.sum(acc * acc, axis=0, keepdims=True)
        mean = s * inv_hw
        var = jnp.maximum(s2 * inv_hw - mean * mean, 0.0)
        return (acc - mean) * jax.lax.rsqrt(var + eps)

    x_flat = x_ref[0].reshape(HW, C)          # f32 residual source (aligned)

    # conv1 -> InstanceNorm -> ReLU   (conv bias dropped: cancels inside IN)
    build_shifts(x_flat)
    h1 = jnp.maximum(instance_norm(conv3x3(w1_ref)), 0.0)

    # conv2 -> InstanceNorm
    build_shifts(h1)
    h2 = instance_norm(conv3x3(w2_ref))

    # residual add (lane-dense store: last dim is a multiple of 128)
    o_ref[0] = (x_flat + h2).reshape(H, W, C)


def _vmem_limit_bytes(H, W, Cp, Hp):
    """Scoped-VMEM request sized from the actual per-step block footprint."""
    f32, bf16 = 4, 2
    act = H * W * Cp * f32                 # one (1,H,W,Cp) f32 activation block
    wts = 3 * 3 * Cp * Cp * bf16           # one packed conv weight (bf16)
    shift = Hp * W * 3 * Cp * bf16         # shift scratch
    temps = 6 * H * W * Cp * f32           # acc / h1 / h2 / roll f32 temporaries
    footprint = 2 * act + 2 * act + 2 * wts + shift + temps
    # 1.5x headroom for compiler-internal buffers; clamp to [16, 64] MiB so the
    # request is valid on v7x (64 MiB physical).  On v5e/v6e (128 MiB) this
    # could be raised to ~96 MiB for very large blocks.
    return int(min(64 << 20, max(16 << 20, footprint + footprint // 2)))


def resnet_block(x_nchw, w1, b1, w2, b2, dilation):
    """ResnetBlock forward. x_nchw: (N, C, H, W); conv weights in PyTorch OIHW.

    b1/b2 are accepted for signature parity but are mathematically a no-op:
    a per-channel bias followed immediately by InstanceNorm2d(affine=False)
    cancels exactly, so they are not passed to the kernel.
    """
    del b1, b2
    N, C, H, W = x_nchw.shape
    d = int(dilation)
    Cp = -(-C // _LANE) * _LANE            # pad channels up to a lane multiple
    Hp = H + 2 * d

    # NCHW -> NHWC (C on lanes); zero-pad channels if C is not a multiple of
    # 128 so every store is lane-dense and the MXU contraction is aligned.
    x = jnp.transpose(x_nchw, (0, 2, 3, 1)).astype(jnp.float32)
    if Cp != C:
        x = jnp.pad(x, ((0, 0), (0, 0), (0, 0), (0, Cp - C)))

    def pack_weight(w):
        # (Cout, Cin, kh, kw) -> (kh, kj*Cp + ci, co): kj folded into K.
        wk = jnp.transpose(w, (2, 3, 1, 0))               # (3, 3, Cin, Cout)
        if Cp != C:
            wk = jnp.pad(wk, ((0, 0), (0, 0), (0, Cp - C), (0, Cp - C)))
        return wk.reshape(3, 3 * Cp, Cp).astype(jnp.bfloat16)

    w1k = pack_weight(w1)
    w2k = pack_weight(w2)

    kernel = functools.partial(_resnet_block_kernel,
                               H=H, W=W, C=Cp, d=d, eps=1e-5)

    out_nhwc = pl.pallas_call(
        kernel,
        out_shape=jax.ShapeDtypeStruct((N, H, W, Cp), jnp.float32),
        grid_spec=pltpu.PrefetchScalarGridSpec(
            num_scalar_prefetch=0,
            grid=(N,),
            in_specs=[
                pl.BlockSpec((1, H, W, Cp), lambda n: (n, 0, 0, 0)),
                # Constant index_map -> never re-fetched -> single-buffer.
                pl.BlockSpec((3, 3 * Cp, Cp), lambda n: (0, 0, 0),
                             pipeline_mode=pl.Buffered(1)),
                pl.BlockSpec((3, 3 * Cp, Cp), lambda n: (0, 0, 0),
                             pipeline_mode=pl.Buffered(1)),
            ],
            out_specs=pl.BlockSpec((1, H, W, Cp), lambda n: (n, 0, 0, 0)),
            # Shift scratch: H padded by d, kj variants as lane slabs, bf16.
            scratch_shapes=[pltpu.VMEM((Hp, W, 3 * Cp), jnp.bfloat16)],
        ),
        compiler_params=pltpu.CompilerParams(
            dimension_semantics=("parallel",),
            vmem_limit_bytes=_vmem_limit_bytes(H, W, Cp, Hp)),
    )(x, w1k, w2k)

    if Cp != C:
        out_nhwc = out_nhwc[..., :C]
    return jnp.transpose(out_nhwc, (0, 3, 1, 2))  # back to NCHW


def _reference(x, w1, b1, w2, b2, d, eps=1e-5, mxu_dtype=jnp.float32):
    """Plain-JAX reference matching the PyTorch module (bias included).
    mxu_dtype=bfloat16 reproduces the kernel's bf16 matmul-input rounding
    (all other math stays f32)."""
    def q(a):
        return a.astype(mxu_dtype).astype(jnp.float32)

    def conv(h, w, b):
        y = jax.lax.conv_general_dilated(
            q(h), q(w), window_strides=(1, 1), padding=((d, d), (d, d)),
            rhs_dilation=(d, d),
            dimension_numbers=("NCHW", "OIHW", "NCHW"),
            precision=jax.lax.Precision.HIGHEST)
        return y + b[None, :, None, None]

    def inorm(y):
        m = jnp.mean(y, axis=(2, 3), keepdims=True)
        v = jnp.mean((y - m) ** 2, axis=(2, 3), keepdims=True)
        return (y - m) / jnp.sqrt(v + eps)

    h = jnp.maximum(inorm(conv(x, w1, b1)), 0.0)
    return x + inorm(conv(h, w2, b2))


if __name__ == "__main__":
    N, C, H, W = 2, 4, 16, 16
    dilation = 2

    key = jax.random.PRNGKey(0)
    kx, k1, kb1, k2, kb2 = jax.random.split(key, 5)

    x = jax.random.normal(kx, (N, C, H, W), dtype=jnp.float32)
    # Deterministic synthetic Conv2d params (PyTorch shapes: OIHW / (O,))
    w1 = jax.random.normal(k1, (C, C, 3, 3), dtype=jnp.float32) * 0.1
    b1 = jax.random.normal(kb1, (C,), dtype=jnp.float32) * 0.1
    w2 = jax.random.normal(k2, (C, C, 3, 3), dtype=jnp.float32) * 0.1
    b2 = jax.random.normal(kb2, (C,), dtype=jnp.float32) * 0.1

    out = jax.block_until_ready(resnet_block(x, w1, b1, w2, b2, dilation))
    assert out.shape == (N, C, H, W)

    # Structural check: reference with the same bf16 rounding of matmul inputs.
    ref_bf16 = jax.block_until_ready(
        _reference(x, w1, b1, w2, b2, dilation, mxu_dtype=jnp.bfloat16))
    # Semantics check: pure-f32 reference (exact PyTorch behaviour).
    ref_f32 = jax.block_until_ready(_reference(x, w1, b1, w2, b2, dilation))

    err_bf16 = float(jnp.max(jnp.abs(out - ref_bf16)))
    err_f32 = float(jnp.max(jnp.abs(out - ref_f32)))
    assert err_bf16 < 1e-2, f"vs bf16-consistent reference: {err_bf16}"
    assert err_f32 < 6e-2, f"vs f32 reference: {err_f32}"

    print("KERNEL_OK")
</pallas_src>

<mosaic_0001>
module attributes {stable_mosaic.version = 11 : i64} {
  func.func @_resnet_block_kernel(%arg0: i32, %arg1: memref<1x16x16x128xf32, #tpu.memory_space<vmem>>, %arg2: memref<3x384x128xbf16, #tpu.memory_space<vmem>>, %arg3: memref<3x384x128xbf16, #tpu.memory_space<vmem>>, %arg4: memref<1x16x16x128xf32, #tpu.memory_space<vmem>>, %arg5: memref<20x16x384xbf16, #tpu.memory_space<vmem>>) attributes {dimension_semantics = [#tpu.dimension_semantics<parallel>], iteration_bounds = array<i64: 2>, scalar_prefetch = 0 : i64, scratch_operands = 1 : i64, tpu.core_type = #tpu.core_type<tc>, window_params = [{transform_indices = @transform_0, window_bounds = array<i64: 1, 16, 16, 128>}, {pipeline_mode = #tpu.pipeline_mode<synchronous>, transform_indices = @transform_1, window_bounds = array<i64: 3, 384, 128>}, {pipeline_mode = #tpu.pipeline_mode<synchronous>, transform_indices = @transform_2, window_bounds = array<i64: 3, 384, 128>}, {transform_indices = @transform_3, window_bounds = array<i64: 1, 16, 16, 128>}]} {
    %cst = arith.constant 0.000000e+00 : bf16
    %0 = vector.broadcast %cst : bf16 to vector<2x16x384xbf16>
    %c0 = arith.constant 0 : index
    %c0_0 = arith.constant 0 : index
    %c0_1 = arith.constant 0 : index
    %1 = vector.load %arg5[%c0, %c0_0, %c0_1] : memref<20x16x384xbf16, #tpu.memory_space<vmem>>, vector<2x16x384xbf16>
    tpu.vector_store %arg5[%c0, %c0_0, %c0_1], %0 {strides = array<i32>} : memref<20x16x384xbf16, #tpu.memory_space<vmem>>, vector<2x16x384xbf16>,
    %c18 = arith.constant 18 : index
    %c0_2 = arith.constant 0 : index
    %c0_3 = arith.constant 0 : index
    %2 = vector.load %arg5[%c18, %c0_2, %c0_3] : memref<20x16x384xbf16, #tpu.memory_space<vmem>>, vector<2x16x384xbf16>
    tpu.vector_store %arg5[%c18, %c0_2, %c0_3], %0 {strides = array<i32>} : memref<20x16x384xbf16, #tpu.memory_space<vmem>>, vector<2x16x384xbf16>,
    %3 = tpu.iota {dimensions = array<i32: 1>} : vector<1x16x1xi32>
    %c0_4 = arith.constant 0 : index
    %c0_5 = arith.constant 0 : index
    %c0_6 = arith.constant 0 : index
    %c0_7 = arith.constant 0 : index
    %4 = vector.load %arg1[%c0_4, %c0_5, %c0_6, %c0_7] : memref<1x16x16x128xf32, #tpu.memory_space<vmem>>, vector<1x16x16x128xf32>
    %5 = vector.shape_cast %4 : vector<1x16x16x128xf32> to vector<16x16x128xf32>
    %6 = vector.shape_cast %5 : vector<16x16x128xf32> to vector<256x128xf32>
    %7 = vector.shape_cast %6 : vector<256x128xf32> to vector<16x16x128xf32>
    %c2_i32 = arith.constant 2 : i32
    %8 = tpu.dynamic_rotate %6 by %c2_i32 dim 0 : vector<256x128xf32>, i32 -> vector<256x128xf32>
    %9 = vector.shape_cast %8 : vector<256x128xf32> to vector<16x16x128xf32>
    %c254_i32 = arith.constant 254 : i32
    %10 = tpu.dynamic_rotate %6 by %c254_i32 dim 0 : vector<256x128xf32>, i32 -> vector<256x128xf32>
    %11 = vector.shape_cast %10 : vector<256x128xf32> to vector<16x16x128xf32>
    %c2_i32_8 = arith.constant 2 : i32
    %12 = vector.broadcast %c2_i32_8 : i32 to vector<1x16x1xi32>
    %13 = arith.cmpi sge, %3, %12 : vector<1x16x1xi32>
    %cst_9 = arith.constant 0.000000e+00 : f32
    %14 = vector.shape_cast %13 : vector<1x16x1xi1> to vector<1x16x1xi1>
    %15 = vector.broadcast %14 : vector<1x16x1xi1> to vector<16x16x128xi1>
    %16 = vector.broadcast %cst_9 : f32 to vector<16x16x128xf32>
    %17 = arith.select %15, %9, %16 : vector<16x16x128xi1>, vector<16x16x128xf32>
    %c14_i32 = arith.constant 14 : i32
    %18 = vector.broadcast %c14_i32 : i32 to vector<1x16x1xi32>
    %19 = arith.cmpi slt, %3, %18 : vector<1x16x1xi32>
    %cst_10 = arith.constant 0.000000e+00 : f32
    %20 = vector.shape_cast %19 : vector<1x16x1xi1> to vector<1x16x1xi1>
    %21 = vector.broadcast %20 : vector<1x16x1xi1> to vector<16x16x128xi1>
    %22 = vector.broadcast %cst_10 : f32 to vector<16x16x128xf32>
    %23 = arith.select %21, %11, %22 : vector<16x16x128xi1>, vector<16x16x128xf32>
    %24 = arith.truncf %17 : vector<16x16x128xf32> to vector<16x16x128xbf16>
    %c2 = arith.constant 2 : index
    %c0_11 = arith.constant 0 : index
    %c0_12 = arith.constant 0 : index
    %25 = vector.load %arg5[%c2, %c0_11, %c0_12] : memref<20x16x384xbf16, #tpu.memory_space<vmem>>, vector<16x16x128xbf16>
    tpu.vector_store %arg5[%c2, %c0_11, %c0_12], %24 {strides = array<i32>} : memref<20x16x384xbf16, #tpu.memory_space<vmem>>, vector<16x16x128xbf16>,
    %26 = arith.truncf %7 : vector<16x16x128xf32> to vector<16x16x128xbf16>
    %c2_13 = arith.constant 2 : index
    %c0_14 = arith.constant 0 : index
    %c128 = arith.constant 128 : index
    %27 = vector.load %arg5[%c2_13, %c0_14, %c128] : memref<20x16x384xbf16, #tpu.memory_space<vmem>>, vector<16x16x128xbf16>
    tpu.vector_store %arg5[%c2_13, %c0_14, %c128], %26 {strides = array<i32>} : memref<20x16x384xbf16, #tpu.memory_space<vmem>>, vector<16x16x128xbf16>,
    %28 = arith.truncf %23 : vector<16x16x128xf32> to vector<16x16x128xbf16>
    %c2_15 = arith.constant 2 : index
    %c0_16 = arith.constant 0 : index
    %c256 = arith.constant 256 : index
    %29 = vector.load %arg5[%c2_15, %c0_16, %c256] : memref<20x16x384xbf16, #tpu.memory_space<vmem>>, vector<16x16x128xbf16>
    tpu.vector_store %arg5[%c2_15, %c0_16, %c256], %28 {strides = array<i32>} : memref<20x16x384xbf16, #tpu.memory_space<vmem>>, vector<16x16x128xbf16>,
    %cst_17 = arith.constant 0.000000e+00 : f32
    %30 = vector.broadcast %cst_17 : f32 to vector<256x128xf32>
    %c0_18 = arith.constant 0 : index
    %c0_19 = arith.constant 0 : index
    %c0_20 = arith.constant 0 : index
    %31 = vector.load %arg5[%c0_18, %c0_19, %c0_20] : memref<20x16x384xbf16, #tpu.memory_space<vmem>>, vector<16x16x384xbf16>
    %32 = vector.shape_cast %31 : vector<16x16x384xbf16> to vector<256x384xbf16>
    %c0_21 = arith.constant 0 : index
    %c0_22 = arith.constant 0 : index
    %c0_23 = arith.constant 0 : index
    %33 = vector.load %arg2[%c0_21, %c0_22, %c0_23] : memref<3x384x128xbf16, #tpu.memory_space<vmem>>, vector<1x384x128xbf16>
    %34 = vector.shape_cast %33 : vector<1x384x128xbf16> to vector<384x128xbf16>
    %cst_24 = arith.constant dense<0.000000e+00> : vector<256x128xf32>
    %35 = tpu.matmul %32, %34, %cst_24 {dimension_numbers = #tpu.dot_dimension_numbers<[1], [0], [0], [1], [0, 0, 1, 1], [], []>} : vector<256x384xbf16>, vector<384x128xbf16>, vector<256x128xf32> -> vector<256x128xf32>
    %36 = arith.addf %30, %35 : vector<256x128xf32>
    %c2_25 = arith.constant 2 : index
    %c0_26 = arith.constant 0 : index
    %c0_27 = arith.constant 0 : index
    %37 = vector.load %arg5[%c2_25, %c0_26, %c0_27] : memref<20x16x384xbf16, #tpu.memory_space<vmem>>, vector<16x16x384xbf16>
    %38 = vector.shape_cast %37 : vector<16x16x384xbf16> to vector<256x384xbf16>
    %c1 = arith.constant 1 : index
    %c0_28 = arith.constant 0 : index
    %c0_29 = arith.constant 0 : index
    %39 = vector.load %arg2[%c1, %c0_28, %c0_29] : memref<3x384x128xbf16, #tpu.memory_space<vmem>>, vector<1x384x128xbf16>
    %40 = vector.shape_cast %39 : vector<1x384x128xbf16> to vector<384x128xbf16>
    %cst_30 = arith.constant dense<0.000000e+00> : vector<256x128xf32>
    %41 = tpu.matmul %38, %40, %cst_30 {dimension_numbers = #tpu.dot_dimension_numbers<[1], [0], [0], [1], [0, 0, 1, 1], [], []>} : vector<256x384xbf16>, vector<384x128xbf16>, vector<256x128xf32> -> vector<256x128xf32>
    %42 = arith.addf %36, %41 : vector<256x128xf32>
    %c4 = arith.constant 4 : index
    %c0_31 = arith.constant 0 : index
    %c0_32 = arith.constant 0 : index
    %43 = vector.load %arg5[%c4, %c0_31, %c0_32] : memref<20x16x384xbf16, #tpu.memory_space<vmem>>, vector<16x16x384xbf16>
    %44 = vector.shape_cast %43 : vector<16x16x384xbf16> to vector<256x384xbf16>
    %c2_33 = arith.constant 2 : index
    %c0_34 = arith.constant 0 : index
    %c0_35 = arith.constant 0 : index
    %45 = vector.load %arg2[%c2_33, %c0_34, %c0_35] : memref<3x384x128xbf16, #tpu.memory_space<vmem>>, vector<1x384x128xbf16>
    %46 = vector.shape_cast %45 : vector<1x384x128xbf16> to vector<384x128xbf16>
    %cst_36 = arith.constant dense<0.000000e+00> : vector<256x128xf32>
    %47 = tpu.matmul %44, %46, %cst_36 {dimension_numbers = #tpu.dot_dimension_numbers<[1], [0], [0], [1], [0, 0, 1, 1], [], []>} : vector<256x384xbf16>, vector<384x128xbf16>, vector<256x128xf32> -> vector<256x128xf32>
    %48 = arith.addf %42, %47 : vector<256x128xf32>
    %cst_37 = arith.constant dense<0.000000e+00> : vector<128xf32>
    %49 = vector.multi_reduction <add>, %48, %cst_37 [0] : vector<256x128xf32> to vector<128xf32>
    %50 = vector.shape_cast %49 : vector<128xf32> to vector<1x128xf32>
    %51 = arith.mulf %48, %48 : vector<256x128xf32>
    %cst_38 = arith.constant dense<0.000000e+00> : vector<128xf32>
    %52 = vector.multi_reduction <add>, %51, %cst_38 [0] : vector<256x128xf32> to vector<128xf32>
    %53 = vector.shape_cast %52 : vector<128xf32> to vector<1x128xf32>
    %cst_39 = arith.constant 3.906250e-03 : f32
    %54 = vector.broadcast %cst_39 : f32 to vector<1x128xf32>
    %55 = arith.mulf %50, %54 : vector<1x128xf32>
    %cst_40 = arith.constant 3.906250e-03 : f32
    %56 = vector.broadcast %cst_40 : f32 to vector<1x128xf32>
    %57 = arith.mulf %53, %56 : vector<1x128xf32>
    %58 = arith.mulf %55, %55 : vector<1x128xf32>
    %59 = arith.subf %57, %58 : vector<1x128xf32>
    %cst_41 = arith.constant 0.000000e+00 : f32
    %60 = vector.broadcast %cst_41 : f32 to vector<1x128xf32>
    %61 = arith.maximumf %59, %60 : vector<1x128xf32>
    %62 = vector.broadcast %55 : vector<1x128xf32> to vector<256x128xf32>
    %63 = arith.subf %48, %62 : vector<256x128xf32>
    %cst_42 = arith.constant 9.99999974E-6 : f32
    %64 = vector.broadcast %cst_42 : f32 to vector<1x128xf32>
    %65 = arith.addf %61, %64 : vector<1x128xf32>
    %66 = math.rsqrt %65 : vector<1x128xf32>
    %67 = vector.broadcast %66 : vector<1x128xf32> to vector<256x128xf32>
    %68 = arith.mulf %63, %67 : vector<256x128xf32>
    %cst_43 = arith.constant 0.000000e+00 : f32
    %69 = vector.broadcast %cst_43 : f32 to vector<256x128xf32>
    %70 = arith.maximumf %68, %69 : vector<256x128xf32>
    %71 = vector.shape_cast %70 : vector<256x128xf32> to vector<16x16x128xf32>
    %c2_i32_44 = arith.constant 2 : i32
    %72 = tpu.dynamic_rotate %70 by %c2_i32_44 dim 0 : vector<256x128xf32>, i32 -> vector<256x128xf32>
    %73 = vector.shape_cast %72 : vector<256x128xf32> to vector<16x16x128xf32>
    %c254_i32_45 = arith.constant 254 : i32
    %74 = tpu.dynamic_rotate %70 by %c254_i32_45 dim 0 : vector<256x128xf32>, i32 -> vector<256x128xf32>
    %75 = vector.shape_cast %74 : vector<256x128xf32> to vector<16x16x128xf32>
    %c2_i32_46 = arith.constant 2 : i32
    %76 = vector.broadcast %c2_i32_46 : i32 to vector<1x16x1xi32>
    %77 = arith.cmpi sge, %3, %76 : vector<1x16x1xi32>
    %cst_47 = arith.constant 0.000000e+00 : f32
    %78 = vector.shape_cast %77 : vector<1x16x1xi1> to vector<1x16x1xi1>
    %79 = vector.broadcast %78 : vector<1x16x1xi1> to vector<16x16x128xi1>
    %80 = vector.broadcast %cst_47 : f32 to vector<16x16x128xf32>
    %81 = arith.select %79, %73, %80 : vector<16x16x128xi1>, vector<16x16x128xf32>
    %c14_i32_48 = arith.constant 14 : i32
    %82 = vector.broadcast %c14_i32_48 : i32 to vector<1x16x1xi32>
    %83 = arith.cmpi slt, %3, %82 : vector<1x16x1xi32>
    %cst_49 = arith.constant 0.000000e+00 : f32
    %84 = vector.shape_cast %83 : vector<1x16x1xi1> to vector<1x16x1xi1>
    %85 = vector.broadcast %84 : vector<1x16x1xi1> to vector<16x16x128xi1>
    %86 = vector.broadcast %cst_49 : f32 to vector<16x16x128xf32>
    %87 = arith.select %85, %75, %86 : vector<16x16x128xi1>, vector<16x16x128xf32>
    %88 = arith.truncf %81 : vector<16x16x128xf32> to vector<16x16x128xbf16>
    %c2_50 = arith.constant 2 : index
    %c0_51 = arith.constant 0 : index
    %c0_52 = arith.constant 0 : index
    %89 = vector.load %arg5[%c2_50, %c0_51, %c0_52] : memref<20x16x384xbf16, #tpu.memory_space<vmem>>, vector<16x16x128xbf16>
    tpu.vector_store %arg5[%c2_50, %c0_51, %c0_52], %88 {strides = array<i32>} : memref<20x16x384xbf16, #tpu.memory_space<vmem>>, vector<16x16x128xbf16>,
    %90 = arith.truncf %71 : vector<16x16x128xf32> to vector<16x16x128xbf16>
    %c2_53 = arith.constant 2 : index
    %c0_54 = arith.constant 0 : index
    %c128_55 = arith.constant 128 : index
    %91 = vector.load %arg5[%c2_53, %c0_54, %c128_55] : memref<20x16x384xbf16, #tpu.memory_space<vmem>>, vector<16x16x128xbf16>
    tpu.vector_store %arg5[%c2_53, %c0_54, %c128_55], %90 {strides = array<i32>} : memref<20x16x384xbf16, #tpu.memory_space<vmem>>, vector<16x16x128xbf16>,
    %92 = arith.truncf %87 : vector<16x16x128xf32> to vector<16x16x128xbf16>
    %c2_56 = arith.constant 2 : index
    %c0_57 = arith.constant 0 : index
    %c256_58 = arith.constant 256 : index
    %93 = vector.load %arg5[%c2_56, %c0_57, %c256_58] : memref<20x16x384xbf16, #tpu.memory_space<vmem>>, vector<16x16x128xbf16>
    tpu.vector_store %arg5[%c2_56, %c0_57, %c256_58], %92 {strides = array<i32>} : memref<20x16x384xbf16, #tpu.memory_space<vmem>>, vector<16x16x128xbf16>,
    %cst_59 = arith.constant 0.000000e+00 : f32
    %94 = vector.broadcast %cst_59 : f32 to vector<256x128xf32>
    %c0_60 = arith.constant 0 : index
    %c0_61 = arith.constant 0 : index
    %c0_62 = arith.constant 0 : index
    %95 = vector.load %arg5[%c0_60, %c0_61, %c0_62] : memref<20x16x384xbf16, #tpu.memory_space<vmem>>, vector<16x16x384xbf16>
    %96 = vector.shape_cast %95 : vector<16x16x384xbf16> to vector<256x384xbf16>
    %c0_63 = arith.constant 0 : index
    %c0_64 = arith.constant 0 : index
    %c0_65 = arith.constant 0 : index
    %97 = vector.load %arg3[%c0_63, %c0_64, %c0_65] : memref<3x384x128xbf16, #tpu.memory_space<vmem>>, vector<1x384x128xbf16>
    %98 = vector.shape_cast %97 : vector<1x384x128xbf16> to vector<384x128xbf16>
    %cst_66 = arith.constant dense<0.000000e+00> : vector<256x128xf32>
    %99 = tpu.matmul %96, %98, %cst_66 {dimension_numbers = #tpu.dot_dimension_numbers<[1], [0], [0], [1], [0, 0, 1, 1], [], []>} : vector<256x384xbf16>, vector<384x128xbf16>, vector<256x128xf32> -> vector<256x128xf32>
    %100 = arith.addf %94, %99 : vector<256x128xf32>
    %c2_67 = arith.constant 2 : index
    %c0_68 = arith.constant 0 : index
    %c0_69 = arith.constant 0 : index
    %101 = vector.load %arg5[%c2_67, %c0_68, %c0_69] : memref<20x16x384xbf16, #tpu.memory_space<vmem>>, vector<16x16x384xbf16>
    %102 = vector.shape_cast %101 : vector<16x16x384xbf16> to vector<256x384xbf16>
    %c1_70 = arith.constant 1 : index
    %c0_71 = arith.constant 0 : index
    %c0_72 = arith.constant 0 : index
    %103 = vector.load %arg3[%c1_70, %c0_71, %c0_72] : memref<3x384x128xbf16, #tpu.memory_space<vmem>>, vector<1x384x128xbf16>
    %104 = vector.shape_cast %103 : vector<1x384x128xbf16> to vector<384x128xbf16>
    %cst_73 = arith.constant dense<0.000000e+00> : vector<256x128xf32>
    %105 = tpu.matmul %102, %104, %cst_73 {dimension_numbers = #tpu.dot_dimension_numbers<[1], [0], [0], [1], [0, 0, 1, 1], [], []>} : vector<256x384xbf16>, vector<384x128xbf16>, vector<256x128xf32> -> vector<256x128xf32>
    %106 = arith.addf %100, %105 : vector<256x128xf32>
    %c4_74 = arith.constant 4 : index
    %c0_75 = arith.constant 0 : index
    %c0_76 = arith.constant 0 : index
    %107 = vector.load %arg5[%c4_74, %c0_75, %c0_76] : memref<20x16x384xbf16, #tpu.memory_space<vmem>>, vector<16x16x384xbf16>
    %108 = vector.shape_cast %107 : vector<16x16x384xbf16> to vector<256x384xbf16>
    %c2_77 = arith.constant 2 : index
    %c0_78 = arith.constant 0 : index
    %c0_79 = arith.constant 0 : index
    %109 = vector.load %arg3[%c2_77, %c0_78, %c0_79] : memref<3x384x128xbf16, #tpu.memory_space<vmem>>, vector<1x384x128xbf16>
    %110 = vector.shape_cast %109 : vector<1x384x128xbf16> to vector<384x128xbf16>
    %cst_80 = arith.constant dense<0.000000e+00> : vector<256x128xf32>
    %111 = tpu.matmul %108, %110, %cst_80 {dimension_numbers = #tpu.dot_dimension_numbers<[1], [0], [0], [1], [0, 0, 1, 1], [], []>} : vector<256x384xbf16>, vector<384x128xbf16>, vector<256x128xf32> -> vector<256x128xf32>
    %112 = arith.addf %106, %111 : vector<256x128xf32>
    %cst_81 = arith.constant dense<0.000000e+00> : vector<128xf32>
    %113 = vector.multi_reduction <add>, %112, %cst_81 [0] : vector<256x128xf32> to vector<128xf32>
    %114 = vector.shape_cast %113 : vector<128xf32> to vector<1x128xf32>
    %115 = arith.mulf %112, %112 : vector<256x128xf32>
    %cst_82 = arith.constant dense<0.000000e+00> : vector<128xf32>
    %116 = vector.multi_reduction <add>, %115, %cst_82 [0] : vector<256x128xf32> to vector<128xf32>
    %117 = vector.shape_cast %116 : vector<128xf32> to vector<1x128xf32>
    %cst_83 = arith.constant 3.906250e-03 : f32
    %118 = vector.broadcast %cst_83 : f32 to vector<1x128xf32>
    %119 = arith.mulf %114, %118 : vector<1x128xf32>
    %cst_84 = arith.constant 3.906250e-03 : f32
    %120 = vector.broadcast %cst_84 : f32 to vector<1x128xf32>
    %121 = arith.mulf %117, %120 : vector<1x128xf32>
    %122 = arith.mulf %119, %119 : vector<1x128xf32>
    %123 = arith.subf %121, %122 : vector<1x128xf32>
    %cst_85 = arith.constant 0.000000e+00 : f32
    %124 = vector.broadcast %cst_85 : f32 to vector<1x128xf32>
    %125 = arith.maximumf %123, %124 : vector<1x128xf32>
    %126 = vector.broadcast %119 : vector<1x128xf32> to vector<256x128xf32>
    %127 = arith.subf %112, %126 : vector<256x128xf32>
    %cst_86 = arith.constant 9.99999974E-6 : f32
    %128 = vector.broadcast %cst_86 : f32 to vector<1x128xf32>
    %129 = arith.addf %125, %128 : vector<1x128xf32>
    %130 = math.rsqrt %129 : vector<1x128xf32>
    %131 = vector.broadcast %130 : vector<1x128xf32> to vector<256x128xf32>
    %132 = arith.mulf %127, %131 : vector<256x128xf32>
    %133 = arith.addf %6, %132 : vector<256x128xf32>
    %134 = vector.shape_cast %133 : vector<256x128xf32> to vector<16x16x128xf32>
    %c0_87 = arith.constant 0 : index
    %c0_88 = arith.constant 0 : index
    %c0_89 = arith.constant 0 : index
    %c0_90 = arith.constant 0 : index
    %135 = vector.load %arg4[%c0_87, %c0_88, %c0_89, %c0_90] : memref<1x16x16x128xf32, #tpu.memory_space<vmem>>, vector<1x16x16x128xf32>
    %136 = vector.shape_cast %135 : vector<1x16x16x128xf32> to vector<16x16x128xf32>
    %137 = vector.shape_cast %134 : vector<16x16x128xf32> to vector<1x16x16x128xf32>
    tpu.vector_store %arg4[%c0_87, %c0_88, %c0_89, %c0_90], %137 {strides = array<i32>} : memref<1x16x16x128xf32, #tpu.memory_space<vmem>>, vector<1x16x16x128xf32>,
    return
  }
  func.func @transform_0(%arg0: i32) -> (i32, i32, i32, i32) {
    %c0_i32 = arith.constant 0 : i32
    %c0_i32_0 = arith.constant 0 : i32
    %c0_i32_1 = arith.constant 0 : i32
    %c0_i32_2 = arith.constant 0 : i32
    return %arg0, %c0_i32, %c0_i32_0, %c0_i32_1 : i32, i32, i32, i32
  }
  func.func @transform_1(%arg0: i32) -> (i32, i32, i32) {
    %c0_i32 = arith.constant 0 : i32
    %c0_i32_0 = arith.constant 0 : i32
    %c0_i32_1 = arith.constant 0 : i32
    %c0_i32_2 = arith.constant 0 : i32
    return %c0_i32, %c0_i32_0, %c0_i32_1 : i32, i32, i32
  }
  func.func @transform_2(%arg0: i32) -> (i32, i32, i32) {
    %c0_i32 = arith.constant 0 : i32
    %c0_i32_0 = arith.constant 0 : i32
    %c0_i32_1 = arith.constant 0 : i32
    %c0_i32_2 = arith.constant 0 : i32
    return %c0_i32, %c0_i32_0, %c0_i32_1 : i32, i32, i32
  }
  func.func @transform_3(%arg0: i32) -> (i32, i32, i32, i32) {
    %c0_i32 = arith.constant 0 : i32
    %c0_i32_0 = arith.constant 0 : i32
    %c0_i32_1 = arith.constant 0 : i32
    %c0_i32_2 = arith.constant 0 : i32
    return %arg0, %c0_i32, %c0_i32_0, %c0_i32_1 : i32, i32, i32, i32
  }
}

</mosaic_0001>

<llo_original>
// kernel: tpu_custom_call.1
$region0: #{tpu_custom_call.1}
  #allocation0 [shape = 'u32[]', space=smem, size = 0x4, offset = 0x4, fixed_abs, tag = 'smem constant byte address 0x4 - core index']
  #allocation1 [shape = 'u32[144,128]{1,0:T(1,128)}', space=vmem, size = 0x12000, scoped, tag = 'internal scratch']
  #allocation2 [shape = 'bf16[20,16,384]{2,1,0:T(16,128)(2,1)}', space=vmem, size = 0x3c000, scoped, tag = 'scratch operand']
  %s0 = inlined_call_operand.hbm [shape: f32[2,16,16,128], index: 0, kind: input, shape index: {}]
  %s1 = inlined_call_operand.hbm [shape: bf16[3,384,128], index: 1, kind: input, shape index: {}]
  %s2 = inlined_call_operand.hbm [shape: bf16[3,384,128], index: 2, kind: input, shape index: {}]
  %s3 = inlined_call_operand.hbm [shape: f32[2,16,16,128], index: 3, kind: output, shape index: {}]
  %s4 = sld [smem:[#allocation0]]
  $region57: #{tpu_custom_call.1} parent=0
    _
  %s6 = ssub.s32 1, %s4
  %s7 = scalar_select 0, %s6, %s4
  $region1: #{tpu_custom_call.1} parent=0
    #allocation3 [shape = 'u8[262144]{0}', space=vmem, size = 0x40000, scoped, tag = 'input window, operand 0']
    #allocation4 [shape = 's32[2]{0}', space=sflag, size = 0x8, scoped, tag = 'scoped memory for tpu_custom_call.1']
    #allocation5 [shape = 's32[2]{0}', space=sflag, size = 0x8, scoped, tag = 'scoped memory for tpu_custom_call.1']
    #allocation6 [shape = 'u8[294912]{0}', space=vmem, size = 0x48000, scoped, tag = 'input window, operand 1, single buffered']
    #allocation7 [shape = 's32[1]{0}', space=sflag, size = 0x4, scoped, tag = 'scoped memory for tpu_custom_call.1']
    #allocation8 [shape = 'u8[294912]{0}', space=vmem, size = 0x48000, scoped, tag = 'input window, operand 2, single buffered']
    #allocation9 [shape = 'u8[262144]{0}', space=vmem, size = 0x40000, scoped, tag = 'output window, operand 0']
    %8 = vsyncpa [#allocation4], 0
    %s9 = scalar_lea.sflag [#allocation4], 1
    %10 = vsyncpa %s9, 0
    %11 = vsyncpa [#allocation7], 0
    %12 = vsyncpa [#allocation5], 0
    %s13 = scalar_lea.sflag [#allocation5], 1
    %14 = vsyncpa %s13, 0
    loop: start=0, step=1, limit=4
    $region2: #{tpu_custom_call.1} parent=1 // loop_pre_header
      _
    $region3: #{tpu_custom_call.1} parent=1 // loop_header
      %s16 = sphi 0, %s20
      %p17 = scmp.ge.s32.totalorder %s16, 4
      %s26 = sphi 0, %s28
      %s29 = sphi 0, %s26
      %s30 = sphi 0, %s29
      %s46 = sphi 0, %s30
      %s50 = sphi 0, %s50
      %s52 = sphi 0, %s50
      %s53 = sphi 0, %s52
      %s67 = sphi 0, %s53
      %s71 = sphi 0, %s71
      %s73 = sphi 0, %s71
      %s74 = sphi 0, %s73
      %s88 = sphi 0, %s74
      %s94 = sphi 0, %s96
      %s97 = sphi 0, %s94
      %s98 = sphi 0, %s97
      %s114 = sphi 0, %s98
    $region4: #{tpu_custom_call.1} parent=1 // loop_header_branch
      %19 = sbr.rel (%p17) target = $region8
    $region5: #{tpu_custom_call.1} parent=1 // loop_body
      %s21 = ssub.s32 %s16, 1
      %s22 = ssub.s32 %s16, 2
      %s23 = sadd.s32 %s16, 1
      %s24 = ssub.s32 %s16, %s23
      %p25 = scmp.eq.s32.totalorder %s24, 0
      %s27 = sadd.s32 %s26, 1
      %s28 = scalar_select %p25, %s26, %s27
      %p31 = pneg %p25
      %p32 = scmp.eq.s32.totalorder %s16, 1
      %p33 = por %p31, %p32
      %p34 = scmp.ne.s32.totalorder %s26, %s29
      %p35 = scmp.eq.s32.totalorder %s16, 0
      %p36 = por %p34, %p35
      %p37 = scmp.ne.s32.totalorder %s26, %s29
      %p38 = scmp.eq.s32.totalorder %s21, 1
      %p39 = por %p37, %p38
      %p40 = scmp.ne.s32.totalorder %s29, %s30
      %p41 = scmp.eq.s32.totalorder %s21, 0
      %p42 = por %p40, %p41
      %p43 = scmp.ne.s32.totalorder %s29, %s30
      %p44 = scmp.eq.s32.totalorder %s22, 1
      %p45 = por %p43, %p44
      %p47 = scmp.ne.s32.totalorder %s30, %s46
      %p48 = scmp.eq.s32.totalorder %s22, 0
      %p49 = por %p47, %p48
      %s51 = sadd.s32 %s50, 1
      %p54 = scmp.eq.s32.totalorder %s16, 1
      %p55 = scmp.ne.s32.totalorder %s50, %s52
      %p56 = scmp.eq.s32.totalorder %s16, 0
      %p57 = por %p55, %p56
      %p58 = scmp.ne.s32.totalorder %s50, %s52
      %p59 = scmp.eq.s32.totalorder %s21, 1
      %p60 = por %p58, %p59
      %p61 = scmp.ne.s32.totalorder %s52, %s53
      %p62 = scmp.eq.s32.totalorder %s21, 0
      %p63 = por %p61, %p62
      %p64 = scmp.ne.s32.totalorder %s52, %s53
      %p65 = scmp.eq.s32.totalorder %s22, 1
      %p66 = por %p64, %p65
      %p68 = scmp.ne.s32.totalorder %s53, %s67
      %p69 = scmp.eq.s32.totalorder %s22, 0
      %p70 = por %p68, %p69
      %s72 = sadd.s32 %s71, 1
      %p75 = scmp.eq.s32.totalorder %s16, 1
      %p76 = scmp.ne.s32.totalorder %s71, %s73
      %p77 = scmp.eq.s32.totalorder %s16, 0
      %p78 = por %p76, %p77
      %p79 = scmp.ne.s32.totalorder %s71, %s73
      %p80 = scmp.eq.s32.totalorder %s21, 1
      %p81 = por %p79, %p80
      %p82 = scmp.ne.s32.totalorder %s73, %s74
      %p83 = scmp.eq.s32.totalorder %s21, 0
      %p84 = por %p82, %p83
      %p85 = scmp.ne.s32.totalorder %s73, %s74
      %p86 = scmp.eq.s32.totalorder %s22, 1
      %p87 = por %p85, %p86
      %p89 = scmp.ne.s32.totalorder %s74, %s88
      %p90 = scmp.eq.s32.totalorder %s22, 0
      %p91 = por %p89, %p90
      %s92 = ssub.s32 %s16, %s23
      %p93 = scmp.eq.s32.totalorder %s92, 0
      %s95 = sadd.s32 %s94, 1
      %s96 = scalar_select %p93, %s94, %s95
      %p99 = pneg %p93
      %p100 = scmp.eq.s32.totalorder %s16, 1
      %p101 = por %p99, %p100
      %p102 = scmp.ne.s32.totalorder %s94, %s97
      %p103 = scmp.eq.s32.totalorder %s16, 0
      %p104 = por %p102, %p103
      %p105 = scmp.ne.s32.totalorder %s94, %s97
      %p106 = scmp.eq.s32.totalorder %s21, 1
      %p107 = por %p105, %p106
      %p108 = scmp.ne.s32.totalorder %s97, %s98
      %p109 = scmp.eq.s32.totalorder %s21, 0
      %p110 = por %p108, %p109
      %p111 = scmp.ne.s32.totalorder %s97, %s98
      %p112 = scmp.eq.s32.totalorder %s22, 1
      %p113 = por %p111, %p112
      %p115 = scmp.ne.s32.totalorder %s98, %s114
      %p116 = scmp.eq.s32.totalorder %s22, 0
      %p117 = por %p115, %p116
      %p118 = scmp.le.s32.totalorder 1, %s16
      %p119 = scmp.lt.s32.totalorder %s16, 3
      %p120 = pnand %p118, %p119
      %p121 = pneg %p120
      // Predicated region
      $region9: #{tpu_custom_call.1} parent=5 // pred_check
        _
      $region10: #{tpu_custom_call.1} parent=5 // pred_check_branch
        %123 = sbr.rel (%p120) target = $region12
      $region11: #{tpu_custom_call.1} parent=5 // pred_region
        %s124 = ssub.s32 %s16, 1
        // Predicated region
        $region13: #{tpu_custom_call.1} parent=11 // pred_check
          %p125 = pneg %p63
        $region14: #{tpu_custom_call.1} parent=11 // pred_check_branch
          %127 = sbr.rel (%p125) target = $region16
        $region15: #{tpu_custom_call.1} parent=11 // pred_region
          %s129 = ssub.s32 9216, 9216
          %130 = vsyncadd [#allocation7], %s129
          %s131 = sshll.u32 [#allocation6], 4
          %s132 = int_to_ptr.vmem [resolvable:$true] %s131
          %137 = dma.hbm_to_vmem [thread:$0]  %s1, 9216, %s132, [#allocation7], 64, 64, 4
        $region16: #{tpu_custom_call.1} parent=11 // pred_fallthru
          _
        // Predicated region
        $region17: #{tpu_custom_call.1} parent=11 // pred_check
          %p138 = pneg %p84
        $region18: #{tpu_custom_call.1} parent=11 // pred_check_branch
          %140 = sbr.rel (%p138) target = $region20
        $region19: #{tpu_custom_call.1} parent=11 // pred_region
          %s142 = ssub.s32 9216, 9216
          %143 = vsyncadd [#allocation7], %s142
          %s144 = sshll.u32 [#allocation8], 4
          %s145 = int_to_ptr.vmem [resolvable:$true] %s144
          %150 = dma.hbm_to_vmem [thread:$0]  %s2, 9216, %s145, [#allocation7], 64, 64, 4
        $region20: #{tpu_custom_call.1} parent=11 // pred_fallthru
          _
      $region12: #{tpu_custom_call.1} parent=5 // pred_fallthru
        _
      %p151 = scmp.lt.s32.totalorder %s16, 2
      // Predicated region
      $region21: #{tpu_custom_call.1} parent=5 // pred_check
        %p152 = pneg %p151
      $region22: #{tpu_custom_call.1} parent=5 // pred_check_branch
        %154 = sbr.rel (%p152) target = $region24
      $region23: #{tpu_custom_call.1} parent=5 // pred_region
        // Predicated region
        $region25: #{tpu_custom_call.1} parent=23 // pred_check
          %p155 = pneg %p36
        $region26: #{tpu_custom_call.1} parent=23 // pred_check_branch
          %157 = sbr.rel (%p155) target = $region28
        $region27: #{tpu_custom_call.1} parent=23 // pred_region
          %s158 = sand.u32 %s26, 1
          %s159 = scalar_lea.sflag [#allocation4], %s158
          %s160 = sand.u32 %s26, 1
          %s161 = smul.addr %s160, 256
          %s162 = scalar_lea.vmem [#allocation3], %s161
          %s164 = ssub.s32 4096, 4096
          %165 = vsyncadd %s159, %s164
          %s166 = smul.addr %s16, 32
          %s167 = smul.addr %s166, 128
          %s168 = scalar_lea.hbm %s0, %s167
          %s169 = sshll.u32 %s162, 4
          %s170 = int_to_ptr.vmem [resolvable:$true] %s169
          %175 = dma.hbm_to_vmem [thread:$0]  %s168, 4096, %s170, %s159, 128, 128, 8
        $region28: #{tpu_custom_call.1} parent=23 // pred_fallthru
          _
      $region24: #{tpu_custom_call.1} parent=5 // pred_fallthru
        _
      %p176 = scmp.le.s32.totalorder 1, %s16
      %p177 = scmp.lt.s32.totalorder %s16, 3
      %p178 = pnand %p176, %p177
      %p179 = pneg %p178
      // Predicated region
      $region29: #{tpu_custom_call.1} parent=5 // pred_check
        _
      $region30: #{tpu_custom_call.1} parent=5 // pred_check_branch
        %181 = sbr.rel (%p178) target = $region32
      $region31: #{tpu_custom_call.1} parent=5 // pred_region
        %s182 = ssub.s32 %s16, 1
        %s183 = sand.u32 %s29, 1
        %s184 = scalar_lea.sflag [#allocation4], %s183
        %s185 = sand.u32 %s29, 1
        %s186 = smul.addr %s185, 256
        %s187 = scalar_lea.vmem [#allocation3], %s186
        // Predicated region
        $region33: #{tpu_custom_call.1} parent=31 // pred_check
          %p188 = pneg %p42
        $region34: #{tpu_custom_call.1} parent=31 // pred_check_branch
          %190 = sbr.rel (%p188) target = $region36
        $region35: #{tpu_custom_call.1} parent=31 // pred_region
          %191 = dma.done %s184, 4096
        $region36: #{tpu_custom_call.1} parent=31 // pred_fallthru
          _
        // Predicated region
        $region37: #{tpu_custom_call.1} parent=31 // pred_check
          %p192 = pneg %p63
        $region38: #{tpu_custom_call.1} parent=31 // pred_check_branch
          %194 = sbr.rel (%p192) target = $region40
        $region39: #{tpu_custom_call.1} parent=31 // pred_region
          %195 = dma.done [#allocation7], 9216
        $region40: #{tpu_custom_call.1} parent=31 // pred_fallthru
          _
        // Predicated region
        $region41: #{tpu_custom_call.1} parent=31 // pred_check
          %p196 = pneg %p84
        $region42: #{tpu_custom_call.1} parent=31 // pred_check_branch
          %198 = sbr.rel (%p196) target = $region44
        $region43: #{tpu_custom_call.1} parent=31 // pred_region
          %199 = dma.done [#allocation7], 9216
        $region44: #{tpu_custom_call.1} parent=31 // pred_fallthru
          _
        %s200 = sand.u32 %s29, 1
        %s201 = scalar_lea.sflag [#allocation4], %s200
        %s202 = sand.u32 %s29, 1
        %s203 = smul.addr %s202, 256
        %s204 = scalar_lea.vmem [#allocation3], %s203
        %p205 = pneg %p42
        %p206 = pneg %p39
        %p207 = pneg %p63
        %p208 = pneg %p60
        %p209 = pneg %p84
        %p210 = pneg %p81
        %p211 = pneg %p110
        %p212 = pneg %p107
        %s213 = sand.u32 %s97, 1
        %s214 = scalar_lea.sflag [#allocation5], %s213
        %s215 = sand.u32 %s97, 1
        %s216 = smul.addr %s215, 256
        %s217 = scalar_lea.vmem [#allocation9], %s216
        %219 = vst [vmem:[#allocation2] sm:$0xff] 0
        %220 = vst [vmem:[#allocation2 + $0x8] sm:$0xff] 0
        %221 = vst [vmem:[#allocation2 + $0x10] sm:$0xff] 0
        %222 = vst [vmem:[#allocation2 + $0x18] sm:$0xff] 0
        %223 = vst [vmem:[#allocation2 + $0x20] sm:$0xff] 0
        %224 = vst [vmem:[#allocation2 + $0x28] sm:$0xff] 0
        %s225 = scalar_lea.vmem [#allocation2], 432
        %226 = vst [vmem:[%s225] sm:$0xff] 0
        %227 = vst [vmem:[%s225 + $0x8] sm:$0xff] 0
        %228 = vst [vmem:[%s225 + $0x10] sm:$0xff] 0
        %229 = vst [vmem:[%s225 + $0x18] sm:$0xff] 0
        %230 = vst [vmem:[%s225 + $0x20] sm:$0xff] 0
        %231 = vst [vmem:[%s225 + $0x28] sm:$0xff] 0
        %v232 = vlaneseq
        %v233 = vshrl.u32 %v232, 7
        %v234 = vadd.s32 %v233, 8
        %v235 = vld [vmem:[%s187] sm:$0xff]
        %v236 = vld [vmem:[%s187 + $0x8] sm:$0xff]
        %v237 = vld [vmem:[%s187 + $0x10] sm:$0xff]
        %v238 = vld [vmem:[%s187 + $0x18] sm:$0xff]
        %v239 = vld [vmem:[%s187 + $0x20] sm:$0xff]
        %v240 = vld [vmem:[%s187 + $0x28] sm:$0xff]
        %v241 = vld [vmem:[%s187 + $0x30] sm:$0xff]
        %v242 = vld [vmem:[%s187 + $0x38] sm:$0xff]
        %v243 = vld [vmem:[%s187 + $0x40] sm:$0xff]
        %v244 = vld [vmem:[%s187 + $0x48] sm:$0xff]
        %v245 = vld [vmem:[%s187 + $0x50] sm:$0xff]
        %v246 = vld [vmem:[%s187 + $0x58] sm:$0xff]
        %v247 = vld [vmem:[%s187 + $0x60] sm:$0xff]
        %v248 = vld [vmem:[%s187 + $0x68] sm:$0xff]
        %v249 = vld [vmem:[%s187 + $0x70] sm:$0xff]
        %v250 = vld [vmem:[%s187 + $0x78] sm:$0xff]
        %v251 = vld [vmem:[%s187 + $0x80] sm:$0xff]
        %v252 = vld [vmem:[%s187 + $0x88] sm:$0xff]
        %v253 = vld [vmem:[%s187 + $0x90] sm:$0xff]
        %v254 = vld [vmem:[%s187 + $0x98] sm:$0xff]
        %v255 = vld [vmem:[%s187 + $0xa0] sm:$0xff]
        %v256 = vld [vmem:[%s187 + $0xa8] sm:$0xff]
        %v257 = vld [vmem:[%s187 + $0xb0] sm:$0xff]
        %v258 = vld [vmem:[%s187 + $0xb8] sm:$0xff]
        %v259 = vld [vmem:[%s187 + $0xc0] sm:$0xff]
        %v260 = vld [vmem:[%s187 + $0xc8] sm:$0xff]
        %v261 = vld [vmem:[%s187 + $0xd0] sm:$0xff]
        %v262 = vld [vmem:[%s187 + $0xd8] sm:$0xff]
        %v263 = vld [vmem:[%s187 + $0xe0] sm:$0xff]
        %v264 = vld [vmem:[%s187 + $0xe8] sm:$0xff]
        %v265 = vld [vmem:[%s187 + $0xf0] sm:$0xff]
        %v266 = vld [vmem:[%s187 + $0xf8] sm:$0xff]
        %v267 = vrot.slane %v235, 6
        %v268 = vrot.slane %v236, 6
        %v269 = vrot.slane %v237, 6
        %v270 = vrot.slane %v238, 6
        %v271 = vrot.slane %v239, 6
        %v272 = vrot.slane %v240, 6
        %v273 = vrot.slane %v241, 6
        %v274 = vrot.slane %v242, 6
        %v275 = vrot.slane %v243, 6
        %v276 = vrot.slane %v244, 6
        %v277 = vrot.slane %v245, 6
        %v278 = vrot.slane %v246, 6
        %v279 = vrot.slane %v247, 6
        %v280 = vrot.slane %v248, 6
        %v281 = vrot.slane %v249, 6
        %v282 = vrot.slane %v250, 6
        %v283 = vrot.slane %v251, 6
        %v284 = vrot.slane %v252, 6
        %v285 = vrot.slane %v253, 6
        %v286 = vrot.slane %v254, 6
        %v287 = vrot.slane %v255, 6
        %v288 = vrot.slane %v256, 6
        %v289 = vrot.slane %v257, 6
        %v290 = vrot.slane %v258, 6
        %v291 = vrot.slane %v259, 6
        %v292 = vrot.slane %v260, 6
        %v293 = vrot.slane %v261, 6
        %v294 = vrot.slane %v262, 6
        %v295 = vrot.slane %v263, 6
        %v296 = vrot.slane %v264, 6
        %v297 = vrot.slane %v265, 6
        %v298 = vrot.slane %v266, 6
        %vm299 = vcmp.lt.s32.totalorder %v233, 2
        %v300 = vsel %vm299, %v297, %v298
        %v301 = vsel %vm299, %v296, %v297
        %v302 = vsel %vm299, %v295, %v296
        %v303 = vsel %vm299, %v294, %v295
        %v304 = vsel %vm299, %v293, %v294
        %v305 = vsel %vm299, %v292, %v293
        %v306 = vsel %vm299, %v291, %v292
        %v307 = vsel %vm299, %v290, %v291
        %v308 = vsel %vm299, %v289, %v290
        %v309 = vsel %vm299, %v288, %v289
        %v310 = vsel %vm299, %v287, %v288
        %v311 = vsel %vm299, %v286, %v287
        %v312 = vsel %vm299, %v285, %v286
        %v313 = vsel %vm299, %v284, %v285
        %v314 = vsel %vm299, %v283, %v284
        %v315 = vsel %vm299, %v282, %v283
        %v316 = vsel %vm299, %v281, %v282
        %v317 = vsel %vm299, %v280, %v281
        %v318 = vsel %vm299, %v279, %v280
        %v319 = vsel %vm299, %v278, %v279
        %v320 = vsel %vm299, %v277, %v278
        %v321 = vsel %vm299, %v276, %v277
        %v322 = vsel %vm299, %v275, %v276
        %v323 = vsel %vm299, %v274, %v275
        %v324 = vsel %vm299, %v273, %v274
        %v325 = vsel %vm299, %v272, %v273
        %v326 = vsel %vm299, %v271, %v272
        %v327 = vsel %vm299, %v270, %v271
        %v328 = vsel %vm299, %v269, %v270
        %v329 = vsel %vm299, %v268, %v269
        %v330 = vsel %vm299, %v267, %v268
        %v331 = vsel %vm299, %v298, %v267
        %v332 = vrot.slane %v235, 2
        %v333 = vrot.slane %v236, 2
        %v334 = vrot.slane %v237, 2
        %v335 = vrot.slane %v238, 2
        %v336 = vrot.slane %v239, 2
        %v337 = vrot.slane %v240, 2
        %v338 = vrot.slane %v241, 2
        %v339 = vrot.slane %v242, 2
        %v340 = vrot.slane %v243, 2
        %v341 = vrot.slane %v244, 2
        %v342 = vrot.slane %v245, 2
        %v343 = vrot.slane %v246, 2
        %v344 = vrot.slane %v247, 2
        %v345 = vrot.slane %v248, 2
        %v346 = vrot.slane %v249, 2
        %v347 = vrot.slane %v250, 2
        %v348 = vrot.slane %v251, 2
        %v349 = vrot.slane %v252, 2
        %v350 = vrot.slane %v253, 2
        %v351 = vrot.slane %v254, 2
        %v352 = vrot.slane %v255, 2
        %v353 = vrot.slane %v256, 2
        %v354 = vrot.slane %v257, 2
        %v355 = vrot.slane %v258, 2
        %v356 = vrot.slane %v259, 2
        %v357 = vrot.slane %v260, 2
        %v358 = vrot.slane %v261, 2
        %v359 = vrot.slane %v262, 2
        %v360 = vrot.slane %v263, 2
        %v361 = vrot.slane %v264, 2
        %v362 = vrot.slane %v265, 2
        %v363 = vrot.slane %v266, 2
        %vm364 = vcmp.lt.s32.totalorder %v233, 6
        %v365 = vsel %vm364, %v362, %v363
        %v366 = vsel %vm364, %v361, %v362
        %v367 = vsel %vm364, %v360, %v361
        %v368 = vsel %vm364, %v359, %v360
        %v369 = vsel %vm364, %v358, %v359
        %v370 = vsel %vm364, %v357, %v358
        %v371 = vsel %vm364, %v356, %v357
        %v372 = vsel %vm364, %v355, %v356
        %v373 = vsel %vm364, %v354, %v355
        %v374 = vsel %vm364, %v353, %v354
        %v375 = vsel %vm364, %v352, %v353
        %v376 = vsel %vm364, %v351, %v352
        %v377 = vsel %vm364, %v350, %v351
        %v378 = vsel %vm364, %v349, %v350
        %v379 = vsel %vm364, %v348, %v349
        %v380 = vsel %vm364, %v347, %v348
        %v381 = vsel %vm364, %v346, %v347
        %v382 = vsel %vm364, %v345, %v346
        %v383 = vsel %vm364, %v344, %v345
        %v384 = vsel %vm364, %v343, %v344
        %v385 = vsel %vm364, %v342, %v343
        %v386 = vsel %vm364, %v341, %v342
        %v387 = vsel %vm364, %v340, %v341
        %v388 = vsel %vm364, %v339, %v340
        %v389 = vsel %vm364, %v338, %v339
        %v390 = vsel %vm364, %v337, %v338
        %v391 = vsel %vm364, %v336, %v337
        %v392 = vsel %vm364, %v335, %v336
        %v393 = vsel %vm364, %v334, %v335
        %v394 = vsel %vm364, %v333, %v334
        %v395 = vsel %vm364, %v332, %v333
        %v396 = vsel %vm364, %v363, %v332
        %vm397 = vcmp.ge.s32.totalorder %v233, 2
        %vm398 = vcmp.ge.s32.totalorder %v234, 2
        %v399 = vsel %vm397, 1, 0
        %v400 = vsel %vm398, 1, 0
        %vm401 = vcmp.eq.s32.totalorder %v399, 1
        %vm402 = vcmp.eq.s32.totalorder %v400, 1
        %v403 = vsel %vm401, %v331, 0.0
        %v404 = vsel %vm402, %v330, 0.0
        %v405 = vsel %vm401, %v329, 0.0
        %v406 = vsel %vm402, %v328, 0.0
        %v407 = vsel %vm401, %v327, 0.0
        %v408 = vsel %vm402, %v326, 0.0
        %v409 = vsel %vm401, %v325, 0.0
        %v410 = vsel %vm402, %v324, 0.0
        %v411 = vsel %vm401, %v323, 0.0
        %v412 = vsel %vm402, %v322, 0.0
        %v413 = vsel %vm401, %v321, 0.0
        %v414 = vsel %vm402, %v320, 0.0
        %v415 = vsel %vm401, %v319, 0.0
        %v416 = vsel %vm402, %v318, 0.0
        %v417 = vsel %vm401, %v317, 0.0
        %v418 = vsel %vm402, %v316, 0.0
        %v419 = vsel %vm401, %v315, 0.0
        %v420 = vsel %vm402, %v314, 0.0
        %v421 = vsel %vm401, %v313, 0.0
        %v422 = vsel %vm402, %v312, 0.0
        %v423 = vsel %vm401, %v311, 0.0
        %v424 = vsel %vm402, %v310, 0.0
        %v425 = vsel %vm401, %v309, 0.0
        %v426 = vsel %vm402, %v308, 0.0
        %v427 = vsel %vm401, %v307, 0.0
        %v428 = vsel %vm402, %v306, 0.0
        %v429 = vsel %vm401, %v305, 0.0
        %v430 = vsel %vm402, %v304, 0.0
        %v431 = vsel %vm401, %v303, 0.0
        %v432 = vsel %vm402, %v302, 0.0
        %v433 = vsel %vm401, %v301, 0.0
        %v434 = vsel %vm402, %v300, 0.0
        %vm435 = vcmp.lt.s32.totalorder %v233, 14
        %vm436 = vcmp.lt.s32.totalorder %v234, 14
        %v437 = vsel %vm435, 1, 0
        %v438 = vsel %vm436, 1, 0
        %vm439 = vcmp.eq.s32.totalorder %v437, 1
        %vm440 = vcmp.eq.s32.totalorder %v438, 1
        %v441 = vsel %vm439, %v395, 0.0
        %v442 = vsel %vm440, %v394, 0.0
        %v443 = vsel %vm439, %v393, 0.0
        %v444 = vsel %vm440, %v392, 0.0
        %v445 = vsel %vm439, %v391, 0.0
        %v446 = vsel %vm440, %v390, 0.0
        %v447 = vsel %vm439, %v389, 0.0
        %v448 = vsel %vm440, %v388, 0.0
        %v449 = vsel %vm439, %v387, 0.0
        %v450 = vsel %vm440, %v386, 0.0
        %v451 = vsel %vm439, %v385, 0.0
        %v452 = vsel %vm440, %v384, 0.0
        %v453 = vsel %vm439, %v383, 0.0
        %v454 = vsel %vm440, %v382, 0.0
        %v455 = vsel %vm439, %v381, 0.0
        %v456 = vsel %vm440, %v380, 0.0
        %v457 = vsel %vm439, %v379, 0.0
        %v458 = vsel %vm440, %v378, 0.0
        %v459 = vsel %vm439, %v377, 0.0
        %v460 = vsel %vm440, %v376, 0.0
        %v461 = vsel %vm439, %v375, 0.0
        %v462 = vsel %vm440, %v374, 0.0
        %v463 = vsel %vm439, %v373, 0.0
        %v464 = vsel %vm440, %v372, 0.0
        %v465 = vsel %vm439, %v371, 0.0
        %v466 = vsel %vm440, %v370, 0.0
        %v467 = vsel %vm439, %v369, 0.0
        %v468 = vsel %vm440, %v368, 0.0
        %v469 = vsel %vm439, %v367, 0.0
        %v470 = vsel %vm440, %v366, 0.0
        %v471 = vsel %vm439, %v365, 0.0
        %v472 = vsel %vm440, %v396, 0.0
        %v473 = vpack.c.bf16 %v404, %v403
        %v474 = vpack.c.bf16 %v406, %v405
        %v475 = vpack.c.bf16 %v408, %v407
        %v476 = vpack.c.bf16 %v410, %v409
        %v477 = vpack.c.bf16 %v412, %v411
        %v478 = vpack.c.bf16 %v414, %v413
        %v479 = vpack.c.bf16 %v416, %v415
        %v480 = vpack.c.bf16 %v418, %v417
        %v481 = vpack.c.bf16 %v420, %v419
        %v482 = vpack.c.bf16 %v422, %v421
        %v483 = vpack.c.bf16 %v424, %v423
        %v484 = vpack.c.bf16 %v426, %v425
        %v485 = vpack.c.bf16 %v428, %v427
        %v486 = vpack.c.bf16 %v430, %v429
        %v487 = vpack.c.bf16 %v432, %v431
        %v488 = vpack.c.bf16 %v434, %v433
        %s489 = scalar_lea.vmem [#allocation2], 48
        %490 = vst [vmem:[%s489] sm:$0xff] %v473
        %491 = vst [vmem:[%s489 + $0x18] sm:$0xff] %v474
        %492 = vst [vmem:[%s489 + $0x30] sm:$0xff] %v475
        %493 = vst [vmem:[%s489 + $0x48] sm:$0xff] %v476
        %494 = vst [vmem:[%s489 + $0x60] sm:$0xff] %v477
        %495 = vst [vmem:[%s489 + $0x78] sm:$0xff] %v478
        %496 = vst [vmem:[%s489 + $0x90] sm:$0xff] %v479
        %497 = vst [vmem:[%s489 + $0xa8] sm:$0xff] %v480
        %498 = vst [vmem:[%s489 + $0xc0] sm:$0xff] %v481
        %499 = vst [vmem:[%s489 + $0xd8] sm:$0xff] %v482
        %500 = vst [vmem:[%s489 + $0xf0] sm:$0xff] %v483
        %501 = vst [vmem:[%s489 + $0x108] sm:$0xff] %v484
        %502 = vst [vmem:[%s489 + $0x120] sm:$0xff] %v485
        %503 = vst [vmem:[%s489 + $0x138] sm:$0xff] %v486
        %504 = vst [vmem:[%s489 + $0x150] sm:$0xff] %v487
        %505 = vst [vmem:[%s489 + $0x168] sm:$0xff] %v488
        %v506 = vpack.c.bf16 %v236, %v235
        %v507 = vpack.c.bf16 %v238, %v237
        %v508 = vpack.c.bf16 %v240, %v239
        %v509 = vpack.c.bf16 %v242, %v241
        %v510 = vpack.c.bf16 %v244, %v243
        %v511 = vpack.c.bf16 %v246, %v245
        %v512 = vpack.c.bf16 %v248, %v247
        %v513 = vpack.c.bf16 %v250, %v249
        %v514 = vpack.c.bf16 %v252, %v251
        %v515 = vpack.c.bf16 %v254, %v253
        %v516 = vpack.c.bf16 %v256, %v255
        %v517 = vpack.c.bf16 %v258, %v257
        %v518 = vpack.c.bf16 %v260, %v259
        %v519 = vpack.c.bf16 %v262, %v261
        %v520 = vpack.c.bf16 %v264, %v263
        %v521 = vpack.c.bf16 %v266, %v265
        %522 = vst [vmem:[%s489 + $0x8] sm:$0xff] %v506
        %523 = vst [vmem:[%s489 + $0x20] sm:$0xff] %v507
        %524 = vst [vmem:[%s489 + $0x38] sm:$0xff] %v508
        %525 = vst [vmem:[%s489 + $0x50] sm:$0xff] %v509
        %526 = vst [vmem:[%s489 + $0x68] sm:$0xff] %v510
        %527 = vst [vmem:[%s489 + $0x80] sm:$0xff] %v511
        %528 = vst [vmem:[%s489 + $0x98] sm:$0xff] %v512
        %529 = vst [vmem:[%s489 + $0xb0] sm:$0xff] %v513
        %530 = vst [vmem:[%s489 + $0xc8] sm:$0xff] %v514
        %531 = vst [vmem:[%s489 + $0xe0] sm:$0xff] %v515
        %532 = vst [vmem:[%s489 + $0xf8] sm:$0xff] %v516
        %533 = vst [vmem:[%s489 + $0x110] sm:$0xff] %v517
        %534 = vst [vmem:[%s489 + $0x128] sm:$0xff] %v518
        %535 = vst [vmem:[%s489 + $0x140] sm:$0xff] %v519
        %536 = vst [vmem:[%s489 + $0x158] sm:$0xff] %v520
        %537 = vst [vmem:[%s489 + $0x170] sm:$0xff] %v521
        %v538 = vpack.c.bf16 %v442, %v441
        %v539 = vpack.c.bf16 %v444, %v443
        %v540 = vpack.c.bf16 %v446, %v445
        %v541 = vpack.c.bf16 %v448, %v447
        %v542 = vpack.c.bf16 %v450, %v449
        %v543 = vpack.c.bf16 %v452, %v451
        %v544 = vpack.c.bf16 %v454, %v453
        %v545 = vpack.c.bf16 %v456, %v455
        %v546 = vpack.c.bf16 %v458, %v457
        %v547 = vpack.c.bf16 %v460, %v459
        %v548 = vpack.c.bf16 %v462, %v461
        %v549 = vpack.c.bf16 %v464, %v463
        %v550 = vpack.c.bf16 %v466, %v465
        %v551 = vpack.c.bf16 %v468, %v467
        %v552 = vpack.c.bf16 %v470, %v469
        %v553 = vpack.c.bf16 %v472, %v471
        %554 = vst [vmem:[%s489 + $0x10] sm:$0xff] %v538
        %555 = vst [vmem:[%s489 + $0x28] sm:$0xff] %v539
        %556 = vst [vmem:[%s489 + $0x40] sm:$0xff] %v540
        %557 = vst [vmem:[%s489 + $0x58] sm:$0xff] %v541
        %558 = vst [vmem:[%s489 + $0x70] sm:$0xff] %v542
        %559 = vst [vmem:[%s489 + $0x88] sm:$0xff] %v543
        %560 = vst [vmem:[%s489 + $0xa0] sm:$0xff] %v544
        %561 = vst [vmem:[%s489 + $0xb8] sm:$0xff] %v545
        %562 = vst [vmem:[%s489 + $0xd0] sm:$0xff] %v546
        %563 = vst [vmem:[%s489 + $0xe8] sm:$0xff] %v547
        %564 = vst [vmem:[%s489 + $0x100] sm:$0xff] %v548
        %565 = vst [vmem:[%s489 + $0x118] sm:$0xff] %v549
        %566 = vst [vmem:[%s489 + $0x130] sm:$0xff] %v550
        %567 = vst [vmem:[%s489 + $0x148] sm:$0xff] %v551
        %568 = vst [vmem:[%s489 + $0x160] sm:$0xff] %v552
        %569 = vst [vmem:[%s489 + $0x178] sm:$0xff] %v553
        %v570 = vld [vmem:[#allocation2] sm:$0xff]
        %v571 = vld [vmem:[#allocation2 + $0x8] sm:$0xff]
        %v572 = vld [vmem:[#allocation2 + $0x10] sm:$0xff]
        %v573 = vld [vmem:[#allocation2 + $0x18] sm:$0xff]
        %v574 = vld [vmem:[#allocation2 + $0x20] sm:$0xff]
        %v575 = vld [vmem:[#allocation2 + $0x28] sm:$0xff]
        %v576 = vld [vmem:[#allocation2 + $0x30] sm:$0xff]
        %v577 = vld [vmem:[#allocation2 + $0x38] sm:$0xff]
        %v578 = vld [vmem:[#allocation2 + $0x40] sm:$0xff]
        %v579 = vld [vmem:[#allocation2 + $0x48] sm:$0xff]
        %v580 = vld [vmem:[#allocation2 + $0x50] sm:$0xff]
        %v581 = vld [vmem:[#allocation2 + $0x58] sm:$0xff]
        %v582 = vld [vmem:[#allocation2 + $0x60] sm:$0xff]
        %v583 = vld [vmem:[#allocation2 + $0x68] sm:$0xff]
        %v584 = vld [vmem:[#allocation2 + $0x70] sm:$0xff]
        %v585 = vld [vmem:[#allocation2 + $0x78] sm:$0xff]
        %v586 = vld [vmem:[#allocation2 + $0x80] sm:$0xff]
        %v587 = vld [vmem:[#allocation2 + $0x88] sm:$0xff]
        %v588 = vld [vmem:[#allocation2 + $0x90] sm:$0xff]
        %v589 = vld [vmem:[#allocation2 + $0x98] sm:$0xff]
        %v590 = vld [vmem:[#allocation2 + $0xa0] sm:$0xff]
        %v591 = vld [vmem:[#allocation2 + $0xa8] sm:$0xff]
        %v592 = vld [vmem:[#allocation2 + $0xb0] sm:$0xff]
        %v593 = vld [vmem:[#allocation2 + $0xb8] sm:$0xff]
        %v594 = vld [vmem:[#allocation2 + $0xc0] sm:$0xff]
        %v595 = vld [vmem:[#allocation2 + $0xc8] sm:$0xff]
        %v596 = vld [vmem:[#allocation2 + $0xd0] sm:$0xff]
        %v597 = vld [vmem:[#allocation2 + $0xd8] sm:$0xff]
        %v598 = vld [vmem:[#allocation2 + $0xe0] sm:$0xff]
        %v599 = vld [vmem:[#allocation2 + $0xe8] sm:$0xff]
        %v600 = vld [vmem:[#allocation2 + $0xf0] sm:$0xff]
        %v601 = vld [vmem:[#allocation2 + $0xf8] sm:$0xff]
        %v602 = vld [vmem:[#allocation2 + $0x100] sm:$0xff]
        %v603 = vld [vmem:[#allocation2 + $0x108] sm:$0xff]
        %v604 = vld [vmem:[#allocation2 + $0x110] sm:$0xff]
        %v605 = vld [vmem:[#allocation2 + $0x118] sm:$0xff]
        %v606 = vld [vmem:[#allocation2 + $0x120] sm:$0xff]
        %v607 = vld [vmem:[#allocation2 + $0x128] sm:$0xff]
        %v608 = vld [vmem:[#allocation2 + $0x130] sm:$0xff]
        %v609 = vld [vmem:[#allocation2 + $0x138] sm:$0xff]
        %v610 = vld [vmem:[#allocation2 + $0x140] sm:$0xff]
        %v611 = vld [vmem:[#allocation2 + $0x148] sm:$0xff]
        %v612 = vld [vmem:[#allocation2 + $0x150] sm:$0xff]
        %v613 = vld [vmem:[#allocation2 + $0x158] sm:$0xff]
        %v614 = vld [vmem:[#allocation2 + $0x160] sm:$0xff]
        %v615 = vld [vmem:[#allocation2 + $0x168] sm:$0xff]
        %v616 = vld [vmem:[#allocation2 + $0x170] sm:$0xff]
        %v617 = vld [vmem:[#allocation2 + $0x178] sm:$0xff]
        %v618 = vld [vmem:[#allocation6] sm:$0xf]
        %v619 = vld [vmem:[#allocation6 + $0x4] sm:$0xf]
        %v620 = vld [vmem:[#allocation6 + $0x8] sm:$0xf]
        %v621 = vld [vmem:[#allocation6 + $0xc] sm:$0xf]
        %v622 = vld [vmem:[#allocation6 + $0x10] sm:$0xf]
        %v623 = vld [vmem:[#allocation6 + $0x14] sm:$0xf]
        %v624 = vld [vmem:[#allocation6 + $0x18] sm:$0xf]
        %v625 = vld [vmem:[#allocation6 + $0x1c] sm:$0xf]
        %v626 = vld [vmem:[#allocation6 + $0x20] sm:$0xf]
        %v627 = vld [vmem:[#allocation6 + $0x24] sm:$0xf]
        %v628 = vld [vmem:[#allocation6 + $0x28] sm:$0xf]
        %v629 = vld [vmem:[#allocation6 + $0x2c] sm:$0xf]
        %v630 = vld [vmem:[#allocation6 + $0x30] sm:$0xf]
        %v631 = vld [vmem:[#allocation6 + $0x34] sm:$0xf]
        %v632 = vld [vmem:[#allocation6 + $0x38] sm:$0xf]
        %v633 = vld [vmem:[#allocation6 + $0x3c] sm:$0xf]
        %v634 = vld [vmem:[#allocation6 + $0x40] sm:$0xf]
        %v635 = vld [vmem:[#allocation6 + $0x44] sm:$0xf]
        %v636 = vld [vmem:[#allocation6 + $0x48] sm:$0xf]
        %v637 = vld [vmem:[#allocation6 + $0x4c] sm:$0xf]
        %v638 = vld [vmem:[#allocation6 + $0x50] sm:$0xf]
        %v639 = vld [vmem:[#allocation6 + $0x54] sm:$0xf]
        %v640 = vld [vmem:[#allocation6 + $0x58] sm:$0xf]
        %v641 = vld [vmem:[#allocation6 + $0x5c] sm:$0xf]
        %v642 = vld [vmem:[#allocation6 + $0x60] sm:$0xf]
        %v643 = vld [vmem:[#allocation6 + $0x64] sm:$0xf]
        %v644 = vld [vmem:[#allocation6 + $0x68] sm:$0xf]
        %v645 = vld [vmem:[#allocation6 + $0x6c] sm:$0xf]
        %v646 = vld [vmem:[#allocation6 + $0x70] sm:$0xf]
        %v647 = vld [vmem:[#allocation6 + $0x74] sm:$0xf]
        %v648 = vld [vmem:[#allocation6 + $0x78] sm:$0xf]
        %v649 = vld [vmem:[#allocation6 + $0x7c] sm:$0xf]
        %v650 = vld [vmem:[#allocation6 + $0x80] sm:$0xf]
        %v651 = vld [vmem:[#allocation6 + $0x84] sm:$0xf]
        %v652 = vld [vmem:[#allocation6 + $0x88] sm:$0xf]
        %v653 = vld [vmem:[#allocation6 + $0x8c] sm:$0xf]
        %v654 = vld [vmem:[#allocation6 + $0x90] sm:$0xf]
        %v655 = vld [vmem:[#allocation6 + $0x94] sm:$0xf]
        %v656 = vld [vmem:[#allocation6 + $0x98] sm:$0xf]
        %v657 = vld [vmem:[#allocation6 + $0x9c] sm:$0xf]
        %v658 = vld [vmem:[#allocation6 + $0xa0] sm:$0xf]
        %v659 = vld [vmem:[#allocation6 + $0xa4] sm:$0xf]
        %v660 = vld [vmem:[#allocation6 + $0xa8] sm:$0xf]
        %v661 = vld [vmem:[#allocation6 + $0xac] sm:$0xf]
        %v662 = vld [vmem:[#allocation6 + $0xb0] sm:$0xf]
        %v663 = vld [vmem:[#allocation6 + $0xb4] sm:$0xf]
        %v664 = vld [vmem:[#allocation6 + $0xb8] sm:$0xf]
        %v665 = vld [vmem:[#allocation6 + $0xbc] sm:$0xf]
        %v666 = vld [vmem:[%s489] sm:$0xff]
        %v667 = vld [vmem:[%s489 + $0x8] sm:$0xff]
        %v668 = vld [vmem:[%s489 + $0x10] sm:$0xff]
        %v669 = vld [vmem:[%s489 + $0x18] sm:$0xff]
        %v670 = vld [vmem:[%s489 + $0x20] sm:$0xff]
        %v671 = vld [vmem:[%s489 + $0x28] sm:$0xff]
        %v672 = vld [vmem:[%s489 + $0x30] sm:$0xff]
        %v673 = vld [vmem:[%s489 + $0x38] sm:$0xff]
        %v674 = vld [vmem:[%s489 + $0x40] sm:$0xff]
        %v675 = vld [vmem:[%s489 + $0x48] sm:$0xff]
        %v676 = vld [vmem:[%s489 + $0x50] sm:$0xff]
        %v677 = vld [vmem:[%s489 + $0x58] sm:$0xff]
        %v678 = vld [vmem:[%s489 + $0x60] sm:$0xff]
        %v679 = vld [vmem:[%s489 + $0x68] sm:$0xff]
        %v680 = vld [vmem:[%s489 + $0x70] sm:$0xff]
        %v681 = vld [vmem:[%s489 + $0x78] sm:$0xff]
        %v682 = vld [vmem:[%s489 + $0x80] sm:$0xff]
        %v683 = vld [vmem:[%s489 + $0x88] sm:$0xff]
        %v684 = vld [vmem:[%s489 + $0x90] sm:$0xff]
        %v685 = vld [vmem:[%s489 + $0x98] sm:$0xff]
        %v686 = vld [vmem:[%s489 + $0xa0] sm:$0xff]
        %v687 = vld [vmem:[%s489 + $0xa8] sm:$0xff]
        %v688 = vld [vmem:[%s489 + $0xb0] sm:$0xff]
        %v689 = vld [vmem:[%s489 + $0xb8] sm:$0xff]
        %v690 = vld [vmem:[%s489 + $0xc0] sm:$0xff]
        %v691 = vld [vmem:[%s489 + $0xc8] sm:$0xff]
        %v692 = vld [vmem:[%s489 + $0xd0] sm:$0xff]
        %v693 = vld [vmem:[%s489 + $0xd8] sm:$0xff]
        %v694 = vld [vmem:[%s489 + $0xe0] sm:$0xff]
        %v695 = vld [vmem:[%s489 + $0xe8] sm:$0xff]
        %v696 = vld [vmem:[%s489 + $0xf0] sm:$0xff]
        %v697 = vld [vmem:[%s489 + $0xf8] sm:$0xff]
        %v698 = vld [vmem:[%s489 + $0x100] sm:$0xff]
        %v699 = vld [vmem:[%s489 + $0x108] sm:$0xff]
        %v700 = vld [vmem:[%s489 + $0x110] sm:$0xff]
        %v701 = vld [vmem:[%s489 + $0x118] sm:$0xff]
        %v702 = vld [vmem:[%s489 + $0x120] sm:$0xff]
        %v703 = vld [vmem:[%s489 + $0x128] sm:$0xff]
        %v704 = vld [vmem:[%s489 + $0x130] sm:$0xff]
        %v705 = vld [vmem:[%s489 + $0x138] sm:$0xff]
        %v706 = vld [vmem:[%s489 + $0x140] sm:$0xff]
        %v707 = vld [vmem:[%s489 + $0x148] sm:$0xff]
        %v708 = vld [vmem:[%s489 + $0x150] sm:$0xff]
        %v709 = vld [vmem:[%s489 + $0x158] sm:$0xff]
        %v710 = vld [vmem:[%s489 + $0x160] sm:$0xff]
        %v711 = vld [vmem:[%s489 + $0x168] sm:$0xff]
        %v712 = vld [vmem:[%s489 + $0x170] sm:$0xff]
        %v713 = vld [vmem:[%s489 + $0x178] sm:$0xff]
        %s714 = scalar_lea.vmem [#allocation6], 192
        %v715 = vld [vmem:[%s714] sm:$0xf]
        %v716 = vld [vmem:[%s714 + $0x4] sm:$0xf]
        %v717 = vld [vmem:[%s714 + $0x8] sm:$0xf]
        %v718 = vld [vmem:[%s714 + $0xc] sm:$0xf]
        %v719 = vld [vmem:[%s714 + $0x10] sm:$0xf]
        %v720 = vld [vmem:[%s714 + $0x14] sm:$0xf]
        %v721 = vld [vmem:[%s714 + $0x18] sm:$0xf]
        %v722 = vld [vmem:[%s714 + $0x1c] sm:$0xf]
        %v723 = vld [vmem:[%s714 + $0x20] sm:$0xf]
        %v724 = vld [vmem:[%s714 + $0x24] sm:$0xf]
        %v725 = vld [vmem:[%s714 + $0x28] sm:$0xf]
        %v726 = vld [vmem:[%s714 + $0x2c] sm:$0xf]
        %v727 = vld [vmem:[%s714 + $0x30] sm:$0xf]
        %v728 = vld [vmem:[%s714 + $0x34] sm:$0xf]
        %v729 = vld [vmem:[%s714 + $0x38] sm:$0xf]
        %v730 = vld [vmem:[%s714 + $0x3c] sm:$0xf]
        %v731 = vld [vmem:[%s714 + $0x40] sm:$0xf]
        %v732 = vld [vmem:[%s714 + $0x44] sm:$0xf]
        %v733 = vld [vmem:[%s714 + $0x48] sm:$0xf]
        %v734 = vld [vmem:[%s714 + $0x4c] sm:$0xf]
        %v735 = vld [vmem:[%s714 + $0x50] sm:$0xf]
        %v736 = vld [vmem:[%s714 + $0x54] sm:$0xf]
        %v737 = vld [vmem:[%s714 + $0x58] sm:$0xf]
        %v738 = vld [vmem:[%s714 + $0x5c] sm:$0xf]
        %v739 = vld [vmem:[%s714 + $0x60] sm:$0xf]
        %v740 = vld [vmem:[%s714 + $0x64] sm:$0xf]
        %v741 = vld [vmem:[%s714 + $0x68] sm:$0xf]
        %v742 = vld [vmem:[%s714 + $0x6c] sm:$0xf]
        %v743 = vld [vmem:[%s714 + $0x70] sm:$0xf]
        %v744 = vld [vmem:[%s714 + $0x74] sm:$0xf]
        %v745 = vld [vmem:[%s714 + $0x78] sm:$0xf]
        %v746 = vld [vmem:[%s714 + $0x7c] sm:$0xf]
        %v747 = vld [vmem:[%s714 + $0x80] sm:$0xf]
        %v748 = vld [vmem:[%s714 + $0x84] sm:$0xf]
        %v749 = vld [vmem:[%s714 + $0x88] sm:$0xf]
        %v750 = vld [vmem:[%s714 + $0x8c] sm:$0xf]
        %v751 = vld [vmem:[%s714 + $0x90] sm:$0xf]
        %v752 = vld [vmem:[%s714 + $0x94] sm:$0xf]
        %v753 = vld [vmem:[%s714 + $0x98] sm:$0xf]
        %v754 = vld [vmem:[%s714 + $0x9c] sm:$0xf]
        %v755 = vld [vmem:[%s714 + $0xa0] sm:$0xf]
        %v756 = vld [vmem:[%s714 + $0xa4] sm:$0xf]
        %v757 = vld [vmem:[%s714 + $0xa8] sm:$0xf]
        %v758 = vld [vmem:[%s714 + $0xac] sm:$0xf]
        %v759 = vld [vmem:[%s714 + $0xb0] sm:$0xf]
        %v760 = vld [vmem:[%s714 + $0xb4] sm:$0xf]
        %v761 = vld [vmem:[%s714 + $0xb8] sm:$0xf]
        %v762 = vld [vmem:[%s714 + $0xbc] sm:$0xf]
        %v811 = vunpack.c.l.b16 %v715
        %v812 = vunpack.c.l.b16 %v716
        %v813 = vunpack.c.l.b16 %v717
        %v814 = vunpack.c.l.b16 %v718
        %v815 = vunpack.c.l.b16 %v719
        %v816 = vunpack.c.l.b16 %v720
        %v817 = vunpack.c.l.b16 %v721
        %v818 = vunpack.c.l.b16 %v722
        %v819 = vunpack.c.l.b16 %v723
        %v820 = vunpack.c.l.b16 %v724
        %v821 = vunpack.c.l.b16 %v725
        %v822 = vunpack.c.l.b16 %v726
        %v823 = vunpack.c.l.b16 %v727
        %v824 = vunpack.c.l.b16 %v728
        %v825 = vunpack.c.l.b16 %v729
        %v826 = vunpack.c.l.b16 %v730
        %v827 = vunpack.c.l.b16 %v731
        %v828 = vunpack.c.l.b16 %v732
        %v829 = vunpack.c.l.b16 %v733
        %v830 = vunpack.c.l.b16 %v734
        %v831 = vunpack.c.l.b16 %v735
        %v832 = vunpack.c.l.b16 %v736
        %v833 = vunpack.c.l.b16 %v737
        %v834 = vunpack.c.l.b16 %v738
        %v835 = vunpack.c.l.b16 %v739
        %v836 = vunpack.c.l.b16 %v740
        %v837 = vunpack.c.l.b16 %v741
        %v838 = vunpack.c.l.b16 %v742
        %v839 = vunpack.c.l.b16 %v743
        %v840 = vunpack.c.l.b16 %v744
        %v841 = vunpack.c.l.b16 %v745
        %v842 = vunpack.c.l.b16 %v746
        %v843 = vunpack.c.l.b16 %v747
        %v844 = vunpack.c.l.b16 %v748
        %v845 = vunpack.c.l.b16 %v749
        %v846 = vunpack.c.l.b16 %v750
        %v847 = vunpack.c.l.b16 %v751
        %v848 = vunpack.c.l.b16 %v752
        %v849 = vunpack.c.l.b16 %v753
        %v850 = vunpack.c.l.b16 %v754
        %v851 = vunpack.c.l.b16 %v755
        %v852 = vunpack.c.l.b16 %v756
        %v853 = vunpack.c.l.b16 %v757
        %v854 = vunpack.c.l.b16 %v758
        %v855 = vunpack.c.l.b16 %v759
        %v856 = vunpack.c.l.b16 %v760
        %v857 = vunpack.c.l.b16 %v761
        %v858 = vunpack.c.l.b16 %v762
        %v859 = vpack.c.b16 %v812, %v811
        %v860 = vpack.c.b16 %v814, %v813
        %v861 = vpack.c.b16 %v816, %v815
        %v862 = vpack.c.b16 %v818, %v817
        %v863 = vpack.c.b16 %v820, %v819
        %v864 = vpack.c.b16 %v822, %v821
        %v865 = vpack.c.b16 %v824, %v823
        %v866 = vpack.c.b16 %v826, %v825
        %v867 = vpack.c.b16 %v828, %v827
        %v868 = vpack.c.b16 %v830, %v829
        %v869 = vpack.c.b16 %v832, %v831
        %v870 = vpack.c.b16 %v834, %v833
        %v871 = vpack.c.b16 %v836, %v835
        %v872 = vpack.c.b16 %v838, %v837
        %v873 = vpack.c.b16 %v840, %v839
        %v874 = vpack.c.b16 %v842, %v841
        %v875 = vpack.c.b16 %v844, %v843
        %v876 = vpack.c.b16 %v846, %v845
        %v877 = vpack.c.b16 %v848, %v847
        %v878 = vpack.c.b16 %v850, %v849
        %v879 = vpack.c.b16 %v852, %v851
        %v880 = vpack.c.b16 %v854, %v853
        %v881 = vpack.c.b16 %v856, %v855
        %v882 = vpack.c.b16 %v858, %v857
        %907 = vmatprep.subr.bf16.mxu0 0
        %908 = vmatpush1.bf16.msra.mxu0 %v859
        %909 = vmatprep.subr.bf16.mxu0 0
        %910 = vmatpush1.bf16.msra.mxu0 %v860
        %911 = vmatprep.subr.bf16.mxu0 0
        %912 = vmatpush1.bf16.msra.mxu0 %v861
        %913 = vmatprep.subr.bf16.mxu0 0
        %914 = vmatpush1.bf16.msra.mxu0 %v862
        %915 = vmatprep.subr.bf16.mxu0 0
        %916 = vmatpush1.bf16.msra.mxu0 %v863
        %917 = vmatprep.subr.bf16.mxu0 0
        %918 = vmatpush1.bf16.msra.mxu0 %v864
        %919 = vmatprep.subr.bf16.mxu0 0
        %920 = vmatpush1.bf16.msra.mxu0 %v865
        %921 = vmatprep.subr.bf16.mxu0 0
        %922 = vmatpush1.bf16.msra.mxu0 %v866
        %923 = vmatprep.subr.bf16.mxu0 0
        %924 = vmatpush1.bf16.msra.mxu0 %v867
        %925 = vmatprep.subr.bf16.mxu0 0
        %926 = vmatpush1.bf16.msra.mxu0 %v868
        %927 = vmatprep.subr.bf16.mxu0 0
        %928 = vmatpush1.bf16.msra.mxu0 %v869
        %929 = vmatprep.subr.bf16.mxu0 0
        %930 = vmatpush1.bf16.msra.mxu0 %v870
        %931 = vmatprep.subr.bf16.mxu0 0
        %932 = vmatpush1.bf16.msra.mxu0 %v871
        %933 = vmatprep.subr.bf16.mxu0 0
        %934 = vmatpush1.bf16.msra.mxu0 %v872
        %935 = vmatprep.subr.bf16.mxu0 0
        %936 = vmatpush1.bf16.msra.mxu0 %v873
        %937 = vmatprep.subr.bf16.mxu0 0
        %938 = vmatpush1.bf16.msra.mxu0 %v874
        %939 = vmatprep.mubr.bf16.mxu0 %v667
        %940 = vmatmul.mubr.bf16.gmra.mrb[0].mxu0 %v666
        %v941 = vpop.f32.mrb[0].mxu0
        %v942 = vadd.f32 0.0, %v941
        %v943 = vpop.f32.mrb[0].mxu0
        %v944 = vpop.f32.mrb[0].mxu0
        %v945 = vadd.f32 0.0, %v944
        %v946 = vpop.f32.mrb[0].mxu0
        %947 = vmatprep.mubr.bf16.mxu0 %v670
        %948 = vmatmul.mubr.bf16.gmra.mrb[0].mxu0 %v669
        %v949 = vpop.f32.mrb[0].mxu0
        %v950 = vadd.f32 0.0, %v949
        %v951 = vpop.f32.mrb[0].mxu0
        %v952 = vpop.f32.mrb[0].mxu0
        %v953 = vadd.f32 0.0, %v952
        %v954 = vpop.f32.mrb[0].mxu0
        %955 = vmatprep.mubr.bf16.mxu0 %v673
        %956 = vmatmul.mubr.bf16.gmra.mrb[0].mxu0 %v672
        %v957 = vpop.f32.mrb[0].mxu0
        %v958 = vadd.f32 0.0, %v957
        %v959 = vpop.f32.mrb[0].mxu0
        %v960 = vpop.f32.mrb[0].mxu0
        %v961 = vadd.f32 0.0, %v960
        %v962 = vpop.f32.mrb[0].mxu0
        %963 = vmatprep.mubr.bf16.mxu0 %v676
        %964 = vmatmul.mubr.bf16.gmra.mrb[0].mxu0 %v675
        %v965 = vpop.f32.mrb[0].mxu0
        %v966 = vadd.f32 0.0, %v965
        %v967 = vpop.f32.mrb[0].mxu0
        %v968 = vpop.f32.mrb[0].mxu0
        %v969 = vadd.f32 0.0, %v968
        %v970 = vpop.f32.mrb[0].mxu0
        %971 = vmatprep.mubr.bf16.mxu0 %v679
        %972 = vmatmul.mubr.bf16.gmra.mrb[0].mxu0 %v678
        %v973 = vpop.f32.mrb[0].mxu0
        %v974 = vadd.f32 0.0, %v973
        %v975 = vpop.f32.mrb[0].mxu0
        %v976 = vpop.f32.mrb[0].mxu0
        %v977 = vadd.f32 0.0, %v976
        %v978 = vpop.f32.mrb[0].mxu0
        %979 = vmatprep.mubr.bf16.mxu0 %v682
        %980 = vmatmul.mubr.bf16.gmra.mrb[0].mxu0 %v681
        %v981 = vpop.f32.mrb[0].mxu0
        %v982 = vadd.f32 0.0, %v981
        %v983 = vpop.f32.mrb[0].mxu0
        %v984 = vpop.f32.mrb[0].mxu0
        %v985 = vadd.f32 0.0, %v984
        %v986 = vpop.f32.mrb[0].mxu0
        %987 = vmatprep.mubr.bf16.mxu0 %v685
        %988 = vmatmul.mubr.bf16.gmra.mrb[0].mxu0 %v684
        %v989 = vpop.f32.mrb[0].mxu0
        %v990 = vadd.f32 0.0, %v989
        %v991 = vpop.f32.mrb[0].mxu0
        %v992 = vpop.f32.mrb[0].mxu0
        %v993 = vadd.f32 0.0, %v992
        %v994 = vpop.f32.mrb[0].mxu0
        %995 = vmatprep.mubr.bf16.mxu0 %v688
        %996 = vmatmul.mubr.bf16.gmra.mrb[0].mxu0 %v687
        %v997 = vpop.f32.mrb[0].mxu0
        %v998 = vadd.f32 0.0, %v997
        %v999 = vpop.f32.mrb[0].mxu0
        %v1000 = vpop.f32.mrb[0].mxu0
        %v1001 = vadd.f32 0.0, %v1000
        %v1002 = vpop.f32.mrb[0].mxu0
        %1003 = vmatprep.mubr.bf16.mxu0 %v691
        %1004 = vmatmul.mubr.bf16.gmra.mrb[0].mxu0 %v690
        %v1005 = vpop.f32.mrb[0].mxu0
        %v1006 = vadd.f32 0.0, %v1005
        %v1007 = vpop.f32.mrb[0].mxu0
        %v1008 = vpop.f32.mrb[0].mxu0
        %v1009 = vadd.f32 0.0, %v1008
        %v1010 = vpop.f32.mrb[0].mxu0
        %1011 = vmatprep.mubr.bf16.mxu0 %v694
        %1012 = vmatmul.mubr.bf16.gmra.mrb[0].mxu0 %v693
        %v1013 = vpop.f32.mrb[0].mxu0
        %v1014 = vadd.f32 0.0, %v1013
        %v1015 = vpop.f32.mrb[0].mxu0
        %v1016 = vpop.f32.mrb[0].mxu0
        %v1017 = vadd.f32 0.0, %v1016
        %v1018 = vpop.f32.mrb[0].mxu0
        %1019 = vmatprep.mubr.bf16.mxu0 %v697
        %1020 = vmatmul.mubr.bf16.gmra.mrb[0].mxu0 %v696
        %v1021 = vpop.f32.mrb[0].mxu0
        %v1022 = vadd.f32 0.0, %v1021
        %v1023 = vpop.f32.mrb[0].mxu0
        %v1024 = vpop.f32.mrb[0].mxu0
        %v1025 = vadd.f32 0.0, %v1024
        %v1026 = vpop.f32.mrb[0].mxu0
        %1027 = vmatprep.mubr.bf16.mxu0 %v700
        %1028 = vmatmul.mubr.bf16.gmra.mrb[0].mxu0 %v699
        %v1029 = vpop.f32.mrb[0].mxu0
        %v1030 = vadd.f32 0.0, %v1029
        %v1031 = vpop.f32.mrb[0].mxu0
        %v1032 = vpop.f32.mrb[0].mxu0
        %v1033 = vadd.f32 0.0, %v1032
        %v1034 = vpop.f32.mrb[0].mxu0
        %1035 = vmatprep.mubr.bf16.mxu0 %v703
        %1036 = vmatmul.mubr.bf16.gmra.mrb[0].mxu0 %v702
        %v1037 = vpop.f32.mrb[0].mxu0
        %v1038 = vadd.f32 0.0, %v1037
        %v1039 = vpop.f32.mrb[0].mxu0
        %v1040 = vpop.f32.mrb[0].mxu0
        %v1041 = vadd.f32 0.0, %v1040
        %v1042 = vpop.f32.mrb[0].mxu0
        %1043 = vmatprep.mubr.bf16.mxu0 %v706
        %1044 = vmatmul.mubr.bf16.gmra.mrb[0].mxu0 %v705
        %v1045 = vpop.f32.mrb[0].mxu0
        %v1046 = vadd.f32 0.0, %v1045
        %v1047 = vpop.f32.mrb[0].mxu0
        %v1048 = vpop.f32.mrb[0].mxu0
        %v1049 = vadd.f32 0.0, %v1048
        %v1050 = vpop.f32.mrb[0].mxu0
        %1051 = vmatprep.mubr.bf16.mxu0 %v709
        %1052 = vmatmul.mubr.bf16.gmra.mrb[0].mxu0 %v708
        %v1053 = vpop.f32.mrb[0].mxu0
        %v1054 = vadd.f32 0.0, %v1053
        %v1055 = vpop.f32.mrb[0].mxu0
        %v1056 = vpop.f32.mrb[0].mxu0
        %v1057 = vadd.f32 0.0, %v1056
        %v1058 = vpop.f32.mrb[0].mxu0
        %1059 = vmatprep.mubr.bf16.mxu0 %v712
        %1060 = vmatmul.mubr.bf16.gmra.mrb[0].mxu0 %v711
        %v1061 = vpop.f32.mrb[0].mxu0
        %v1062 = vadd.f32 0.0, %v1061
        %v1063 = vpop.f32.mrb[0].mxu0
        %v1064 = vpop.f32.mrb[0].mxu0
        %v1065 = vadd.f32 0.0, %v1064
        %v1066 = vpop.f32.mrb[0].mxu0
        %1067 = vdwg.mxu0
        %1068 = vmatprep.subr.bf16.mxu0 0
        %1069 = vmatpush1.bf16.msra.mxu0 %v875
        %1070 = vmatprep.subr.bf16.mxu0 0
        %1071 = vmatpush1.bf16.msra.mxu0 %v876
        %1072 = vmatprep.subr.bf16.mxu0 0
        %1073 = vmatpush1.bf16.msra.mxu0 %v877
        %1074 = vmatprep.subr.bf16.mxu0 0
        %1075 = vmatpush1.bf16.msra.mxu0 %v878
        %1076 = vmatprep.subr.bf16.mxu0 0
        %1077 = vmatpush1.bf16.msra.mxu0 %v879
        %1078 = vmatprep.subr.bf16.mxu0 0
        %1079 = vmatpush1.bf16.msra.mxu0 %v880
        %1080 = vmatprep.subr.bf16.mxu0 0
        %1081 = vmatpush1.bf16.msra.mxu0 %v881
        %1082 = vmatprep.subr.bf16.mxu0 0
        %1083 = vmatpush1.bf16.msra.mxu0 %v882
        %1084 = vmatprep.subr.bf16.mxu0 0
        %1085 = vmatpush1.bf16.msra.mxu0 0
        %1086 = vmatprep.subr.bf16.mxu0 0
        %1087 = vmatpush1.bf16.msra.mxu0 0
        %1088 = vmatprep.subr.bf16.mxu0 0
        %1089 = vmatpush1.bf16.msra.mxu0 0
        %1090 = vmatprep.subr.bf16.mxu0 0
        %1091 = vmatpush1.bf16.msra.mxu0 0
        %1092 = vmatprep.subr.bf16.mxu0 0
        %1093 = vmatpush1.bf16.msra.mxu0 0
        %1094 = vmatprep.subr.bf16.mxu0 0
        %1095 = vmatpush1.bf16.msra.mxu0 0
        %1096 = vmatprep.subr.bf16.mxu0 0
        %1097 = vmatpush1.bf16.msra.mxu0 0
        %1098 = vmatprep.subr.bf16.mxu0 0
        %1099 = vmatpush1.bf16.msra.mxu0 0
        %1100 = vmatprep.mubr.bf16.mxu0 0
        %1101 = vmatmul.mubr.bf16.gmra.mrb[0].mxu0 %v668
        %v1102 = vpop.f32.mrb[0].mxu0
        %v1103 = vadd.f32 %v942, %v1102
        %v1104 = vpop.f32.mrb[0].mxu0
        %v1105 = vpop.f32.mrb[0].mxu0
        %v1106 = vadd.f32 %v945, %v1105
        %v1107 = vpop.f32.mrb[0].mxu0
        %1108 = vmatprep.mubr.bf16.mxu0 0
        %1109 = vmatmul.mubr.bf16.gmra.mrb[0].mxu0 %v671
        %v1110 = vpop.f32.mrb[0].mxu0
        %v1111 = vadd.f32 %v950, %v1110
        %v1112 = vpop.f32.mrb[0].mxu0
        %v1113 = vpop.f32.mrb[0].mxu0
        %v1114 = vadd.f32 %v953, %v1113
        %v1115 = vpop.f32.mrb[0].mxu0
        %1116 = vmatprep.mubr.bf16.mxu0 0
        %1117 = vmatmul.mubr.bf16.gmra.mrb[0].mxu0 %v674
        %v1118 = vpop.f32.mrb[0].mxu0
        %v1119 = vadd.f32 %v958, %v1118
        %v1120 = vpop.f32.mrb[0].mxu0
        %v1121 = vpop.f32.mrb[0].mxu0
        %v1122 = vadd.f32 %v961, %v1121
        %v1123 = vpop.f32.mrb[0].mxu0
        %1124 = vmatprep.mubr.bf16.mxu0 0
        %1125 = vmatmul.mubr.bf16.gmra.mrb[0].mxu0 %v677
        %v1126 = vpop.f32.mrb[0].mxu0
        %v1127 = vadd.f32 %v966, %v1126
        %v1128 = vpop.f32.mrb[0].mxu0
        %v1129 = vpop.f32.mrb[0].mxu0
        %v1130 = vadd.f32 %v969, %v1129
        %v1131 = vpop.f32.mrb[0].mxu0
        %1132 = vmatprep.mubr.bf16.mxu0 0
        %1133 = vmatmul.mubr.bf16.gmra.mrb[0].mxu0 %v680
        %v1134 = vpop.f32.mrb[0].mxu0
        %v1135 = vadd.f32 %v974, %v1134
        %v1136 = vpop.f32.mrb[0].mxu0
        %v1137 = vpop.f32.mrb[0].mxu0
        %v1138 = vadd.f32 %v977, %v1137
        %v1139 = vpop.f32.mrb[0].mxu0
        %1140 = vmatprep.mubr.bf16.mxu0 0
        %1141 = vmatmul.mubr.bf16.gmra.mrb[0].mxu0 %v683
        %v1142 = vpop.f32.mrb[0].mxu0
        %v1143 = vadd.f32 %v982, %v1142
        %v1144 = vpop.f32.mrb[0].mxu0
        %v1145 = vpop.f32.mrb[0].mxu0
        %v1146 = vadd.f32 %v985, %v1145
        %v1147 = vpop.f32.mrb[0].mxu0
        %1148 = vmatprep.mubr.bf16.mxu0 0
        %1149 = vmatmul.mubr.bf16.gmra.mrb[0].mxu0 %v686
        %v1150 = vpop.f32.mrb[0].mxu0
        %v1151 = vadd.f32 %v990, %v1150
        %v1152 = vpop.f32.mrb[0].mxu0
        %v1153 = vpop.f32.mrb[0].mxu0
        %v1154 = vadd.f32 %v993, %v1153
        %v1155 = vpop.f32.mrb[0].mxu0
        %1156 = vmatprep.mubr.bf16.mxu0 0
        %1157 = vmatmul.mubr.bf16.gmra.mrb[0].mxu0 %v689
        %v1158 = vpop.f32.mrb[0].mxu0
        %v1159 = vadd.f32 %v998, %v1158
        %v1160 = vpop.f32.mrb[0].mxu0
        %v1161 = vpop.f32.mrb[0].mxu0
        %v1162 = vadd.f32 %v1001, %v1161
        %v1163 = vpop.f32.mrb[0].mxu0
        %1164 = vmatprep.mubr.bf16.mxu0 0
        %1165 = vmatmul.mubr.bf16.gmra.mrb[0].mxu0 %v692
        %v1166 = vpop.f32.mrb[0].mxu0
        %v1167 = vadd.f32 %v1006, %v1166
        %v1168 = vpop.f32.mrb[0].mxu0
        %v1169 = vpop.f32.mrb[0].mxu0
        %v1170 = vadd.f32 %v1009, %v1169
        %v1171 = vpop.f32.mrb[0].mxu0
        %1172 = vmatprep.mubr.bf16.mxu0 0
        %1173 = vmatmul.mubr.bf16.gmra.mrb[0].mxu0 %v695
        %v1174 = vpop.f32.mrb[0].mxu0
        %v1175 = vadd.f32 %v1014, %v1174
        %v1176 = vpop.f32.mrb[0].mxu0
        %v1177 = vpop.f32.mrb[0].mxu0
        %v1178 = vadd.f32 %v1017, %v1177
        %v1179 = vpop.f32.mrb[0].mxu0
        %1180 = vmatprep.mubr.bf16.mxu0 0
        %1181 = vmatmul.mubr.bf16.gmra.mrb[0].mxu0 %v698
        %v1182 = vpop.f32.mrb[0].mxu0
        %v1183 = vadd.f32 %v1022, %v1182
        %v1184 = vpop.f32.mrb[0].mxu0
        %v1185 = vpop.f32.mrb[0].mxu0
        %v1186 = vadd.f32 %v1025, %v1185
        %v1187 = vpop.f32.mrb[0].mxu0
        %1188 = vmatprep.mubr.bf16.mxu0 0
        %1189 = vmatmul.mubr.bf16.gmra.mrb[0].mxu0 %v701
        %v1190 = vpop.f32.mrb[0].mxu0
        %v1191 = vadd.f32 %v1030, %v1190
        %v1192 = vpop.f32.mrb[0].mxu0
        %v1193 = vpop.f32.mrb[0].mxu0
        %v1194 = vadd.f32 %v1033, %v1193
        %v1195 = vpop.f32.mrb[0].mxu0
        %1196 = vmatprep.mubr.bf16.mxu0 0
        %1197 = vmatmul.mubr.bf16.gmra.mrb[0].mxu0 %v704
        %v1198 = vpop.f32.mrb[0].mxu0
        %v1199 = vadd.f32 %v1038, %v1198
        %v1200 = vpop.f32.mrb[0].mxu0
        %v1201 = vpop.f32.mrb[0].mxu0
        %v1202 = vadd.f32 %v1041, %v1201
        %v1203 = vpop.f32.mrb[0].mxu0
        %1204 = vmatprep.mubr.bf16.mxu0 0
        %1205 = vmatmul.mubr.bf16.gmra.mrb[0].mxu0 %v707
        %v1206 = vpop.f32.mrb[0].mxu0
        %v1207 = vadd.f32 %v1046, %v1206
        %v1208 = vpop.f32.mrb[0].mxu0
        %v1209 = vpop.f32.mrb[0].mxu0
        %v1210 = vadd.f32 %v1049, %v1209
        %v1211 = vpop.f32.mrb[0].mxu0
        %1212 = vmatprep.mubr.bf16.mxu0 0
        %1213 = vmatmul.mubr.bf16.gmra.mrb[0].mxu0 %v710
        %v1214 = vpop.f32.mrb[0].mxu0
        %v1215 = vadd.f32 %v1054, %v1214
        %v1216 = vpop.f32.mrb[0].mxu0
        %v1217 = vpop.f32.mrb[0].mxu0
        %v1218 = vadd.f32 %v1057, %v1217
        %v1219 = vpop.f32.mrb[0].mxu0
        %1220 = vmatprep.mubr.bf16.mxu0 0
        %1221 = vmatmul.mubr.bf16.gmra.mrb[0].mxu0 %v713
        %v1222 = vpop.f32.mrb[0].mxu0
        %v1223 = vadd.f32 %v1062, %v1222
        %v1224 = vpop.f32.mrb[0].mxu0
        %v1225 = vpop.f32.mrb[0].mxu0
        %v1226 = vadd.f32 %v1065, %v1225
        %v1227 = vpop.f32.mrb[0].mxu0
        %1228 = vdwg.mxu0
        %v1277 = vunpack.c.l.b16 %v618
        %v1278 = vunpack.c.l.b16 %v619
        %v1279 = vunpack.c.l.b16 %v620
        %v1280 = vunpack.c.l.b16 %v621
        %v1281 = vunpack.c.l.b16 %v622
        %v1282 = vunpack.c.l.b16 %v623
        %v1283 = vunpack.c.l.b16 %v624
        %v1284 = vunpack.c.l.b16 %v625
        %v1285 = vunpack.c.l.b16 %v626
        %v1286 = vunpack.c.l.b16 %v627
        %v1287 = vunpack.c.l.b16 %v628
        %v1288 = vunpack.c.l.b16 %v629
        %v1289 = vunpack.c.l.b16 %v630
        %v1290 = vunpack.c.l.b16 %v631
        %v1291 = vunpack.c.l.b16 %v632
        %v1292 = vunpack.c.l.b16 %v633
        %v1293 = vunpack.c.l.b16 %v634
        %v1294 = vunpack.c.l.b16 %v635
        %v1295 = vunpack.c.l.b16 %v636
        %v1296 = vunpack.c.l.b16 %v637
        %v1297 = vunpack.c.l.b16 %v638
        %v1298 = vunpack.c.l.b16 %v639
        %v1299 = vunpack.c.l.b16 %v640
        %v1300 = vunpack.c.l.b16 %v641
        %v1301 = vunpack.c.l.b16 %v642
        %v1302 = vunpack.c.l.b16 %v643
        %v1303 = vunpack.c.l.b16 %v644
        %v1304 = vunpack.c.l.b16 %v645
        %v1305 = vunpack.c.l.b16 %v646
        %v1306 = vunpack.c.l.b16 %v647
        %v1307 = vunpack.c.l.b16 %v648
        %v1308 = vunpack.c.l.b16 %v649
        %v1309 = vunpack.c.l.b16 %v650
        %v1310 = vunpack.c.l.b16 %v651
        %v1311 = vunpack.c.l.b16 %v652
        %v1312 = vunpack.c.l.b16 %v653
        %v1313 = vunpack.c.l.b16 %v654
        %v1314 = vunpack.c.l.b16 %v655
        %v1315 = vunpack.c.l.b16 %v656
        %v1316 = vunpack.c.l.b16 %v657
        %v1317 = vunpack.c.l.b16 %v658
        %v1318 = vunpack.c.l.b16 %v659
        %v1319 = vunpack.c.l.b16 %v660
        %v1320 = vunpack.c.l.b16 %v661
        %v1321 = vunpack.c.l.b16 %v662
        %v1322 = vunpack.c.l.b16 %v663
        %v1323 = vunpack.c.l.b16 %v664
        %v1324 = vunpack.c.l.b16 %v665
        %v1325 = vpack.c.b16 %v1278, %v1277
        %v1326 = vpack.c.b16 %v1280, %v1279
        %v1327 = vpack.c.b16 %v1282, %v1281
        %v1328 = vpack.c.b16 %v1284, %v1283
        %v1329 = vpack.c.b16 %v1286, %v1285
        %v1330 = vpack.c.b16 %v1288, %v1287
        %v1331 = vpack.c.b16 %v1290, %v1289
        %v1332 = vpack.c.b16 %v1292, %v1291
        %v1333 = vpack.c.b16 %v1294, %v1293
        %v1334 = vpack.c.b16 %v1296, %v1295
        %v1335 = vpack.c.b16 %v1298, %v1297
        %v1336 = vpack.c.b16 %v1300, %v1299
        %v1337 = vpack.c.b16 %v1302, %v1301
        %v1338 = vpack.c.b16 %v1304, %v1303
        %v1339 = vpack.c.b16 %v1306, %v1305
        %v1340 = vpack.c.b16 %v1308, %v1307
        %v1341 = vpack.c.b16 %v1310, %v1309
        %v1342 = vpack.c.b16 %v1312, %v1311
        %v1343 = vpack.c.b16 %v1314, %v1313
        %v1344 = vpack.c.b16 %v1316, %v1315
        %v1345 = vpack.c.b16 %v1318, %v1317
        %v1346 = vpack.c.b16 %v1320, %v1319
        %v1347 = vpack.c.b16 %v1322, %v1321
        %v1348 = vpack.c.b16 %v1324, %v1323
        %1373 = vmatprep.subr.bf16.mxu0 0
        %1374 = vmatpush1.bf16.msra.mxu0 %v1325
        %1375 = vmatprep.subr.bf16.mxu0 0
        %1376 = vmatpush1.bf16.msra.mxu0 %v1326
        %1377 = vmatprep.subr.bf16.mxu0 0
        %1378 = vmatpush1.bf16.msra.mxu0 %v1327
        %1379 = vmatprep.subr.bf16.mxu0 0
        %1380 = vmatpush1.bf16.msra.mxu0 %v1328
        %1381 = vmatprep.subr.bf16.mxu0 0
        %1382 = vmatpush1.bf16.msra.mxu0 %v1329
        %1383 = vmatprep.subr.bf16.mxu0 0
        %1384 = vmatpush1.bf16.msra.mxu0 %v1330
        %1385 = vmatprep.subr.bf16.mxu0 0
        %1386 = vmatpush1.bf16.msra.mxu0 %v1331
        %1387 = vmatprep.subr.bf16.mxu0 0
        %1388 = vmatpush1.bf16.msra.mxu0 %v1332
        %1389 = vmatprep.subr.bf16.mxu0 0
        %1390 = vmatpush1.bf16.msra.mxu0 %v1333
        %1391 = vmatprep.subr.bf16.mxu0 0
        %1392 = vmatpush1.bf16.msra.mxu0 %v1334
        %1393 = vmatprep.subr.bf16.mxu0 0
        %1394 = vmatpush1.bf16.msra.mxu0 %v1335
        %1395 = vmatprep.subr.bf16.mxu0 0
        %1396 = vmatpush1.bf16.msra.mxu0 %v1336
        %1397 = vmatprep.subr.bf16.mxu0 0
        %1398 = vmatpush1.bf16.msra.mxu0 %v1337
        %1399 = vmatprep.subr.bf16.mxu0 0
        %1400 = vmatpush1.bf16.msra.mxu0 %v1338
        %1401 = vmatprep.subr.bf16.mxu0 0
        %1402 = vmatpush1.bf16.msra.mxu0 %v1339
        %1403 = vmatprep.subr.bf16.mxu0 0
        %1404 = vmatpush1.bf16.msra.mxu0 %v1340
        %1405 = vmatprep.mubr.bf16.mxu0 %v571
        %1406 = vmatmul.mubr.bf16.gmra.mrb[0].mxu0 %v570
        %v1407 = vpop.f32.mrb[0].mxu0
        %v1408 = vadd.f32 %v1103, %v1407
        %v1409 = vpop.f32.mrb[0].mxu0
        %v1410 = vpop.f32.mrb[0].mxu0
        %v1411 = vadd.f32 %v1106, %v1410
        %v1412 = vpop.f32.mrb[0].mxu0
        %1413 = vmatprep.mubr.bf16.mxu0 %v574
        %1414 = vmatmul.mubr.bf16.gmra.mrb[0].mxu0 %v573
        %v1415 = vpop.f32.mrb[0].mxu0
        %v1416 = vadd.f32 %v1111, %v1415
        %v1417 = vpop.f32.mrb[0].mxu0
        %v1418 = vpop.f32.mrb[0].mxu0
        %v1419 = vadd.f32 %v1114, %v1418
        %v1420 = vpop.f32.mrb[0].mxu0
        %1421 = vmatprep.mubr.bf16.mxu0 %v577
        %1422 = vmatmul.mubr.bf16.gmra.mrb[0].mxu0 %v576
        %v1423 = vpop.f32.mrb[0].mxu0
        %v1424 = vadd.f32 %v1119, %v1423
        %v1425 = vpop.f32.mrb[0].mxu0
        %v1426 = vpop.f32.mrb[0].mxu0
        %v1427 = vadd.f32 %v1122, %v1426
        %v1428 = vpop.f32.mrb[0].mxu0
        %1429 = vmatprep.mubr.bf16.mxu0 %v580
        %1430 = vmatmul.mubr.bf16.gmra.mrb[0].mxu0 %v579
        %v1431 = vpop.f32.mrb[0].mxu0
        %v1432 = vadd.f32 %v1127, %v1431
        %v1433 = vpop.f32.mrb[0].mxu0
        %v1434 = vpop.f32.mrb[0].mxu0
        %v1435 = vadd.f32 %v1130, %v1434
        %v1436 = vpop.f32.mrb[0].mxu0
        %1437 = vmatprep.mubr.bf16.mxu0 %v583
        %1438 = vmatmul.mubr.bf16.gmra.mrb[0].mxu0 %v582
        %v1439 = vpop.f32.mrb[0].mxu0
        %v1440 = vadd.f32 %v1135, %v1439
        %v1441 = vpop.f32.mrb[0].mxu0
        %v1442 = vpop.f32.mrb[0].mxu0
        %v1443 = vadd.f32 %v1138, %v1442
        %v1444 = vpop.f32.mrb[0].mxu0
        %1445 = vmatprep.mubr.bf16.mxu0 %v586
        %1446 = vmatmul.mubr.bf16.gmra.mrb[0].mxu0 %v585
        %v1447 = vpop.f32.mrb[0].mxu0
        %v1448 = vadd.f32 %v1143, %v1447
        %v1449 = vpop.f32.mrb[0].mxu0
        %v1450 = vpop.f32.mrb[0].mxu0
        %v1451 = vadd.f32 %v1146, %v1450
        %v1452 = vpop.f32.mrb[0].mxu0
        %1453 = vmatprep.mubr.bf16.mxu0 %v589
        %1454 = vmatmul.mubr.bf16.gmra.mrb[0].mxu0 %v588
        %v1455 = vpop.f32.mrb[0].mxu0
        %v1456 = vadd.f32 %v1151, %v1455
        %v1457 = vpop.f32.mrb[0].mxu0
        %v1458 = vpop.f32.mrb[0].mxu0
        %v1459 = vadd.f32 %v1154, %v1458
        %v1460 = vpop.f32.mrb[0].mxu0
        %1461 = vmatprep.mubr.bf16.mxu0 %v592
        %1462 = vmatmul.mubr.bf16.gmra.mrb[0].mxu0 %v591
        %v1463 = vpop.f32.mrb[0].mxu0
        %v1464 = vadd.f32 %v1159, %v1463
        %v1465 = vpop.f32.mrb[0].mxu0
        %v1466 = vpop.f32.mrb[0].mxu0
        %v1467 = vadd.f32 %v1162, %v1466
        %v1468 = vpop.f32.mrb[0].mxu0
        %1469 = vmatprep.mubr.bf16.mxu0 %v595
        %1470 = vmatmul.mubr.bf16.gmra.mrb[0].mxu0 %v594
        %v1471 = vpop.f32.mrb[0].mxu0
        %v1472 = vadd.f32 %v1167, %v1471
        %v1473 = vpop.f32.mrb[0].mxu0
        %v1474 = vpop.f32.mrb[0].mxu0
        %v1475 = vadd.f32 %v1170, %v1474
        %v1476 = vpop.f32.mrb[0].mxu0
        %1477 = vmatprep.mubr.bf16.mxu0 %v598
        %1478 = vmatmul.mubr.bf16.gmra.mrb[0].mxu0 %v597
        %v1479 = vpop.f32.mrb[0].mxu0
        %v1480 = vadd.f32 %v1175, %v1479
        %v1481 = vpop.f32.mrb[0].mxu0
        %v1482 = vpop.f32.mrb[0].mxu0
        %v1483 = vadd.f32 %v1178, %v1482
        %v1484 = vpop.f32.mrb[0].mxu0
        %1485 = vmatprep.mubr.bf16.mxu0 %v601
        %1486 = vmatmul.mubr.bf16.gmra.mrb[0].mxu0 %v600
        %v1487 = vpop.f32.mrb[0].mxu0
        %v1488 = vadd.f32 %v1183, %v1487
        %v1489 = vpop.f32.mrb[0].mxu0
        %v1490 = vpop.f32.mrb[0].mxu0
        %v1491 = vadd.f32 %v1186, %v1490
        %v1492 = vpop.f32.mrb[0].mxu0
        %1493 = vmatprep.mubr.bf16.mxu0 %v604
        %1494 = vmatmul.mubr.bf16.gmra.mrb[0].mxu0 %v603
        %v1495 = vpop.f32.mrb[0].mxu0
        %v1496 = vadd.f32 %v1191, %v1495
        %v1497 = vpop.f32.mrb[0].mxu0
        %v1498 = vpop.f32.mrb[0].mxu0
        %v1499 = vadd.f32 %v1194, %v1498
        %v1500 = vpop.f32.mrb[0].mxu0
        %1501 = vmatprep.mubr.bf16.mxu0 %v607
        %1502 = vmatmul.mubr.bf16.gmra.mrb[0].mxu0 %v606
        %v1503 = vpop.f32.mrb[0].mxu0
        %v1504 = vadd.f32 %v1199, %v1503
        %v1505 = vpop.f32.mrb[0].mxu0
        %v1506 = vpop.f32.mrb[0].mxu0
        %v1507 = vadd.f32 %v1202, %v1506
        %v1508 = vpop.f32.mrb[0].mxu0
        %1509 = vmatprep.mubr.bf16.mxu0 %v610
        %1510 = vmatmul.mubr.bf16.gmra.mrb[0].mxu0 %v609
        %v1511 = vpop.f32.mrb[0].mxu0
        %v1512 = vadd.f32 %v1207, %v1511
        %v1513 = vpop.f32.mrb[0].mxu0
        %v1514 = vpop.f32.mrb[0].mxu0
        %v1515 = vadd.f32 %v1210, %v1514
        %v1516 = vpop.f32.mrb[0].mxu0
        %1517 = vmatprep.mubr.bf16.mxu0 %v613
        %1518 = vmatmul.mubr.bf16.gmra.mrb[0].mxu0 %v612
        %v1519 = vpop.f32.mrb[0].mxu0
        %v1520 = vadd.f32 %v1215, %v1519
        %v1521 = vpop.f32.mrb[0].mxu0
        %v1522 = vpop.f32.mrb[0].mxu0
        %v1523 = vadd.f32 %v1218, %v1522
        %v1524 = vpop.f32.mrb[0].mxu0
        %1525 = vmatprep.mubr.bf16.mxu0 %v616
        %1526 = vmatmul.mubr.bf16.gmra.mrb[0].mxu0 %v615
        %v1527 = vpop.f32.mrb[0].mxu0
        %v1528 = vadd.f32 %v1223, %v1527
        %v1529 = vpop.f32.mrb[0].mxu0
        %v1530 = vpop.f32.mrb[0].mxu0
        %v1531 = vadd.f32 %v1226, %v1530
        %v1532 = vpop.f32.mrb[0].mxu0
        %1533 = vdwg.mxu0
        %1534 = vmatprep.subr.bf16.mxu0 0
        %1535 = vmatpush1.bf16.msra.mxu0 %v1341
        %1536 = vmatprep.subr.bf16.mxu0 0
        %1537 = vmatpush1.bf16.msra.mxu0 %v1342
        %1538 = vmatprep.subr.bf16.mxu0 0
        %1539 = vmatpush1.bf16.msra.mxu0 %v1343
        %1540 = vmatprep.subr.bf16.mxu0 0
        %1541 = vmatpush1.bf16.msra.mxu0 %v1344
        %1542 = vmatprep.subr.bf16.mxu0 0
        %1543 = vmatpush1.bf16.msra.mxu0 %v1345
        %1544 = vmatprep.subr.bf16.mxu0 0
        %1545 = vmatpush1.bf16.msra.mxu0 %v1346
        %1546 = vmatprep.subr.bf16.mxu0 0
        %1547 = vmatpush1.bf16.msra.mxu0 %v1347
        %1548 = vmatprep.subr.bf16.mxu0 0
        %1549 = vmatpush1.bf16.msra.mxu0 %v1348
        %1550 = vmatprep.subr.bf16.mxu0 0
        %1551 = vmatpush1.bf16.msra.mxu0 0
        %1552 = vmatprep.subr.bf16.mxu0 0
        %1553 = vmatpush1.bf16.msra.mxu0 0
        %1554 = vmatprep.subr.bf16.mxu0 0
        %1555 = vmatpush1.bf16.msra.mxu0 0
        %1556 = vmatprep.subr.bf16.mxu0 0
        %1557 = vmatpush1.bf16.msra.mxu0 0
        %1558 = vmatprep.subr.bf16.mxu0 0
        %1559 = vmatpush1.bf16.msra.mxu0 0
        %1560 = vmatprep.subr.bf16.mxu0 0
        %1561 = vmatpush1.bf16.msra.mxu0 0
        %1562 = vmatprep.subr.bf16.mxu0 0
        %1563 = vmatpush1.bf16.msra.mxu0 0
        %1564 = vmatprep.subr.bf16.mxu0 0
        %1565 = vmatpush1.bf16.msra.mxu0 0
        %1566 = vmatprep.mubr.bf16.mxu0 0
        %1567 = vmatmul.mubr.bf16.gmra.mrb[0].mxu0 %v572
        %v1568 = vpop.f32.mrb[0].mxu0
        %v1569 = vadd.f32 %v1408, %v1568
        %v1570 = vpop.f32.mrb[0].mxu0
        %v1571 = vpop.f32.mrb[0].mxu0
        %v1572 = vadd.f32 %v1411, %v1571
        %v1573 = vpop.f32.mrb[0].mxu0
        %1574 = vmatprep.mubr.bf16.mxu0 0
        %1575 = vmatmul.mubr.bf16.gmra.mrb[0].mxu0 %v575
        %v1576 = vpop.f32.mrb[0].mxu0
        %v1577 = vadd.f32 %v1416, %v1576
        %v1578 = vpop.f32.mrb[0].mxu0
        %v1579 = vpop.f32.mrb[0].mxu0
        %v1580 = vadd.f32 %v1419, %v1579
        %v1581 = vpop.f32.mrb[0].mxu0
        %1582 = vmatprep.mubr.bf16.mxu0 0
        %1583 = vmatmul.mubr.bf16.gmra.mrb[0].mxu0 %v578
        %v1584 = vpop.f32.mrb[0].mxu0
        %v1585 = vadd.f32 %v1424, %v1584
        %v1586 = vpop.f32.mrb[0].mxu0
        %v1587 = vpop.f32.mrb[0].mxu0
        %v1588 = vadd.f32 %v1427, %v1587
        %v1589 = vpop.f32.mrb[0].mxu0
        %1590 = vmatprep.mubr.bf16.mxu0 0
        %1591 = vmatmul.mubr.bf16.gmra.mrb[0].mxu0 %v581
        %v1592 = vpop.f32.mrb[0].mxu0
        %v1593 = vadd.f32 %v1432, %v1592
        %v1594 = vpop.f32.mrb[0].mxu0
        %v1595 = vpop.f32.mrb[0].mxu0
        %v1596 = vadd.f32 %v1435, %v1595
        %v1597 = vpop.f32.mrb[0].mxu0
        %1598 = vmatprep.mubr.bf16.mxu0 0
        %1599 = vmatmul.mubr.bf16.gmra.mrb[0].mxu0 %v584
        %v1600 = vpop.f32.mrb[0].mxu0
        %v1601 = vadd.f32 %v1440, %v1600
        %v1602 = vpop.f32.mrb[0].mxu0
        %v1603 = vpop.f32.mrb[0].mxu0
        %v1604 = vadd.f32 %v1443, %v1603
        %v1605 = vpop.f32.mrb[0].mxu0
        %1606 = vmatprep.mubr.bf16.mxu0 0
        %1607 = vmatmul.mubr.bf16.gmra.mrb[0].mxu0 %v587
        %v1608 = vpop.f32.mrb[0].mxu0
        %v1609 = vadd.f32 %v1448, %v1608
        %v1610 = vpop.f32.mrb[0].mxu0
        %v1611 = vpop.f32.mrb[0].mxu0
        %v1612 = vadd.f32 %v1451, %v1611
        %v1613 = vpop.f32.mrb[0].mxu0
        %1614 = vmatprep.mubr.bf16.mxu0 0
        %1615 = vmatmul.mubr.bf16.gmra.mrb[0].mxu0 %v590
        %v1616 = vpop.f32.mrb[0].mxu0
        %v1617 = vadd.f32 %v1456, %v1616
        %v1618 = vpop.f32.mrb[0].mxu0
        %v1619 = vpop.f32.mrb[0].mxu0
        %v1620 = vadd.f32 %v1459, %v1619
        %v1621 = vpop.f32.mrb[0].mxu0
        %1622 = vmatprep.mubr.bf16.mxu0 0
        %1623 = vmatmul.mubr.bf16.gmra.mrb[0].mxu0 %v593
        %v1624 = vpop.f32.mrb[0].mxu0
        %v1625 = vadd.f32 %v1464, %v1624
        %v1626 = vpop.f32.mrb[0].mxu0
        %v1627 = vpop.f32.mrb[0].mxu0
        %v1628 = vadd.f32 %v1467, %v1627
        %v1629 = vpop.f32.mrb[0].mxu0
        %1630 = vmatprep.mubr.bf16.mxu0 0
        %1631 = vmatmul.mubr.bf16.gmra.mrb[0].mxu0 %v596
        %v1632 = vpop.f32.mrb[0].mxu0
        %v1633 = vadd.f32 %v1472, %v1632
        %v1634 = vpop.f32.mrb[0].mxu0
        %v1635 = vpop.f32.mrb[0].mxu0
        %v1636 = vadd.f32 %v1475, %v1635
        %v1637 = vpop.f32.mrb[0].mxu0
        %1638 = vmatprep.mubr.bf16.mxu0 0
        %1639 = vmatmul.mubr.bf16.gmra.mrb[0].mxu0 %v599
        %v1640 = vpop.f32.mrb[0].mxu0
        %v1641 = vadd.f32 %v1480, %v1640
        %v1642 = vpop.f32.mrb[0].mxu0
        %v1643 = vpop.f32.mrb[0].mxu0
        %v1644 = vadd.f32 %v1483, %v1643
        %v1645 = vpop.f32.mrb[0].mxu0
        %1646 = vmatprep.mubr.bf16.mxu0 0
        %1647 = vmatmul.mubr.bf16.gmra.mrb[0].mxu0 %v602
        %v1648 = vpop.f32.mrb[0].mxu0
        %v1649 = vadd.f32 %v1488, %v1648
        %v1650 = vpop.f32.mrb[0].mxu0
        %v1651 = vpop.f32.mrb[0].mxu0
        %v1652 = vadd.f32 %v1491, %v1651
        %v1653 = vpop.f32.mrb[0].mxu0
        %1654 = vmatprep.mubr.bf16.mxu0 0
        %1655 = vmatmul.mubr.bf16.gmra.mrb[0].mxu0 %v605
        %v1656 = vpop.f32.mrb[0].mxu0
        %v1657 = vadd.f32 %v1496, %v1656
        %v1658 = vpop.f32.mrb[0].mxu0
        %v1659 = vpop.f32.mrb[0].mxu0
        %v1660 = vadd.f32 %v1499, %v1659
        %v1661 = vpop.f32.mrb[0].mxu0
        %1662 = vmatprep.mubr.bf16.mxu0 0
        %1663 = vmatmul.mubr.bf16.gmra.mrb[0].mxu0 %v608
        %v1664 = vpop.f32.mrb[0].mxu0
        %v1665 = vadd.f32 %v1504, %v1664
        %v1666 = vpop.f32.mrb[0].mxu0
        %v1667 = vpop.f32.mrb[0].mxu0
        %v1668 = vadd.f32 %v1507, %v1667
        %v1669 = vpop.f32.mrb[0].mxu0
        %1670 = vmatprep.mubr.bf16.mxu0 0
        %1671 = vmatmul.mubr.bf16.gmra.mrb[0].mxu0 %v611
        %v1672 = vpop.f32.mrb[0].mxu0
        %v1673 = vadd.f32 %v1512, %v1672
        %v1674 = vpop.f32.mrb[0].mxu0
        %v1675 = vpop.f32.mrb[0].mxu0
        %v1676 = vadd.f32 %v1515, %v1675
        %v1677 = vpop.f32.mrb[0].mxu0
        %1678 = vmatprep.mubr.bf16.mxu0 0
        %1679 = vmatmul.mubr.bf16.gmra.mrb[0].mxu0 %v614
        %v1680 = vpop.f32.mrb[0].mxu0
        %v1681 = vadd.f32 %v1520, %v1680
        %v1682 = vpop.f32.mrb[0].mxu0
        %v1683 = vpop.f32.mrb[0].mxu0
        %v1684 = vadd.f32 %v1523, %v1683
        %v1685 = vpop.f32.mrb[0].mxu0
        %1686 = vmatprep.mubr.bf16.mxu0 0
        %1687 = vmatmul.mubr.bf16.gmra.mrb[0].mxu0 %v617
        %v1688 = vpop.f32.mrb[0].mxu0
        %v1689 = vadd.f32 %v1528, %v1688
        %v1690 = vpop.f32.mrb[0].mxu0
        %v1691 = vpop.f32.mrb[0].mxu0
        %v1692 = vadd.f32 %v1531, %v1691
        %v1693 = vpop.f32.mrb[0].mxu0
        %1694 = vdwg.mxu0
        %s1695 = scalar_lea.vmem [#allocation2], 96
        %v1696 = vld [vmem:[%s1695] sm:$0xff]
        %v1697 = vld [vmem:[%s1695 + $0x8] sm:$0xff]
        %v1698 = vld [vmem:[%s1695 + $0x10] sm:$0xff]
        %v1699 = vld [vmem:[%s1695 + $0x18] sm:$0xff]
        %v1700 = vld [vmem:[%s1695 + $0x20] sm:$0xff]
        %v1701 = vld [vmem:[%s1695 + $0x28] sm:$0xff]
        %v1702 = vld [vmem:[%s1695 + $0x30] sm:$0xff]
        %v1703 = vld [vmem:[%s1695 + $0x38] sm:$0xff]
        %v1704 = vld [vmem:[%s1695 + $0x40] sm:$0xff]
        %v1705 = vld [vmem:[%s1695 + $0x48] sm:$0xff]
        %v1706 = vld [vmem:[%s1695 + $0x50] sm:$0xff]
        %v1707 = vld [vmem:[%s1695 + $0x58] sm:$0xff]
        %v1708 = vld [vmem:[%s1695 + $0x60] sm:$0xff]
        %v1709 = vld [vmem:[%s1695 + $0x68] sm:$0xff]
        %v1710 = vld [vmem:[%s1695 + $0x70] sm:$0xff]
        %v1711 = vld [vmem:[%s1695 + $0x78] sm:$0xff]
        %v1712 = vld [vmem:[%s1695 + $0x80] sm:$0xff]
        %v1713 = vld [vmem:[%s1695 + $0x88] sm:$0xff]
        %v1714 = vld [vmem:[%s1695 + $0x90] sm:$0xff]
        %v1715 = vld [vmem:[%s1695 + $0x98] sm:$0xff]
        %v1716 = vld [vmem:[%s1695 + $0xa0] sm:$0xff]
        %v1717 = vld [vmem:[%s1695 + $0xa8] sm:$0xff]
        %v1718 = vld [vmem:[%s1695 + $0xb0] sm:$0xff]
        %v1719 = vld [vmem:[%s1695 + $0xb8] sm:$0xff]
        %v1720 = vld [vmem:[%s1695 + $0xc0] sm:$0xff]
        %v1721 = vld [vmem:[%s1695 + $0xc8] sm:$0xff]
        %v1722 = vld [vmem:[%s1695 + $0xd0] sm:$0xff]
        %v1723 = vld [vmem:[%s1695 + $0xd8] sm:$0xff]
        %v1724 = vld [vmem:[%s1695 + $0xe0] sm:$0xff]
        %v1725 = vld [vmem:[%s1695 + $0xe8] sm:$0xff]
        %v1726 = vld [vmem:[%s1695 + $0xf0] sm:$0xff]
        %v1727 = vld [vmem:[%s1695 + $0xf8] sm:$0xff]
        %v1728 = vld [vmem:[%s1695 + $0x100] sm:$0xff]
        %v1729 = vld [vmem:[%s1695 + $0x108] sm:$0xff]
        %v1730 = vld [vmem:[%s1695 + $0x110] sm:$0xff]
        %v1731 = vld [vmem:[%s1695 + $0x118] sm:$0xff]
        %v1732 = vld [vmem:[%s1695 + $0x120] sm:$0xff]
        %v1733 = vld [vmem:[%s1695 + $0x128] sm:$0xff]
        %v1734 = vld [vmem:[%s1695 + $0x130] sm:$0xff]
        %v1735 = vld [vmem:[%s1695 + $0x138] sm:$0xff]
        %v1736 = vld [vmem:[%s1695 + $0x140] sm:$0xff]
        %v1737 = vld [vmem:[%s1695 + $0x148] sm:$0xff]
        %v1738 = vld [vmem:[%s1695 + $0x150] sm:$0xff]
        %v1739 = vld [vmem:[%s1695 + $0x158] sm:$0xff]
        %v1740 = vld [vmem:[%s1695 + $0x160] sm:$0xff]
        %v1741 = vld [vmem:[%s1695 + $0x168] sm:$0xff]
        %v1742 = vld [vmem:[%s1695 + $0x170] sm:$0xff]
        %v1743 = vld [vmem:[%s1695 + $0x178] sm:$0xff]
        %s1744 = scalar_lea.vmem [#allocation6], 384
        %v1745 = vld [vmem:[%s1744] sm:$0xf]
        %v1746 = vld [vmem:[%s1744 + $0x4] sm:$0xf]
        %v1747 = vld [vmem:[%s1744 + $0x8] sm:$0xf]
        %v1748 = vld [vmem:[%s1744 + $0xc] sm:$0xf]
        %v1749 = vld [vmem:[%s1744 + $0x10] sm:$0xf]
        %v1750 = vld [vmem:[%s1744 + $0x14] sm:$0xf]
        %v1751 = vld [vmem:[%s1744 + $0x18] sm:$0xf]
        %v1752 = vld [vmem:[%s1744 + $0x1c] sm:$0xf]
        %v1753 = vld [vmem:[%s1744 + $0x20] sm:$0xf]
        %v1754 = vld [vmem:[%s1744 + $0x24] sm:$0xf]
        %v1755 = vld [vmem:[%s1744 + $0x28] sm:$0xf]
        %v1756 = vld [vmem:[%s1744 + $0x2c] sm:$0xf]
        %v1757 = vld [vmem:[%s1744 + $0x30] sm:$0xf]
        %v1758 = vld [vmem:[%s1744 + $0x34] sm:$0xf]
        %v1759 = vld [vmem:[%s1744 + $0x38] sm:$0xf]
        %v1760 = vld [vmem:[%s1744 + $0x3c] sm:$0xf]
        %v1761 = vld [vmem:[%s1744 + $0x40] sm:$0xf]
        %v1762 = vld [vmem:[%s1744 + $0x44] sm:$0xf]
        %v1763 = vld [vmem:[%s1744 + $0x48] sm:$0xf]
        %v1764 = vld [vmem:[%s1744 + $0x4c] sm:$0xf]
        %v1765 = vld [vmem:[%s1744 + $0x50] sm:$0xf]
        %v1766 = vld [vmem:[%s1744 + $0x54] sm:$0xf]
        %v1767 = vld [vmem:[%s1744 + $0x58] sm:$0xf]
        %v1768 = vld [vmem:[%s1744 + $0x5c] sm:$0xf]
        %v1769 = vld [vmem:[%s1744 + $0x60] sm:$0xf]
        %v1770 = vld [vmem:[%s1744 + $0x64] sm:$0xf]
        %v1771 = vld [vmem:[%s1744 + $0x68] sm:$0xf]
        %v1772 = vld [vmem:[%s1744 + $0x6c] sm:$0xf]
        %v1773 = vld [vmem:[%s1744 + $0x70] sm:$0xf]
        %v1774 = vld [vmem:[%s1744 + $0x74] sm:$0xf]
        %v1775 = vld [vmem:[%s1744 + $0x78] sm:$0xf]
        %v1776 = vld [vmem:[%s1744 + $0x7c] sm:$0xf]
        %v1777 = vld [vmem:[%s1744 + $0x80] sm:$0xf]
        %v1778 = vld [vmem:[%s1744 + $0x84] sm:$0xf]
        %v1779 = vld [vmem:[%s1744 + $0x88] sm:$0xf]
        %v1780 = vld [vmem:[%s1744 + $0x8c] sm:$0xf]
        %v1781 = vld [vmem:[%s1744 + $0x90] sm:$0xf]
        %v1782 = vld [vmem:[%s1744 + $0x94] sm:$0xf]
        %v1783 = vld [vmem:[%s1744 + $0x98] sm:$0xf]
        %v1784 = vld [vmem:[%s1744 + $0x9c] sm:$0xf]
        %v1785 = vld [vmem:[%s1744 + $0xa0] sm:$0xf]
        %v1786 = vld [vmem:[%s1744 + $0xa4] sm:$0xf]
        %v1787 = vld [vmem:[%s1744 + $0xa8] sm:$0xf]
        %v1788 = vld [vmem:[%s1744 + $0xac] sm:$0xf]
        %v1789 = vld [vmem:[%s1744 + $0xb0] sm:$0xf]
        %v1790 = vld [vmem:[%s1744 + $0xb4] sm:$0xf]
        %v1791 = vld [vmem:[%s1744 + $0xb8] sm:$0xf]
        %v1792 = vld [vmem:[%s1744 + $0xbc] sm:$0xf]
        %v1841 = vunpack.c.l.b16 %v1745
        %v1842 = vunpack.c.l.b16 %v1746
        %v1843 = vunpack.c.l.b16 %v1747
        %v1844 = vunpack.c.l.b16 %v1748
        %v1845 = vunpack.c.l.b16 %v1749
        %v1846 = vunpack.c.l.b16 %v1750
        %v1847 = vunpack.c.l.b16 %v1751
        %v1848 = vunpack.c.l.b16 %v1752
        %v1849 = vunpack.c.l.b16 %v1753
        %v1850 = vunpack.c.l.b16 %v1754
        %v1851 = vunpack.c.l.b16 %v1755
        %v1852 = vunpack.c.l.b16 %v1756
        %v1853 = vunpack.c.l.b16 %v1757
        %v1854 = vunpack.c.l.b16 %v1758
        %v1855 = vunpack.c.l.b16 %v1759
        %v1856 = vunpack.c.l.b16 %v1760
        %v1857 = vunpack.c.l.b16 %v1761
        %v1858 = vunpack.c.l.b16 %v1762
        %v1859 = vunpack.c.l.b16 %v1763
        %v1860 = vunpack.c.l.b16 %v1764
        %v1861 = vunpack.c.l.b16 %v1765
        %v1862 = vunpack.c.l.b16 %v1766
        %v1863 = vunpack.c.l.b16 %v1767
        %v1864 = vunpack.c.l.b16 %v1768
        %v1865 = vunpack.c.l.b16 %v1769
        %v1866 = vunpack.c.l.b16 %v1770
        %v1867 = vunpack.c.l.b16 %v1771
        %v1868 = vunpack.c.l.b16 %v1772
        %v1869 = vunpack.c.l.b16 %v1773
        %v1870 = vunpack.c.l.b16 %v1774
        %v1871 = vunpack.c.l.b16 %v1775
        %v1872 = vunpack.c.l.b16 %v1776
        %v1873 = vunpack.c.l.b16 %v1777
        %v1874 = vunpack.c.l.b16 %v1778
        %v1875 = vunpack.c.l.b16 %v1779
        %v1876 = vunpack.c.l.b16 %v1780
        %v1877 = vunpack.c.l.b16 %v1781
        %v1878 = vunpack.c.l.b16 %v1782
        %v1879 = vunpack.c.l.b16 %v1783
        %v1880 = vunpack.c.l.b16 %v1784
        %v1881 = vunpack.c.l.b16 %v1785
        %v1882 = vunpack.c.l.b16 %v1786
        %v1883 = vunpack.c.l.b16 %v1787
        %v1884 = vunpack.c.l.b16 %v1788
        %v1885 = vunpack.c.l.b16 %v1789
        %v1886 = vunpack.c.l.b16 %v1790
        %v1887 = vunpack.c.l.b16 %v1791
        %v1888 = vunpack.c.l.b16 %v1792
        %v1889 = vpack.c.b16 %v1842, %v1841
        %v1890 = vpack.c.b16 %v1844, %v1843
        %v1891 = vpack.c.b16 %v1846, %v1845
        %v1892 = vpack.c.b16 %v1848, %v1847
        %v1893 = vpack.c.b16 %v1850, %v1849
        %v1894 = vpack.c.b16 %v1852, %v1851
        %v1895 = vpack.c.b16 %v1854, %v1853
        %v1896 = vpack.c.b16 %v1856, %v1855
        %v1897 = vpack.c.b16 %v1858, %v1857
        %v1898 = vpack.c.b16 %v1860, %v1859
        %v1899 = vpack.c.b16 %v1862, %v1861
        %v1900 = vpack.c.b16 %v1864, %v1863
        %v1901 = vpack.c.b16 %v1866, %v1865
        %v1902 = vpack.c.b16 %v1868, %v1867
        %v1903 = vpack.c.b16 %v1870, %v1869
        %v1904 = vpack.c.b16 %v1872, %v1871
        %v1905 = vpack.c.b16 %v1874, %v1873
        %v1906 = vpack.c.b16 %v1876, %v1875
        %v1907 = vpack.c.b16 %v1878, %v1877
        %v1908 = vpack.c.b16 %v1880, %v1879
        %v1909 = vpack.c.b16 %v1882, %v1881
        %v1910 = vpack.c.b16 %v1884, %v1883
        %v1911 = vpack.c.b16 %v1886, %v1885
        %v1912 = vpack.c.b16 %v1888, %v1887
        %1937 = vmatprep.subr.bf16.mxu0 0
        %1938 = vmatpush1.bf16.msra.mxu0 %v1889
        %1939 = vmatprep.subr.bf16.mxu0 0
        %1940 = vmatpush1.bf16.msra.mxu0 %v1890
        %1941 = vmatprep.subr.bf16.mxu0 0
        %1942 = vmatpush1.bf16.msra.mxu0 %v1891
        %1943 = vmatprep.subr.bf16.mxu0 0
        %1944 = vmatpush1.bf16.msra.mxu0 %v1892
        %1945 = vmatprep.subr.bf16.mxu0 0
        %1946 = vmatpush1.bf16.msra.mxu0 %v1893
        %1947 = vmatprep.subr.bf16.mxu0 0
        %1948 = vmatpush1.bf16.msra.mxu0 %v1894
        %1949 = vmatprep.subr.bf16.mxu0 0
        %1950 = vmatpush1.bf16.msra.mxu0 %v1895
        %1951 = vmatprep.subr.bf16.mxu0 0
        %1952 = vmatpush1.bf16.msra.mxu0 %v1896
        %1953 = vmatprep.subr.bf16.mxu0 0
        %1954 = vmatpush1.bf16.msra.mxu0 %v1897
        %1955 = vmatprep.subr.bf16.mxu0 0
        %1956 = vmatpush1.bf16.msra.mxu0 %v1898
        %1957 = vmatprep.subr.bf16.mxu0 0
        %1958 = vmatpush1.bf16.msra.mxu0 %v1899
        %1959 = vmatprep.subr.bf16.mxu0 0
        %1960 = vmatpush1.bf16.msra.mxu0 %v1900
        %1961 = vmatprep.subr.bf16.mxu0 0
        %1962 = vmatpush1.bf16.msra.mxu0 %v1901
        %1963 = vmatprep.subr.bf16.mxu0 0
        %1964 = vmatpush1.bf16.msra.mxu0 %v1902
        %1965 = vmatprep.subr.bf16.mxu0 0
        %1966 = vmatpush1.bf16.msra.mxu0 %v1903
        %1967 = vmatprep.subr.bf16.mxu0 0
        %1968 = vmatpush1.bf16.msra.mxu0 %v1904
        %1969 = vmatprep.mubr.bf16.mxu0 %v1697
        %1970 = vmatmul.mubr.bf16.gmra.mrb[0].mxu0 %v1696
        %v1971 = vpop.f32.mrb[0].mxu0
        %v1972 = vadd.f32 0.0, %v1971
        %v1973 = vpop.f32.mrb[0].mxu0
        %v1974 = vpop.f32.mrb[0].mxu0
        %v1975 = vadd.f32 0.0, %v1974
        %v1976 = vpop.f32.mrb[0].mxu0
        %1977 = vmatprep.mubr.bf16.mxu0 %v1700
        %1978 = vmatmul.mubr.bf16.gmra.mrb[0].mxu0 %v1699
        %v1979 = vpop.f32.mrb[0].mxu0
        %v1980 = vadd.f32 0.0, %v1979
        %v1981 = vpop.f32.mrb[0].mxu0
        %v1982 = vpop.f32.mrb[0].mxu0
        %v1983 = vadd.f32 0.0, %v1982
        %v1984 = vpop.f32.mrb[0].mxu0
        %1985 = vmatprep.mubr.bf16.mxu0 %v1703
        %1986 = vmatmul.mubr.bf16.gmra.mrb[0].mxu0 %v1702
        %v1987 = vpop.f32.mrb[0].mxu0
        %v1988 = vadd.f32 0.0, %v1987
        %v1989 = vpop.f32.mrb[0].mxu0
        %v1990 = vpop.f32.mrb[0].mxu0
        %v1991 = vadd.f32 0.0, %v1990
        %v1992 = vpop.f32.mrb[0].mxu0
        %1993 = vmatprep.mubr.bf16.mxu0 %v1706
        %1994 = vmatmul.mubr.bf16.gmra.mrb[0].mxu0 %v1705
        %v1995 = vpop.f32.mrb[0].mxu0
        %v1996 = vadd.f32 0.0, %v1995
        %v1997 = vpop.f32.mrb[0].mxu0
        %v1998 = vpop.f32.mrb[0].mxu0
        %v1999 = vadd.f32 0.0, %v1998
        %v2000 = vpop.f32.mrb[0].mxu0
        %2001 = vmatprep.mubr.bf16.mxu0 %v1709
        %2002 = vmatmul.mubr.bf16.gmra.mrb[0].mxu0 %v1708
        %v2003 = vpop.f32.mrb[0].mxu0
        %v2004 = vadd.f32 0.0, %v2003
        %v2005 = vpop.f32.mrb[0].mxu0
        %v2006 = vpop.f32.mrb[0].mxu0
        %v2007 = vadd.f32 0.0, %v2006
        %v2008 = vpop.f32.mrb[0].mxu0
        %2009 = vmatprep.mubr.bf16.mxu0 %v1712
        %2010 = vmatmul.mubr.bf16.gmra.mrb[0].mxu0 %v1711
        %v2011 = vpop.f32.mrb[0].mxu0
        %v2012 = vadd.f32 0.0, %v2011
        %v2013 = vpop.f32.mrb[0].mxu0
        %v2014 = vpop.f32.mrb[0].mxu0
        %v2015 = vadd.f32 0.0, %v2014
        %v2016 = vpop.f32.mrb[0].mxu0
        %2017 = vmatprep.mubr.bf16.mxu0 %v1715
        %2018 = vmatmul.mubr.bf16.gmra.mrb[0].mxu0 %v1714
        %v2019 = vpop.f32.mrb[0].mxu0
        %v2020 = vadd.f32 0.0, %v2019
        %v2021 = vpop.f32.mrb[0].mxu0
        %v2022 = vpop.f32.mrb[0].mxu0
        %v2023 = vadd.f32 0.0, %v2022
        %v2024 = vpop.f32.mrb[0].mxu0
        %2025 = vmatprep.mubr.bf16.mxu0 %v1718
        %2026 = vmatmul.mubr.bf16.gmra.mrb[0].mxu0 %v1717
        %v2027 = vpop.f32.mrb[0].mxu0
        %v2028 = vadd.f32 0.0, %v2027
        %v2029 = vpop.f32.mrb[0].mxu0
        %v2030 = vpop.f32.mrb[0].mxu0
        %v2031 = vadd.f32 0.0, %v2030
        %v2032 = vpop.f32.mrb[0].mxu0
        %2033 = vmatprep.mubr.bf16.mxu0 %v1721
        %2034 = vmatmul.mubr.bf16.gmra.mrb[0].mxu0 %v1720
        %v2035 = vpop.f32.mrb[0].mxu0
        %v2036 = vadd.f32 0.0, %v2035
        %v2037 = vpop.f32.mrb[0].mxu0
        %v2038 = vpop.f32.mrb[0].mxu0
        %v2039 = vadd.f32 0.0, %v2038
        %v2040 = vpop.f32.mrb[0].mxu0
        %2041 = vmatprep.mubr.bf16.mxu0 %v1724
        %2042 = vmatmul.mubr.bf16.gmra.mrb[0].mxu0 %v1723
        %v2043 = vpop.f32.mrb[0].mxu0
        %v2044 = vadd.f32 0.0, %v2043
        %v2045 = vpop.f32.mrb[0].mxu0
        %v2046 = vpop.f32.mrb[0].mxu0
        %v2047 = vadd.f32 0.0, %v2046
        %v2048 = vpop.f32.mrb[0].mxu0
        %2049 = vmatprep.mubr.bf16.mxu0 %v1727
        %2050 = vmatmul.mubr.bf16.gmra.mrb[0].mxu0 %v1726
        %v2051 = vpop.f32.mrb[0].mxu0
        %v2052 = vadd.f32 0.0, %v2051
        %v2053 = vpop.f32.mrb[0].mxu0
        %v2054 = vpop.f32.mrb[0].mxu0
        %v2055 = vadd.f32 0.0, %v2054
        %v2056 = vpop.f32.mrb[0].mxu0
        %2057 = vmatprep.mubr.bf16.mxu0 %v1730
        %2058 = vmatmul.mubr.bf16.gmra.mrb[0].mxu0 %v1729
        %v2059 = vpop.f32.mrb[0].mxu0
        %v2060 = vadd.f32 0.0, %v2059
        %v2061 = vpop.f32.mrb[0].mxu0
        %v2062 = vpop.f32.mrb[0].mxu0
        %v2063 = vadd.f32 0.0, %v2062
        %v2064 = vpop.f32.mrb[0].mxu0
        %2065 = vmatprep.mubr.bf16.mxu0 %v1733
        %2066 = vmatmul.mubr.bf16.gmra.mrb[0].mxu0 %v1732
        %v2067 = vpop.f32.mrb[0].mxu0
        %v2068 = vadd.f32 0.0, %v2067
        %v2069 = vpop.f32.mrb[0].mxu0
        %v2070 = vpop.f32.mrb[0].mxu0
        %v2071 = vadd.f32 0.0, %v2070
        %v2072 = vpop.f32.mrb[0].mxu0
        %2073 = vmatprep.mubr.bf16.mxu0 %v1736
        %2074 = vmatmul.mubr.bf16.gmra.mrb[0].mxu0 %v1735
        %v2075 = vpop.f32.mrb[0].mxu0
        %v2076 = vadd.f32 0.0, %v2075
        %v2077 = vpop.f32.mrb[0].mxu0
        %v2078 = vpop.f32.mrb[0].mxu0
        %v2079 = vadd.f32 0.0, %v2078
        %v2080 = vpop.f32.mrb[0].mxu0
        %2081 = vmatprep.mubr.bf16.mxu0 %v1739
        %2082 = vmatmul.mubr.bf16.gmra.mrb[0].mxu0 %v1738
        %v2083 = vpop.f32.mrb[0].mxu0
        %v2084 = vadd.f32 0.0, %v2083
        %v2085 = vpop.f32.mrb[0].mxu0
        %v2086 = vpop.f32.mrb[0].mxu0
        %v2087 = vadd.f32 0.0, %v2086
        %v2088 = vpop.f32.mrb[0].mxu0
        %2089 = vmatprep.mubr.bf16.mxu0 %v1742
        %2090 = vmatmul.mubr.bf16.gmra.mrb[0].mxu0 %v1741
        %v2091 = vpop.f32.mrb[0].mxu0
        %v2092 = vadd.f32 0.0, %v2091
        %v2093 = vpop.f32.mrb[0].mxu0
        %v2094 = vpop.f32.mrb[0].mxu0
        %v2095 = vadd.f32 0.0, %v2094
        %v2096 = vpop.f32.mrb[0].mxu0
        %2097 = vdwg.mxu0
        %2098 = vmatprep.subr.bf16.mxu0 0
        %2099 = vmatpush1.bf16.msra.mxu0 %v1905
        %2100 = vmatprep.subr.bf16.mxu0 0
        %2101 = vmatpush1.bf16.msra.mxu0 %v1906
        %2102 = vmatprep.subr.bf16.mxu0 0
        %2103 = vmatpush1.bf16.msra.mxu0 %v1907
        %2104 = vmatprep.subr.bf16.mxu0 0
        %2105 = vmatpush1.bf16.msra.mxu0 %v1908
        %2106 = vmatprep.subr.bf16.mxu0 0
        %2107 = vmatpush1.bf16.msra.mxu0 %v1909
        %2108 = vmatprep.subr.bf16.mxu0 0
        %2109 = vmatpush1.bf16.msra.mxu0 %v1910
        %2110 = vmatprep.subr.bf16.mxu0 0
        %2111 = vmatpush1.bf16.msra.mxu0 %v1911
        %2112 = vmatprep.subr.bf16.mxu0 0
        %2113 = vmatpush1.bf16.msra.mxu0 %v1912
        %2114 = vmatprep.subr.bf16.mxu0 0
        %2115 = vmatpush1.bf16.msra.mxu0 0
        %2116 = vmatprep.subr.bf16.mxu0 0
        %2117 = vmatpush1.bf16.msra.mxu0 0
        %2118 = vmatprep.subr.bf16.mxu0 0
        %2119 = vmatpush1.bf16.msra.mxu0 0
        %2120 = vmatprep.subr.bf16.mxu0 0
        %2121 = vmatpush1.bf16.msra.mxu0 0
        %2122 = vmatprep.subr.bf16.mxu0 0
        %2123 = vmatpush1.bf16.msra.mxu0 0
        %2124 = vmatprep.subr.bf16.mxu0 0
        %2125 = vmatpush1.bf16.msra.mxu0 0
        %2126 = vmatprep.subr.bf16.mxu0 0
        %2127 = vmatpush1.bf16.msra.mxu0 0
        %2128 = vmatprep.subr.bf16.mxu0 0
        %2129 = vmatpush1.bf16.msra.mxu0 0
        %2130 = vmatprep.mubr.bf16.mxu0 0
        %2131 = vmatmul.mubr.bf16.gmra.mrb[0].mxu0 %v1698
        %v2132 = vpop.f32.mrb[0].mxu0
        %v2133 = vadd.f32 %v1972, %v2132
        %v2134 = vpop.f32.mrb[0].mxu0
        %v2135 = vpop.f32.mrb[0].mxu0
        %v2136 = vadd.f32 %v1975, %v2135
        %v2137 = vpop.f32.mrb[0].mxu0
        %2138 = vmatprep.mubr.bf16.mxu0 0
        %2139 = vmatmul.mubr.bf16.gmra.mrb[0].mxu0 %v1701
        %v2140 = vpop.f32.mrb[0].mxu0
        %v2141 = vadd.f32 %v1980, %v2140
        %v2142 = vpop.f32.mrb[0].mxu0
        %v2143 = vpop.f32.mrb[0].mxu0
        %v2144 = vadd.f32 %v1983, %v2143
        %v2145 = vpop.f32.mrb[0].mxu0
        %2146 = vmatprep.mubr.bf16.mxu0 0
        %2147 = vmatmul.mubr.bf16.gmra.mrb[0].mxu0 %v1704
        %v2148 = vpop.f32.mrb[0].mxu0
        %v2149 = vadd.f32 %v1988, %v2148
        %v2150 = vpop.f32.mrb[0].mxu0
        %v2151 = vpop.f32.mrb[0].mxu0
        %v2152 = vadd.f32 %v1991, %v2151
        %v2153 = vpop.f32.mrb[0].mxu0
        %2154 = vmatprep.mubr.bf16.mxu0 0
        %2155 = vmatmul.mubr.bf16.gmra.mrb[0].mxu0 %v1707
        %v2156 = vpop.f32.mrb[0].mxu0
        %v2157 = vadd.f32 %v1996, %v2156
        %v2158 = vpop.f32.mrb[0].mxu0
        %v2159 = vpop.f32.mrb[0].mxu0
        %v2160 = vadd.f32 %v1999, %v2159
        %v2161 = vpop.f32.mrb[0].mxu0
        %2162 = vmatprep.mubr.bf16.mxu0 0
        %2163 = vmatmul.mubr.bf16.gmra.mrb[0].mxu0 %v1710
        %v2164 = vpop.f32.mrb[0].mxu0
        %v2165 = vadd.f32 %v2004, %v2164
        %v2166 = vpop.f32.mrb[0].mxu0
        %v2167 = vpop.f32.mrb[0].mxu0
        %v2168 = vadd.f32 %v2007, %v2167
        %v2169 = vpop.f32.mrb[0].mxu0
        %2170 = vmatprep.mubr.bf16.mxu0 0
        %2171 = vmatmul.mubr.bf16.gmra.mrb[0].mxu0 %v1713
        %v2172 = vpop.f32.mrb[0].mxu0
        %v2173 = vadd.f32 %v2012, %v2172
        %v2174 = vpop.f32.mrb[0].mxu0
        %v2175 = vpop.f32.mrb[0].mxu0
        %v2176 = vadd.f32 %v2015, %v2175
        %v2177 = vpop.f32.mrb[0].mxu0
        %2178 = vmatprep.mubr.bf16.mxu0 0
        %2179 = vmatmul.mubr.bf16.gmra.mrb[0].mxu0 %v1716
        %v2180 = vpop.f32.mrb[0].mxu0
        %v2181 = vadd.f32 %v2020, %v2180
        %v2182 = vpop.f32.mrb[0].mxu0
        %v2183 = vpop.f32.mrb[0].mxu0
        %v2184 = vadd.f32 %v2023, %v2183
        %v2185 = vpop.f32.mrb[0].mxu0
        %2186 = vmatprep.mubr.bf16.mxu0 0
        %2187 = vmatmul.mubr.bf16.gmra.mrb[0].mxu0 %v1719
        %v2188 = vpop.f32.mrb[0].mxu0
        %v2189 = vadd.f32 %v2028, %v2188
        %v2190 = vpop.f32.mrb[0].mxu0
        %v2191 = vpop.f32.mrb[0].mxu0
        %v2192 = vadd.f32 %v2031, %v2191
        %v2193 = vpop.f32.mrb[0].mxu0
        %2194 = vmatprep.mubr.bf16.mxu0 0
        %2195 = vmatmul.mubr.bf16.gmra.mrb[0].mxu0 %v1722
        %v2196 = vpop.f32.mrb[0].mxu0
        %v2197 = vadd.f32 %v2036, %v2196
        %v2198 = vpop.f32.mrb[0].mxu0
        %v2199 = vpop.f32.mrb[0].mxu0
        %v2200 = vadd.f32 %v2039, %v2199
        %v2201 = vpop.f32.mrb[0].mxu0
        %2202 = vmatprep.mubr.bf16.mxu0 0
        %2203 = vmatmul.mubr.bf16.gmra.mrb[0].mxu0 %v1725
        %v2204 = vpop.f32.mrb[0].mxu0
        %v2205 = vadd.f32 %v2044, %v2204
        %v2206 = vpop.f32.mrb[0].mxu0
        %v2207 = vpop.f32.mrb[0].mxu0
        %v2208 = vadd.f32 %v2047, %v2207
        %v2209 = vpop.f32.mrb[0].mxu0
        %2210 = vmatprep.mubr.bf16.mxu0 0
        %2211 = vmatmul.mubr.bf16.gmra.mrb[0].mxu0 %v1728
        %v2212 = vpop.f32.mrb[0].mxu0
        %v2213 = vadd.f32 %v2052, %v2212
        %v2214 = vpop.f32.mrb[0].mxu0
        %v2215 = vpop.f32.mrb[0].mxu0
        %v2216 = vadd.f32 %v2055, %v2215
        %v2217 = vpop.f32.mrb[0].mxu0
        %2218 = vmatprep.mubr.bf16.mxu0 0
        %2219 = vmatmul.mubr.bf16.gmra.mrb[0].mxu0 %v1731
        %v2220 = vpop.f32.mrb[0].mxu0
        %v2221 = vadd.f32 %v2060, %v2220
        %v2222 = vpop.f32.mrb[0].mxu0
        %v2223 = vpop.f32.mrb[0].mxu0
        %v2224 = vadd.f32 %v2063, %v2223
        %v2225 = vpop.f32.mrb[0].mxu0
        %2226 = vmatprep.mubr.bf16.mxu0 0
        %2227 = vmatmul.mubr.bf16.gmra.mrb[0].mxu0 %v1734
        %v2228 = vpop.f32.mrb[0].mxu0
        %v2229 = vadd.f32 %v2068, %v2228
        %v2230 = vpop.f32.mrb[0].mxu0
        %v2231 = vpop.f32.mrb[0].mxu0
        %v2232 = vadd.f32 %v2071, %v2231
        %v2233 = vpop.f32.mrb[0].mxu0
        %2234 = vmatprep.mubr.bf16.mxu0 0
        %2235 = vmatmul.mubr.bf16.gmra.mrb[0].mxu0 %v1737
        %v2236 = vpop.f32.mrb[0].mxu0
        %v2237 = vadd.f32 %v2076, %v2236
        %v2238 = vpop.f32.mrb[0].mxu0
        %v2239 = vpop.f32.mrb[0].mxu0
        %v2240 = vadd.f32 %v2079, %v2239
        %v2241 = vpop.f32.mrb[0].mxu0
        %2242 = vmatprep.mubr.bf16.mxu0 0
        %2243 = vmatmul.mubr.bf16.gmra.mrb[0].mxu0 %v1740
        %v2244 = vpop.f32.mrb[0].mxu0
        %v2245 = vadd.f32 %v2084, %v2244
        %v2246 = vpop.f32.mrb[0].mxu0
        %v2247 = vpop.f32.mrb[0].mxu0
        %v2248 = vadd.f32 %v2087, %v2247
        %v2249 = vpop.f32.mrb[0].mxu0
        %2250 = vmatprep.mubr.bf16.mxu0 0
        %2251 = vmatmul.mubr.bf16.gmra.mrb[0].mxu0 %v1743
        %v2252 = vpop.f32.mrb[0].mxu0
        %v2253 = vadd.f32 %v2092, %v2252
        %v2254 = vpop.f32.mrb[0].mxu0
        %v2255 = vpop.f32.mrb[0].mxu0
        %v2256 = vadd.f32 %v2095, %v2255
        %v2257 = vpop.f32.mrb[0].mxu0
        %2258 = vdwg.mxu0
        %v2259 = vadd.f32 %v1569, %v2133
        %v2260 = vadd.f32 %v1572, %v2136
        %v2261 = vadd.f32 %v1577, %v2141
        %v2262 = vadd.f32 %v1580, %v2144
        %v2263 = vadd.f32 %v1585, %v2149
        %v2264 = vadd.f32 %v1588, %v2152
        %v2265 = vadd.f32 %v1593, %v2157
        %v2266 = vadd.f32 %v1596, %v2160
        %v2267 = vadd.f32 %v1601, %v2165
        %v2268 = vadd.f32 %v1604, %v2168
        %v2269 = vadd.f32 %v1609, %v2173
        %v2270 = vadd.f32 %v1612, %v2176
        %v2271 = vadd.f32 %v1617, %v2181
        %v2272 = vadd.f32 %v1620, %v2184
        %v2273 = vadd.f32 %v1625, %v2189
        %v2274 = vadd.f32 %v1628, %v2192
        %v2275 = vadd.f32 %v1633, %v2197
        %v2276 = vadd.f32 %v1636, %v2200
        %v2277 = vadd.f32 %v1641, %v2205
        %v2278 = vadd.f32 %v1644, %v2208
        %v2279 = vadd.f32 %v1649, %v2213
        %v2280 = vadd.f32 %v1652, %v2216
        %v2281 = vadd.f32 %v1657, %v2221
        %v2282 = vadd.f32 %v1660, %v2224
        %v2283 = vadd.f32 %v1665, %v2229
        %v2284 = vadd.f32 %v1668, %v2232
        %v2285 = vadd.f32 %v1673, %v2237
        %v2286 = vadd.f32 %v1676, %v2240
        %v2287 = vadd.f32 %v1681, %v2245
        %v2288 = vadd.f32 %v1684, %v2248
        %v2289 = vadd.f32 %v1689, %v2253
        %v2290 = vadd.f32 %v1692, %v2256
        %v2291 = vadd.f32 %v2259, %v2260
        %v2292 = vadd.f32 %v2291, %v2261
        %v2293 = vadd.f32 %v2292, %v2262
        %v2294 = vadd.f32 %v2293, %v2263
        %v2295 = vadd.f32 %v2294, %v2264
        %v2296 = vadd.f32 %v2295, %v2265
        %v2297 = vadd.f32 %v2296, %v2266
        %v2298 = vadd.f32 %v2297, %v2267
        %v2299 = vadd.f32 %v2298, %v2268
        %v2300 = vadd.f32 %v2299, %v2269
        %v2301 = vadd.f32 %v2300, %v2270
        %v2302 = vadd.f32 %v2301, %v2271
        %v2303 = vadd.f32 %v2302, %v2272
        %v2304 = vadd.f32 %v2303, %v2273
        %v2305 = vadd.f32 %v2304, %v2274
        %v2306 = vadd.f32 %v2305, %v2275
        %v2307 = vadd.f32 %v2306, %v2276
        %v2308 = vadd.f32 %v2307, %v2277
        %v2309 = vadd.f32 %v2308, %v2278
        %v2310 = vadd.f32 %v2309, %v2279
        %v2311 = vadd.f32 %v2310, %v2280
        %v2312 = vadd.f32 %v2311, %v2281
        %v2313 = vadd.f32 %v2312, %v2282
        %v2314 = vadd.f32 %v2313, %v2283
        %v2315 = vadd.f32 %v2314, %v2284
        %v2316 = vadd.f32 %v2315, %v2285
        %v2317 = vadd.f32 %v2316, %v2286
        %v2318 = vadd.f32 %v2317, %v2287
        %v2319 = vadd.f32 %v2318, %v2288
        %v2320 = vadd.f32 %v2319, %v2289
        %v2321 = vadd.f32 %v2320, %v2290
        %v2322 = vrot.slane %v2321, 4
        %v2323 = vadd.f32 %v2321, %v2322
        %v2324 = vrot.slane %v2323, 2
        %v2325 = vadd.f32 %v2323, %v2324
        %v2326 = vrot.slane %v2325, 1
        %v2327 = vadd.f32 %v2325, %v2326
        %v2328 = vmul.f32 %v2259, %v2259
        %v2329 = vmul.f32 %v2260, %v2260
        %v2330 = vmul.f32 %v2261, %v2261
        %v2331 = vmul.f32 %v2262, %v2262
        %v2332 = vmul.f32 %v2263, %v2263
        %v2333 = vmul.f32 %v2264, %v2264
        %v2334 = vmul.f32 %v2265, %v2265
        %v2335 = vmul.f32 %v2266, %v2266
        %v2336 = vmul.f32 %v2267, %v2267
        %v2337 = vmul.f32 %v2268, %v2268
        %v2338 = vmul.f32 %v2269, %v2269
        %v2339 = vmul.f32 %v2270, %v2270
        %v2340 = vmul.f32 %v2271, %v2271
        %v2341 = vmul.f32 %v2272, %v2272
        %v2342 = vmul.f32 %v2273, %v2273
        %v2343 = vmul.f32 %v2274, %v2274
        %v2344 = vmul.f32 %v2275, %v2275
        %v2345 = vmul.f32 %v2276, %v2276
        %v2346 = vmul.f32 %v2277, %v2277
        %v2347 = vmul.f32 %v2278, %v2278
        %v2348 = vmul.f32 %v2279, %v2279
        %v2349 = vmul.f32 %v2280, %v2280
        %v2350 = vmul.f32 %v2281, %v2281
        %v2351 = vmul.f32 %v2282, %v2282
        %v2352 = vmul.f32 %v2283, %v2283
        %v2353 = vmul.f32 %v2284, %v2284
        %v2354 = vmul.f32 %v2285, %v2285
        %v2355 = vmul.f32 %v2286, %v2286
        %v2356 = vmul.f32 %v2287, %v2287
        %v2357 = vmul.f32 %v2288, %v2288
        %v2358 = vmul.f32 %v2289, %v2289
        %v2359 = vmul.f32 %v2290, %v2290
        %v2360 = vadd.f32 %v2328, %v2329
        %v2361 = vadd.f32 %v2360, %v2330
        %v2362 = vadd.f32 %v2361, %v2331
        %v2363 = vadd.f32 %v2362, %v2332
        %v2364 = vadd.f32 %v2363, %v2333
        %v2365 = vadd.f32 %v2364, %v2334
        %v2366 = vadd.f32 %v2365, %v2335
        %v2367 = vadd.f32 %v2366, %v2336
        %v2368 = vadd.f32 %v2367, %v2337
        %v2369 = vadd.f32 %v2368, %v2338
        %v2370 = vadd.f32 %v2369, %v2339
        %v2371 = vadd.f32 %v2370, %v2340
        %v2372 = vadd.f32 %v2371, %v2341
        %v2373 = vadd.f32 %v2372, %v2342
        %v2374 = vadd.f32 %v2373, %v2343
        %v2375 = vadd.f32 %v2374, %v2344
        %v2376 = vadd.f32 %v2375, %v2345
        %v2377 = vadd.f32 %v2376, %v2346
        %v2378 = vadd.f32 %v2377, %v2347
        %v2379 = vadd.f32 %v2378, %v2348
        %v2380 = vadd.f32 %v2379, %v2349
        %v2381 = vadd.f32 %v2380, %v2350
        %v2382 = vadd.f32 %v2381, %v2351
        %v2383 = vadd.f32 %v2382, %v2352
        %v2384 = vadd.f32 %v2383, %v2353
        %v2385 = vadd.f32 %v2384, %v2354
        %v2386 = vadd.f32 %v2385, %v2355
        %v2387 = vadd.f32 %v2386, %v2356
        %v2388 = vadd.f32 %v2387, %v2357
        %v2389 = vadd.f32 %v2388, %v2358
        %v2390 = vadd.f32 %v2389, %v2359
        %v2391 = vrot.slane %v2390, 4
        %v2392 = vadd.f32 %v2390, %v2391
        %v2393 = vrot.slane %v2392, 2
        %v2394 = vadd.f32 %v2392, %v2393
        %v2395 = vrot.slane %v2394, 1
        %v2396 = vadd.f32 %v2394, %v2395
        %v2397 = vmul.f32 %v2327, 0.00390625
        %v2398 = vmul.f32 %v2396, 0.00390625
        %v2399 = vmul.f32 %v2397, %v2397
        %v2400 = vsub.f32 %v2398, %v2399
        %v2401 = vmax.f32 %v2400, 0.0
        %v2402 = vsub.f32 %v2259, %v2397
        %v2403 = vsub.f32 %v2260, %v2397
        %v2404 = vsub.f32 %v2261, %v2397
        %v2405 = vsub.f32 %v2262, %v2397
        %v2406 = vsub.f32 %v2263, %v2397
        %v2407 = vsub.f32 %v2264, %v2397
        %v2408 = vsub.f32 %v2265, %v2397
        %v2409 = vsub.f32 %v2266, %v2397
        %v2410 = vsub.f32 %v2267, %v2397
        %v2411 = vsub.f32 %v2268, %v2397
        %v2412 = vsub.f32 %v2269, %v2397
        %v2413 = vsub.f32 %v2270, %v2397
        %v2414 = vsub.f32 %v2271, %v2397
        %v2415 = vsub.f32 %v2272, %v2397
        %v2416 = vsub.f32 %v2273, %v2397
        %v2417 = vsub.f32 %v2274, %v2397
        %v2418 = vsub.f32 %v2275, %v2397
        %v2419 = vsub.f32 %v2276, %v2397
        %v2420 = vsub.f32 %v2277, %v2397
        %v2421 = vsub.f32 %v2278, %v2397
        %v2422 = vsub.f32 %v2279, %v2397
        %v2423 = vsub.f32 %v2280, %v2397
        %v2424 = vsub.f32 %v2281, %v2397
        %v2425 = vsub.f32 %v2282, %v2397
        %v2426 = vsub.f32 %v2283, %v2397
        %v2427 = vsub.f32 %v2284, %v2397
        %v2428 = vsub.f32 %v2285, %v2397
        %v2429 = vsub.f32 %v2286, %v2397
        %v2430 = vsub.f32 %v2287, %v2397
        %v2431 = vsub.f32 %v2288, %v2397
        %v2432 = vsub.f32 %v2289, %v2397
        %v2433 = vsub.f32 %v2290, %v2397
        %v2434 = vadd.f32 %v2401, 1e-05
        %v2435 = vrsqrt.pop %v2434
        %v2436 = vmul.f32 %v2402, %v2435
        %v2437 = vmul.f32 %v2403, %v2435
        %v2438 = vmul.f32 %v2404, %v2435
        %v2439 = vmul.f32 %v2405, %v2435
        %v2440 = vmul.f32 %v2406, %v2435
        %v2441 = vmul.f32 %v2407, %v2435
        %v2442 = vmul.f32 %v2408, %v2435
        %v2443 = vmul.f32 %v2409, %v2435
        %v2444 = vmul.f32 %v2410, %v2435
        %v2445 = vmul.f32 %v2411, %v2435
        %v2446 = vmul.f32 %v2412, %v2435
        %v2447 = vmul.f32 %v2413, %v2435
        %v2448 = vmul.f32 %v2414, %v2435
        %v2449 = vmul.f32 %v2415, %v2435
        %v2450 = vmul.f32 %v2416, %v2435
        %v2451 = vmul.f32 %v2417, %v2435
        %v2452 = vmul.f32 %v2418, %v2435
        %v2453 = vmul.f32 %v2419, %v2435
        %v2454 = vmul.f32 %v2420, %v2435
        %v2455 = vmul.f32 %v2421, %v2435
        %v2456 = vmul.f32 %v2422, %v2435
        %v2457 = vmul.f32 %v2423, %v2435
        %v2458 = vmul.f32 %v2424, %v2435
        %v2459 = vmul.f32 %v2425, %v2435
        %v2460 = vmul.f32 %v2426, %v2435
        %v2461 = vmul.f32 %v2427, %v2435
        %v2462 = vmul.f32 %v2428, %v2435
        %v2463 = vmul.f32 %v2429, %v2435
        %v2464 = vmul.f32 %v2430, %v2435
        %v2465 = vmul.f32 %v2431, %v2435
        %v2466 = vmul.f32 %v2432, %v2435
        %v2467 = vmul.f32 %v2433, %v2435
        %v2468 = vmax.f32 %v2436, 0.0
        %v2469 = vmax.f32 %v2437, 0.0
        %v2470 = vmax.f32 %v2438, 0.0
        %v2471 = vmax.f32 %v2439, 0.0
        %v2472 = vmax.f32 %v2440, 0.0
        %v2473 = vmax.f32 %v2441, 0.0
        %v2474 = vmax.f32 %v2442, 0.0
        %v2475 = vmax.f32 %v2443, 0.0
        %v2476 = vmax.f32 %v2444, 0.0
        %v2477 = vmax.f32 %v2445, 0.0
        %v2478 = vmax.f32 %v2446, 0.0
        %v2479 = vmax.f32 %v2447, 0.0
        %v2480 = vmax.f32 %v2448, 0.0
        %v2481 = vmax.f32 %v2449, 0.0
        %v2482 = vmax.f32 %v2450, 0.0
        %v2483 = vmax.f32 %v2451, 0.0
        %v2484 = vmax.f32 %v2452, 0.0
        %v2485 = vmax.f32 %v2453, 0.0
        %v2486 = vmax.f32 %v2454, 0.0
        %v2487 = vmax.f32 %v2455, 0.0
        %v2488 = vmax.f32 %v2456, 0.0
        %v2489 = vmax.f32 %v2457, 0.0
        %v2490 = vmax.f32 %v2458, 0.0
        %v2491 = vmax.f32 %v2459, 0.0
        %v2492 = vmax.f32 %v2460, 0.0
        %v2493 = vmax.f32 %v2461, 0.0
        %v2494 = vmax.f32 %v2462, 0.0
        %v2495 = vmax.f32 %v2463, 0.0
        %v2496 = vmax.f32 %v2464, 0.0
        %v2497 = vmax.f32 %v2465, 0.0
        %v2498 = vmax.f32 %v2466, 0.0
        %v2499 = vmax.f32 %v2467, 0.0
        %v2500 = vrot.slane %v2468, 6
        %v2501 = vrot.slane %v2469, 6
        %v2502 = vrot.slane %v2470, 6
        %v2503 = vrot.slane %v2471, 6
        %v2504 = vrot.slane %v2472, 6
        %v2505 = vrot.slane %v2473, 6
        %v2506 = vrot.slane %v2474, 6
        %v2507 = vrot.slane %v2475, 6
        %v2508 = vrot.slane %v2476, 6
        %v2509 = vrot.slane %v2477, 6
        %v2510 = vrot.slane %v2478, 6
        %v2511 = vrot.slane %v2479, 6
        %v2512 = vrot.slane %v2480, 6
        %v2513 = vrot.slane %v2481, 6
        %v2514 = vrot.slane %v2482, 6
        %v2515 = vrot.slane %v2483, 6
        %v2516 = vrot.slane %v2484, 6
        %v2517 = vrot.slane %v2485, 6
        %v2518 = vrot.slane %v2486, 6
        %v2519 = vrot.slane %v2487, 6
        %v2520 = vrot.slane %v2488, 6
        %v2521 = vrot.slane %v2489, 6
        %v2522 = vrot.slane %v2490, 6
        %v2523 = vrot.slane %v2491, 6
        %v2524 = vrot.slane %v2492, 6
        %v2525 = vrot.slane %v2493, 6
        %v2526 = vrot.slane %v2494, 6
        %v2527 = vrot.slane %v2495, 6
        %v2528 = vrot.slane %v2496, 6
        %v2529 = vrot.slane %v2497, 6
        %v2530 = vrot.slane %v2498, 6
        %v2531 = vrot.slane %v2499, 6
        %v2532 = vsel %vm299, %v2530, %v2531
        %v2533 = vsel %vm299, %v2529, %v2530
        %v2534 = vsel %vm299, %v2528, %v2529
        %v2535 = vsel %vm299, %v2527, %v2528
        %v2536 = vsel %vm299, %v2526, %v2527
        %v2537 = vsel %vm299, %v2525, %v2526
        %v2538 = vsel %vm299, %v2524, %v2525
        %v2539 = vsel %vm299, %v2523, %v2524
        %v2540 = vsel %vm299, %v2522, %v2523
        %v2541 = vsel %vm299, %v2521, %v2522
        %v2542 = vsel %vm299, %v2520, %v2521
        %v2543 = vsel %vm299, %v2519, %v2520
        %v2544 = vsel %vm299, %v2518, %v2519
        %v2545 = vsel %vm299, %v2517, %v2518
        %v2546 = vsel %vm299, %v2516, %v2517
        %v2547 = vsel %vm299, %v2515, %v2516
        %v2548 = vsel %vm299, %v2514, %v2515
        %v2549 = vsel %vm299, %v2513, %v2514
        %v2550 = vsel %vm299, %v2512, %v2513
        %v2551 = vsel %vm299, %v2511, %v2512
        %v2552 = vsel %vm299, %v2510, %v2511
        %v2553 = vsel %vm299, %v2509, %v2510
        %v2554 = vsel %vm299, %v2508, %v2509
        %v2555 = vsel %vm299, %v2507, %v2508
        %v2556 = vsel %vm299, %v2506, %v2507
        %v2557 = vsel %vm299, %v2505, %v2506
        %v2558 = vsel %vm299, %v2504, %v2505
        %v2559 = vsel %vm299, %v2503, %v2504
        %v2560 = vsel %vm299, %v2502, %v2503
        %v2561 = vsel %vm299, %v2501, %v2502
        %v2562 = vsel %vm299, %v2500, %v2501
        %v2563 = vsel %vm299, %v2531, %v2500
        %v2564 = vrot.slane %v2468, 2
        %v2565 = vrot.slane %v2469, 2
        %v2566 = vrot.slane %v2470, 2
        %v2567 = vrot.slane %v2471, 2
        %v2568 = vrot.slane %v2472, 2
        %v2569 = vrot.slane %v2473, 2
        %v2570 = vrot.slane %v2474, 2
        %v2571 = vrot.slane %v2475, 2
        %v2572 = vrot.slane %v2476, 2
        %v2573 = vrot.slane %v2477, 2
        %v2574 = vrot.slane %v2478, 2
        %v2575 = vrot.slane %v2479, 2
        %v2576 = vrot.slane %v2480, 2
        %v2577 = vrot.slane %v2481, 2
        %v2578 = vrot.slane %v2482, 2
        %v2579 = vrot.slane %v2483, 2
        %v2580 = vrot.slane %v2484, 2
        %v2581 = vrot.slane %v2485, 2
        %v2582 = vrot.slane %v2486, 2
        %v2583 = vrot.slane %v2487, 2
        %v2584 = vrot.slane %v2488, 2
        %v2585 = vrot.slane %v2489, 2
        %v2586 = vrot.slane %v2490, 2
        %v2587 = vrot.slane %v2491, 2
        %v2588 = vrot.slane %v2492, 2
        %v2589 = vrot.slane %v2493, 2
        %v2590 = vrot.slane %v2494, 2
        %v2591 = vrot.slane %v2495, 2
        %v2592 = vrot.slane %v2496, 2
        %v2593 = vrot.slane %v2497, 2
        %v2594 = vrot.slane %v2498, 2
        %v2595 = vrot.slane %v2499, 2
        %v2596 = vsel %vm364, %v2594, %v2595
        %v2597 = vsel %vm364, %v2593, %v2594
        %v2598 = vsel %vm364, %v2592, %v2593
        %v2599 = vsel %vm364, %v2591, %v2592
        %v2600 = vsel %vm364, %v2590, %v2591
        %v2601 = vsel %vm364, %v2589, %v2590
        %v2602 = vsel %vm364, %v2588, %v2589
        %v2603 = vsel %vm364, %v2587, %v2588
        %v2604 = vsel %vm364, %v2586, %v2587
        %v2605 = vsel %vm364, %v2585, %v2586
        %v2606 = vsel %vm364, %v2584, %v2585
        %v2607 = vsel %vm364, %v2583, %v2584
        %v2608 = vsel %vm364, %v2582, %v2583
        %v2609 = vsel %vm364, %v2581, %v2582
        %v2610 = vsel %vm364, %v2580, %v2581
        %v2611 = vsel %vm364, %v2579, %v2580
        %v2612 = vsel %vm364, %v2578, %v2579
        %v2613 = vsel %vm364, %v2577, %v2578
        %v2614 = vsel %vm364, %v2576, %v2577
        %v2615 = vsel %vm364, %v2575, %v2576
        %v2616 = vsel %vm364, %v2574, %v2575
        %v2617 = vsel %vm364, %v2573, %v2574
        %v2618 = vsel %vm364, %v2572, %v2573
        %v2619 = vsel %vm364, %v2571, %v2572
        %v2620 = vsel %vm364, %v2570, %v2571
        %v2621 = vsel %vm364, %v2569, %v2570
        %v2622 = vsel %vm364, %v2568, %v2569
        %v2623 = vsel %vm364, %v2567, %v2568
        %v2624 = vsel %vm364, %v2566, %v2567
        %v2625 = vsel %vm364, %v2565, %v2566
        %v2626 = vsel %vm364, %v2564, %v2565
        %v2627 = vsel %vm364, %v2595, %v2564
        %v2628 = vsel %vm401, %v2563, 0.0
        %v2629 = vsel %vm402, %v2562, 0.0
        %v2630 = vsel %vm401, %v2561, 0.0
        %v2631 = vsel %vm402, %v2560, 0.0
        %v2632 = vsel %vm401, %v2559, 0.0
        %v2633 = vsel %vm402, %v2558, 0.0
        %v2634 = vsel %vm401, %v2557, 0.0
        %v2635 = vsel %vm402, %v2556, 0.0
        %v2636 = vsel %vm401, %v2555, 0.0
        %v2637 = vsel %vm402, %v2554, 0.0
        %v2638 = vsel %vm401, %v2553, 0.0
        %v2639 = vsel %vm402, %v2552, 0.0
        %v2640 = vsel %vm401, %v2551, 0.0
        %v2641 = vsel %vm402, %v2550, 0.0
        %v2642 = vsel %vm401, %v2549, 0.0
        %v2643 = vsel %vm402, %v2548, 0.0
        %v2644 = vsel %vm401, %v2547, 0.0
        %v2645 = vsel %vm402, %v2546, 0.0
        %v2646 = vsel %vm401, %v2545, 0.0
        %v2647 = vsel %vm402, %v2544, 0.0
        %v2648 = vsel %vm401, %v2543, 0.0
        %v2649 = vsel %vm402, %v2542, 0.0
        %v2650 = vsel %vm401, %v2541, 0.0
        %v2651 = vsel %vm402, %v2540, 0.0
        %v2652 = vsel %vm401, %v2539, 0.0
        %v2653 = vsel %vm402, %v2538, 0.0
        %v2654 = vsel %vm401, %v2537, 0.0
        %v2655 = vsel %vm402, %v2536, 0.0
        %v2656 = vsel %vm401, %v2535, 0.0
        %v2657 = vsel %vm402, %v2534, 0.0
        %v2658 = vsel %vm401, %v2533, 0.0
        %v2659 = vsel %vm402, %v2532, 0.0
        %v2660 = vsel %vm439, %v2626, 0.0
        %v2661 = vsel %vm440, %v2625, 0.0
        %v2662 = vsel %vm439, %v2624, 0.0
        %v2663 = vsel %vm440, %v2623, 0.0
        %v2664 = vsel %vm439, %v2622, 0.0
        %v2665 = vsel %vm440, %v2621, 0.0
        %v2666 = vsel %vm439, %v2620, 0.0
        %v2667 = vsel %vm440, %v2619, 0.0
        %v2668 = vsel %vm439, %v2618, 0.0
        %v2669 = vsel %vm440, %v2617, 0.0
        %v2670 = vsel %vm439, %v2616, 0.0
        %v2671 = vsel %vm440, %v2615, 0.0
        %v2672 = vsel %vm439, %v2614, 0.0
        %v2673 = vsel %vm440, %v2613, 0.0
        %v2674 = vsel %vm439, %v2612, 0.0
        %v2675 = vsel %vm440, %v2611, 0.0
        %v2676 = vsel %vm439, %v2610, 0.0
        %v2677 = vsel %vm440, %v2609, 0.0
        %v2678 = vsel %vm439, %v2608, 0.0
        %v2679 = vsel %vm440, %v2607, 0.0
        %v2680 = vsel %vm439, %v2606, 0.0
        %v2681 = vsel %vm440, %v2605, 0.0
        %v2682 = vsel %vm439, %v2604, 0.0
        %v2683 = vsel %vm440, %v2603, 0.0
        %v2684 = vsel %vm439, %v2602, 0.0
        %v2685 = vsel %vm440, %v2601, 0.0
        %v2686 = vsel %vm439, %v2600, 0.0
        %v2687 = vsel %vm440, %v2599, 0.0
        %v2688 = vsel %vm439, %v2598, 0.0
        %v2689 = vsel %vm440, %v2597, 0.0
        %v2690 = vsel %vm439, %v2596, 0.0
        %v2691 = vsel %vm440, %v2627, 0.0
        %v2692 = vpack.c.bf16 %v2629, %v2628
        %v2693 = vpack.c.bf16 %v2631, %v2630
        %v2694 = vpack.c.bf16 %v2633, %v2632
        %v2695 = vpack.c.bf16 %v2635, %v2634
        %v2696 = vpack.c.bf16 %v2637, %v2636
        %v2697 = vpack.c.bf16 %v2639, %v2638
        %v2698 = vpack.c.bf16 %v2641, %v2640
        %v2699 = vpack.c.bf16 %v2643, %v2642
        %v2700 = vpack.c.bf16 %v2645, %v2644
        %v2701 = vpack.c.bf16 %v2647, %v2646
        %v2702 = vpack.c.bf16 %v2649, %v2648
        %v2703 = vpack.c.bf16 %v2651, %v2650
        %v2704 = vpack.c.bf16 %v2653, %v2652
        %v2705 = vpack.c.bf16 %v2655, %v2654
        %v2706 = vpack.c.bf16 %v2657, %v2656
        %v2707 = vpack.c.bf16 %v2659, %v2658
        %2708 = vst [vmem:[%s489] sm:$0xff] %v2692
        %2709 = vst [vmem:[%s489 + $0x18] sm:$0xff] %v2693
        %2710 = vst [vmem:[%s489 + $0x30] sm:$0xff] %v2694
        %2711 = vst [vmem:[%s489 + $0x48] sm:$0xff] %v2695
        %2712 = vst [vmem:[%s489 + $0x60] sm:$0xff] %v2696
        %2713 = vst [vmem:[%s489 + $0x78] sm:$0xff] %v2697
        %2714 = vst [vmem:[%s489 + $0x90] sm:$0xff] %v2698
        %2715 = vst [vmem:[%s489 + $0xa8] sm:$0xff] %v2699
        %2716 = vst [vmem:[%s489 + $0xc0] sm:$0xff] %v2700
        %2717 = vst [vmem:[%s489 + $0xd8] sm:$0xff] %v2701
        %2718 = vst [vmem:[%s489 + $0xf0] sm:$0xff] %v2702
        %2719 = vst [vmem:[%s489 + $0x108] sm:$0xff] %v2703
        %2720 = vst [vmem:[%s489 + $0x120] sm:$0xff] %v2704
        %2721 = vst [vmem:[%s489 + $0x138] sm:$0xff] %v2705
        %2722 = vst [vmem:[%s489 + $0x150] sm:$0xff] %v2706
        %2723 = vst [vmem:[%s489 + $0x168] sm:$0xff] %v2707
        %v2724 = vpack.c.bf16 %v2469, %v2468
        %v2725 = vpack.c.bf16 %v2471, %v2470
        %v2726 = vpack.c.bf16 %v2473, %v2472
        %v2727 = vpack.c.bf16 %v2475, %v2474
        %v2728 = vpack.c.bf16 %v2477, %v2476
        %v2729 = vpack.c.bf16 %v2479, %v2478
        %v2730 = vpack.c.bf16 %v2481, %v2480
        %v2731 = vpack.c.bf16 %v2483, %v2482
        %v2732 = vpack.c.bf16 %v2485, %v2484
        %v2733 = vpack.c.bf16 %v2487, %v2486
        %v2734 = vpack.c.bf16 %v2489, %v2488
        %v2735 = vpack.c.bf16 %v2491, %v2490
        %v2736 = vpack.c.bf16 %v2493, %v2492
        %v2737 = vpack.c.bf16 %v2495, %v2494
        %v2738 = vpack.c.bf16 %v2497, %v2496
        %v2739 = vpack.c.bf16 %v2499, %v2498
        %2740 = vst [vmem:[%s489 + $0x8] sm:$0xff] %v2724
        %2741 = vst [vmem:[%s489 + $0x20] sm:$0xff] %v2725
        %2742 = vst [vmem:[%s489 + $0x38] sm:$0xff] %v2726
        %2743 = vst [vmem:[%s489 + $0x50] sm:$0xff] %v2727
        %2744 = vst [vmem:[%s489 + $0x68] sm:$0xff] %v2728
        %2745 = vst [vmem:[%s489 + $0x80] sm:$0xff] %v2729
        %2746 = vst [vmem:[%s489 + $0x98] sm:$0xff] %v2730
        %2747 = vst [vmem:[%s489 + $0xb0] sm:$0xff] %v2731
        %2748 = vst [vmem:[%s489 + $0xc8] sm:$0xff] %v2732
        %2749 = vst [vmem:[%s489 + $0xe0] sm:$0xff] %v2733
        %2750 = vst [vmem:[%s489 + $0xf8] sm:$0xff] %v2734
        %2751 = vst [vmem:[%s489 + $0x110] sm:$0xff] %v2735
        %2752 = vst [vmem:[%s489 + $0x128] sm:$0xff] %v2736
        %2753 = vst [vmem:[%s489 + $0x140] sm:$0xff] %v2737
        %2754 = vst [vmem:[%s489 + $0x158] sm:$0xff] %v2738
        %2755 = vst [vmem:[%s489 + $0x170] sm:$0xff] %v2739
        %v2756 = vpack.c.bf16 %v2661, %v2660
        %v2757 = vpack.c.bf16 %v2663, %v2662
        %v2758 = vpack.c.bf16 %v2665, %v2664
        %v2759 = vpack.c.bf16 %v2667, %v2666
        %v2760 = vpack.c.bf16 %v2669, %v2668
        %v2761 = vpack.c.bf16 %v2671, %v2670
        %v2762 = vpack.c.bf16 %v2673, %v2672
        %v2763 = vpack.c.bf16 %v2675, %v2674
        %v2764 = vpack.c.bf16 %v2677, %v2676
        %v2765 = vpack.c.bf16 %v2679, %v2678
        %v2766 = vpack.c.bf16 %v2681, %v2680
        %v2767 = vpack.c.bf16 %v2683, %v2682
        %v2768 = vpack.c.bf16 %v2685, %v2684
        %v2769 = vpack.c.bf16 %v2687, %v2686
        %v2770 = vpack.c.bf16 %v2689, %v2688
        %v2771 = vpack.c.bf16 %v2691, %v2690
        %2772 = vst [vmem:[%s489 + $0x10] sm:$0xff] %v2756
        %2773 = vst [vmem:[%s489 + $0x28] sm:$0xff] %v2757
        %2774 = vst [vmem:[%s489 + $0x40] sm:$0xff] %v2758
        %2775 = vst [vmem:[%s489 + $0x58] sm:$0xff] %v2759
        %2776 = vst [vmem:[%s489 + $0x70] sm:$0xff] %v2760
        %2777 = vst [vmem:[%s489 + $0x88] sm:$0xff] %v2761
        %2778 = vst [vmem:[%s489 + $0xa0] sm:$0xff] %v2762
        %2779 = vst [vmem:[%s489 + $0xb8] sm:$0xff] %v2763
        %2780 = vst [vmem:[%s489 + $0xd0] sm:$0xff] %v2764
        %2781 = vst [vmem:[%s489 + $0xe8] sm:$0xff] %v2765
        %2782 = vst [vmem:[%s489 + $0x100] sm:$0xff] %v2766
        %2783 = vst [vmem:[%s489 + $0x118] sm:$0xff] %v2767
        %2784 = vst [vmem:[%s489 + $0x130] sm:$0xff] %v2768
        %2785 = vst [vmem:[%s489 + $0x148] sm:$0xff] %v2769
        %2786 = vst [vmem:[%s489 + $0x160] sm:$0xff] %v2770
        %2787 = vst [vmem:[%s489 + $0x178] sm:$0xff] %v2771
        %v2788 = vld [vmem:[#allocation2] sm:$0xff]
        %v2789 = vld [vmem:[#allocation2 + $0x8] sm:$0xff]
        %v2790 = vld [vmem:[#allocation2 + $0x10] sm:$0xff]
        %v2791 = vld [vmem:[#allocation2 + $0x18] sm:$0xff]
        %v2792 = vld [vmem:[#allocation2 + $0x20] sm:$0xff]
        %v2793 = vld [vmem:[#allocation2 + $0x28] sm:$0xff]
        %v2794 = vld [vmem:[#allocation2 + $0x30] sm:$0xff]
        %v2795 = vld [vmem:[#allocation2 + $0x38] sm:$0xff]
        %v2796 = vld [vmem:[#allocation2 + $0x40] sm:$0xff]
        %v2797 = vld [vmem:[#allocation2 + $0x48] sm:$0xff]
        %v2798 = vld [vmem:[#allocation2 + $0x50] sm:$0xff]
        %v2799 = vld [vmem:[#allocation2 + $0x58] sm:$0xff]
        %v2800 = vld [vmem:[#allocation2 + $0x60] sm:$0xff]
        %v2801 = vld [vmem:[#allocation2 + $0x68] sm:$0xff]
        %v2802 = vld [vmem:[#allocation2 + $0x70] sm:$0xff]
        %v2803 = vld [vmem:[#allocation2 + $0x78] sm:$0xff]
        %v2804 = vld [vmem:[#allocation2 + $0x80] sm:$0xff]
        %v2805 = vld [vmem:[#allocation2 + $0x88] sm:$0xff]
        %v2806 = vld [vmem:[#allocation2 + $0x90] sm:$0xff]
        %v2807 = vld [vmem:[#allocation2 + $0x98] sm:$0xff]
        %v2808 = vld [vmem:[#allocation2 + $0xa0] sm:$0xff]
        %v2809 = vld [vmem:[#allocation2 + $0xa8] sm:$0xff]
        %v2810 = vld [vmem:[#allocation2 + $0xb0] sm:$0xff]
        %v2811 = vld [vmem:[#allocation2 + $0xb8] sm:$0xff]
        %v2812 = vld [vmem:[#allocation2 + $0xc0] sm:$0xff]
        %v2813 = vld [vmem:[#allocation2 + $0xc8] sm:$0xff]
        %v2814 = vld [vmem:[#allocation2 + $0xd0] sm:$0xff]
        %v2815 = vld [vmem:[#allocation2 + $0xd8] sm:$0xff]
        %v2816 = vld [vmem:[#allocation2 + $0xe0] sm:$0xff]
        %v2817 = vld [vmem:[#allocation2 + $0xe8] sm:$0xff]
        %v2818 = vld [vmem:[#allocation2 + $0xf0] sm:$0xff]
        %v2819 = vld [vmem:[#allocation2 + $0xf8] sm:$0xff]
        %v2820 = vld [vmem:[#allocation2 + $0x100] sm:$0xff]
        %v2821 = vld [vmem:[#allocation2 + $0x108] sm:$0xff]
        %v2822 = vld [vmem:[#allocation2 + $0x110] sm:$0xff]
        %v2823 = vld [vmem:[#allocation2 + $0x118] sm:$0xff]
        %v2824 = vld [vmem:[#allocation2 + $0x120] sm:$0xff]
        %v2825 = vld [vmem:[#allocation2 + $0x128] sm:$0xff]
        %v2826 = vld [vmem:[#allocation2 + $0x130] sm:$0xff]
        %v2827 = vld [vmem:[#allocation2 + $0x138] sm:$0xff]
        %v2828 = vld [vmem:[#allocation2 + $0x140] sm:$0xff]
        %v2829 = vld [vmem:[#allocation2 + $0x148] sm:$0xff]
        %v2830 = vld [vmem:[#allocation2 + $0x150] sm:$0xff]
        %v2831 = vld [vmem:[#allocation2 + $0x158] sm:$0xff]
        %v2832 = vld [vmem:[#allocation2 + $0x160] sm:$0xff]
        %v2833 = vld [vmem:[#allocation2 + $0x168] sm:$0xff]
        %v2834 = vld [vmem:[#allocation2 + $0x170] sm:$0xff]
        %v2835 = vld [vmem:[#allocation2 + $0x178] sm:$0xff]
        %v2836 = vld [vmem:[#allocation8] sm:$0xf]
        %v2837 = vld [vmem:[#allocation8 + $0x4] sm:$0xf]
        %v2838 = vld [vmem:[#allocation8 + $0x8] sm:$0xf]
        %v2839 = vld [vmem:[#allocation8 + $0xc] sm:$0xf]
        %v2840 = vld [vmem:[#allocation8 + $0x10] sm:$0xf]
        %v2841 = vld [vmem:[#allocation8 + $0x14] sm:$0xf]
        %v2842 = vld [vmem:[#allocation8 + $0x18] sm:$0xf]
        %v2843 = vld [vmem:[#allocation8 + $0x1c] sm:$0xf]
        %v2844 = vld [vmem:[#allocation8 + $0x20] sm:$0xf]
        %v2845 = vld [vmem:[#allocation8 + $0x24] sm:$0xf]
        %v2846 = vld [vmem:[#allocation8 + $0x28] sm:$0xf]
        %v2847 = vld [vmem:[#allocation8 + $0x2c] sm:$0xf]
        %v2848 = vld [vmem:[#allocation8 + $0x30] sm:$0xf]
        %v2849 = vld [vmem:[#allocation8 + $0x34] sm:$0xf]
        %v2850 = vld [vmem:[#allocation8 + $0x38] sm:$0xf]
        %v2851 = vld [vmem:[#allocation8 + $0x3c] sm:$0xf]
        %v2852 = vld [vmem:[#allocation8 + $0x40] sm:$0xf]
        %v2853 = vld [vmem:[#allocation8 + $0x44] sm:$0xf]
        %v2854 = vld [vmem:[#allocation8 + $0x48] sm:$0xf]
        %v2855 = vld [vmem:[#allocation8 + $0x4c] sm:$0xf]
        %v2856 = vld [vmem:[#allocation8 + $0x50] sm:$0xf]
        %v2857 = vld [vmem:[#allocation8 + $0x54] sm:$0xf]
        %v2858 = vld [vmem:[#allocation8 + $0x58] sm:$0xf]
        %v2859 = vld [vmem:[#allocation8 + $0x5c] sm:$0xf]
        %v2860 = vld [vmem:[#allocation8 + $0x60] sm:$0xf]
        %v2861 = vld [vmem:[#allocation8 + $0x64] sm:$0xf]
        %v2862 = vld [vmem:[#allocation8 + $0x68] sm:$0xf]
        %v2863 = vld [vmem:[#allocation8 + $0x6c] sm:$0xf]
        %v2864 = vld [vmem:[#allocation8 + $0x70] sm:$0xf]
        %v2865 = vld [vmem:[#allocation8 + $0x74] sm:$0xf]
        %v2866 = vld [vmem:[#allocation8 + $0x78] sm:$0xf]
        %v2867 = vld [vmem:[#allocation8 + $0x7c] sm:$0xf]
        %v2868 = vld [vmem:[#allocation8 + $0x80] sm:$0xf]
        %v2869 = vld [vmem:[#allocation8 + $0x84] sm:$0xf]
        %v2870 = vld [vmem:[#allocation8 + $0x88] sm:$0xf]
        %v2871 = vld [vmem:[#allocation8 + $0x8c] sm:$0xf]
        %v2872 = vld [vmem:[#allocation8 + $0x90] sm:$0xf]
        %v2873 = vld [vmem:[#allocation8 + $0x94] sm:$0xf]
        %v2874 = vld [vmem:[#allocation8 + $0x98] sm:$0xf]
        %v2875 = vld [vmem:[#allocation8 + $0x9c] sm:$0xf]
        %v2876 = vld [vmem:[#allocation8 + $0xa0] sm:$0xf]
        %v2877 = vld [vmem:[#allocation8 + $0xa4] sm:$0xf]
        %v2878 = vld [vmem:[#allocation8 + $0xa8] sm:$0xf]
        %v2879 = vld [vmem:[#allocation8 + $0xac] sm:$0xf]
        %v2880 = vld [vmem:[#allocation8 + $0xb0] sm:$0xf]
        %v2881 = vld [vmem:[#allocation8 + $0xb4] sm:$0xf]
        %v2882 = vld [vmem:[#allocation8 + $0xb8] sm:$0xf]
        %v2883 = vld [vmem:[#allocation8 + $0xbc] sm:$0xf]
        %v2884 = vld [vmem:[%s489] sm:$0xff]
        %v2885 = vld [vmem:[%s489 + $0x8] sm:$0xff]
        %v2886 = vld [vmem:[%s489 + $0x10] sm:$0xff]
        %v2887 = vld [vmem:[%s489 + $0x18] sm:$0xff]
        %v2888 = vld [vmem:[%s489 + $0x20] sm:$0xff]
        %v2889 = vld [vmem:[%s489 + $0x28] sm:$0xff]
        %v2890 = vld [vmem:[%s489 + $0x30] sm:$0xff]
        %v2891 = vld [vmem:[%s489 + $0x38] sm:$0xff]
        %v2892 = vld [vmem:[%s489 + $0x40] sm:$0xff]
        %v2893 = vld [vmem:[%s489 + $0x48] sm:$0xff]
        %v2894 = vld [vmem:[%s489 + $0x50] sm:$0xff]
        %v2895 = vld [vmem:[%s489 + $0x58] sm:$0xff]
        %v2896 = vld [vmem:[%s489 + $0x60] sm:$0xff]
        %v2897 = vld [vmem:[%s489 + $0x68] sm:$0xff]
        %v2898 = vld [vmem:[%s489 + $0x70] sm:$0xff]
        %v2899 = vld [vmem:[%s489 + $0x78] sm:$0xff]
        %v2900 = vld [vmem:[%s489 + $0x80] sm:$0xff]
        %v2901 = vld [vmem:[%s489 + $0x88] sm:$0xff]
        %v2902 = vld [vmem:[%s489 + $0x90] sm:$0xff]
        %v2903 = vld [vmem:[%s489 + $0x98] sm:$0xff]
        %v2904 = vld [vmem:[%s489 + $0xa0] sm:$0xff]
        %v2905 = vld [vmem:[%s489 + $0xa8] sm:$0xff]
        %v2906 = vld [vmem:[%s489 + $0xb0] sm:$0xff]
        %v2907 = vld [vmem:[%s489 + $0xb8] sm:$0xff]
        %v2908 = vld [vmem:[%s489 + $0xc0] sm:$0xff]
        %v2909 = vld [vmem:[%s489 + $0xc8] sm:$0xff]
        %v2910 = vld [vmem:[%s489 + $0xd0] sm:$0xff]
        %v2911 = vld [vmem:[%s489 + $0xd8] sm:$0xff]
        %v2912 = vld [vmem:[%s489 + $0xe0] sm:$0xff]
        %v2913 = vld [vmem:[%s489 + $0xe8] sm:$0xff]
        %v2914 = vld [vmem:[%s489 + $0xf0] sm:$0xff]
        %v2915 = vld [vmem:[%s489 + $0xf8] sm:$0xff]
        %v2916 = vld [vmem:[%s489 + $0x100] sm:$0xff]
        %v2917 = vld [vmem:[%s489 + $0x108] sm:$0xff]
        %v2918 = vld [vmem:[%s489 + $0x110] sm:$0xff]
        %v2919 = vld [vmem:[%s489 + $0x118] sm:$0xff]
        %v2920 = vld [vmem:[%s489 + $0x120] sm:$0xff]
        %v2921 = vld [vmem:[%s489 + $0x128] sm:$0xff]
        %v2922 = vld [vmem:[%s489 + $0x130] sm:$0xff]
        %v2923 = vld [vmem:[%s489 + $0x138] sm:$0xff]
        %v2924 = vld [vmem:[%s489 + $0x140] sm:$0xff]
        %v2925 = vld [vmem:[%s489 + $0x148] sm:$0xff]
        %v2926 = vld [vmem:[%s489 + $0x150] sm:$0xff]
        %v2927 = vld [vmem:[%s489 + $0x158] sm:$0xff]
        %v2928 = vld [vmem:[%s489 + $0x160] sm:$0xff]
        %v2929 = vld [vmem:[%s489 + $0x168] sm:$0xff]
        %v2930 = vld [vmem:[%s489 + $0x170] sm:$0xff]
        %v2931 = vld [vmem:[%s489 + $0x178] sm:$0xff]
        %s2932 = scalar_lea.vmem [#allocation8], 192
        %v2933 = vld [vmem:[%s2932] sm:$0xf]
        %v2934 = vld [vmem:[%s2932 + $0x4] sm:$0xf]
        %v2935 = vld [vmem:[%s2932 + $0x8] sm:$0xf]
        %v2936 = vld [vmem:[%s2932 + $0xc] sm:$0xf]
        %v2937 = vld [vmem:[%s2932 + $0x10] sm:$0xf]
        %v2938 = vld [vmem:[%s2932 + $0x14] sm:$0xf]
        %v2939 = vld [vmem:[%s2932 + $0x18] sm:$0xf]
        %v2940 = vld [vmem:[%s2932 + $0x1c] sm:$0xf]
        %v2941 = vld [vmem:[%s2932 + $0x20] sm:$0xf]
        %v2942 = vld [vmem:[%s2932 + $0x24] sm:$0xf]
        %v2943 = vld [vmem:[%s2932 + $0x28] sm:$0xf]
        %v2944 = vld [vmem:[%s2932 + $0x2c] sm:$0xf]
        %v2945 = vld [vmem:[%s2932 + $0x30] sm:$0xf]
        %v2946 = vld [vmem:[%s2932 + $0x34] sm:$0xf]
        %v2947 = vld [vmem:[%s2932 + $0x38] sm:$0xf]
        %v2948 = vld [vmem:[%s2932 + $0x3c] sm:$0xf]
        %v2949 = vld [vmem:[%s2932 + $0x40] sm:$0xf]
        %v2950 = vld [vmem:[%s2932 + $0x44] sm:$0xf]
        %v2951 = vld [vmem:[%s2932 + $0x48] sm:$0xf]
        %v2952 = vld [vmem:[%s2932 + $0x4c] sm:$0xf]
        %v2953 = vld [vmem:[%s2932 + $0x50] sm:$0xf]
        %v2954 = vld [vmem:[%s2932 + $0x54] sm:$0xf]
        %v2955 = vld [vmem:[%s2932 + $0x58] sm:$0xf]
        %v2956 = vld [vmem:[%s2932 + $0x5c] sm:$0xf]
        %v2957 = vld [vmem:[%s2932 + $0x60] sm:$0xf]
        %v2958 = vld [vmem:[%s2932 + $0x64] sm:$0xf]
        %v2959 = vld [vmem:[%s2932 + $0x68] sm:$0xf]
        %v2960 = vld [vmem:[%s2932 + $0x6c] sm:$0xf]
        %v2961 = vld [vmem:[%s2932 + $0x70] sm:$0xf]
        %v2962 = vld [vmem:[%s2932 + $0x74] sm:$0xf]
        %v2963 = vld [vmem:[%s2932 + $0x78] sm:$0xf]
        %v2964 = vld [vmem:[%s2932 + $0x7c] sm:$0xf]
        %v2965 = vld [vmem:[%s2932 + $0x80] sm:$0xf]
        %v2966 = vld [vmem:[%s2932 + $0x84] sm:$0xf]
        %v2967 = vld [vmem:[%s2932 + $0x88] sm:$0xf]
        %v2968 = vld [vmem:[%s2932 + $0x8c] sm:$0xf]
        %v2969 = vld [vmem:[%s2932 + $0x90] sm:$0xf]
        %v2970 = vld [vmem:[%s2932 + $0x94] sm:$0xf]
        %v2971 = vld [vmem:[%s2932 + $0x98] sm:$0xf]
        %v2972 = vld [vmem:[%s2932 + $0x9c] sm:$0xf]
        %v2973 = vld [vmem:[%s2932 + $0xa0] sm:$0xf]
        %v2974 = vld [vmem:[%s2932 + $0xa4] sm:$0xf]
        %v2975 = vld [vmem:[%s2932 + $0xa8] sm:$0xf]
        %v2976 = vld [vmem:[%s2932 + $0xac] sm:$0xf]
        %v2977 = vld [vmem:[%s2932 + $0xb0] sm:$0xf]
        %v2978 = vld [vmem:[%s2932 + $0xb4] sm:$0xf]
        %v2979 = vld [vmem:[%s2932 + $0xb8] sm:$0xf]
        %v2980 = vld [vmem:[%s2932 + $0xbc] sm:$0xf]
        %v3029 = vunpack.c.l.b16 %v2933
        %v3030 = vunpack.c.l.b16 %v2934
        %v3031 = vunpack.c.l.b16 %v2935
        %v3032 = vunpack.c.l.b16 %v2936
        %v3033 = vunpack.c.l.b16 %v2937
        %v3034 = vunpack.c.l.b16 %v2938
        %v3035 = vunpack.c.l.b16 %v2939
        %v3036 = vunpack.c.l.b16 %v2940
        %v3037 = vunpack.c.l.b16 %v2941
        %v3038 = vunpack.c.l.b16 %v2942
        %v3039 = vunpack.c.l.b16 %v2943
        %v3040 = vunpack.c.l.b16 %v2944
        %v3041 = vunpack.c.l.b16 %v2945
        %v3042 = vunpack.c.l.b16 %v2946
        %v3043 = vunpack.c.l.b16 %v2947
        %v3044 = vunpack.c.l.b16 %v2948
        %v3045 = vunpack.c.l.b16 %v2949
        %v3046 = vunpack.c.l.b16 %v2950
        %v3047 = vunpack.c.l.b16 %v2951
        %v3048 = vunpack.c.l.b16 %v2952
        %v3049 = vunpack.c.l.b16 %v2953
        %v3050 = vunpack.c.l.b16 %v2954
        %v3051 = vunpack.c.l.b16 %v2955
        %v3052 = vunpack.c.l.b16 %v2956
        %v3053 = vunpack.c.l.b16 %v2957
        %v3054 = vunpack.c.l.b16 %v2958
        %v3055 = vunpack.c.l.b16 %v2959
        %v3056 = vunpack.c.l.b16 %v2960
        %v3057 = vunpack.c.l.b16 %v2961
        %v3058 = vunpack.c.l.b16 %v2962
        %v3059 = vunpack.c.l.b16 %v2963
        %v3060 = vunpack.c.l.b16 %v2964
        %v3061 = vunpack.c.l.b16 %v2965
        %v3062 = vunpack.c.l.b16 %v2966
        %v3063 = vunpack.c.l.b16 %v2967
        %v3064 = vunpack.c.l.b16 %v2968
        %v3065 = vunpack.c.l.b16 %v2969
        %v3066 = vunpack.c.l.b16 %v2970
        %v3067 = vunpack.c.l.b16 %v2971
        %v3068 = vunpack.c.l.b16 %v2972
        %v3069 = vunpack.c.l.b16 %v2973
        %v3070 = vunpack.c.l.b16 %v2974
        %v3071 = vunpack.c.l.b16 %v2975
        %v3072 = vunpack.c.l.b16 %v2976
        %v3073 = vunpack.c.l.b16 %v2977
        %v3074 = vunpack.c.l.b16 %v2978
        %v3075 = vunpack.c.l.b16 %v2979
        %v3076 = vunpack.c.l.b16 %v2980
        %v3077 = vpack.c.b16 %v3030, %v3029
        %v3078 = vpack.c.b16 %v3032, %v3031
        %v3079 = vpack.c.b16 %v3034, %v3033
        %v3080 = vpack.c.b16 %v3036, %v3035
        %v3081 = vpack.c.b16 %v3038, %v3037
        %v3082 = vpack.c.b16 %v3040, %v3039
        %v3083 = vpack.c.b16 %v3042, %v3041
        %v3084 = vpack.c.b16 %v3044, %v3043
        %v3085 = vpack.c.b16 %v3046, %v3045
        %v3086 = vpack.c.b16 %v3048, %v3047
        %v3087 = vpack.c.b16 %v3050, %v3049
        %v3088 = vpack.c.b16 %v3052, %v3051
        %v3089 = vpack.c.b16 %v3054, %v3053
        %v3090 = vpack.c.b16 %v3056, %v3055
        %v3091 = vpack.c.b16 %v3058, %v3057
        %v3092 = vpack.c.b16 %v3060, %v3059
        %v3093 = vpack.c.b16 %v3062, %v3061
        %v3094 = vpack.c.b16 %v3064, %v3063
        %v3095 = vpack.c.b16 %v3066, %v3065
        %v3096 = vpack.c.b16 %v3068, %v3067
        %v3097 = vpack.c.b16 %v3070, %v3069
        %v3098 = vpack.c.b16 %v3072, %v3071
        %v3099 = vpack.c.b16 %v3074, %v3073
        %v3100 = vpack.c.b16 %v3076, %v3075
        %3125 = vmatprep.subr.bf16.mxu0 0
        %3126 = vmatpush1.bf16.msra.mxu0 %v3077
        %3127 = vmatprep.subr.bf16.mxu0 0
        %3128 = vmatpush1.bf16.msra.mxu0 %v3078
        %3129 = vmatprep.subr.bf16.mxu0 0
        %3130 = vmatpush1.bf16.msra.mxu0 %v3079
        %3131 = vmatprep.subr.bf16.mxu0 0
        %3132 = vmatpush1.bf16.msra.mxu0 %v3080
        %3133 = vmatprep.subr.bf16.mxu0 0
        %3134 = vmatpush1.bf16.msra.mxu0 %v3081
        %3135 = vmatprep.subr.bf16.mxu0 0
        %3136 = vmatpush1.bf16.msra.mxu0 %v3082
        %3137 = vmatprep.subr.bf16.mxu0 0
        %3138 = vmatpush1.bf16.msra.mxu0 %v3083
        %3139 = vmatprep.subr.bf16.mxu0 0
        %3140 = vmatpush1.bf16.msra.mxu0 %v3084
        %3141 = vmatprep.subr.bf16.mxu0 0
        %3142 = vmatpush1.bf16.msra.mxu0 %v3085
        %3143 = vmatprep.subr.bf16.mxu0 0
        %3144 = vmatpush1.bf16.msra.mxu0 %v3086
        %3145 = vmatprep.subr.bf16.mxu0 0
        %3146 = vmatpush1.bf16.msra.mxu0 %v3087
        %3147 = vmatprep.subr.bf16.mxu0 0
        %3148 = vmatpush1.bf16.msra.mxu0 %v3088
        %3149 = vmatprep.subr.bf16.mxu0 0
        %3150 = vmatpush1.bf16.msra.mxu0 %v3089
        %3151 = vmatprep.subr.bf16.mxu0 0
        %3152 = vmatpush1.bf16.msra.mxu0 %v3090
        %3153 = vmatprep.subr.bf16.mxu0 0
        %3154 = vmatpush1.bf16.msra.mxu0 %v3091
        %3155 = vmatprep.subr.bf16.mxu0 0
        %3156 = vmatpush1.bf16.msra.mxu0 %v3092
        %3157 = vmatprep.mubr.bf16.mxu0 %v2885
        %3158 = vmatmul.mubr.bf16.gmra.mrb[0].mxu0 %v2884
        %v3159 = vpop.f32.mrb[0].mxu0
        %v3160 = vadd.f32 0.0, %v3159
        %v3161 = vpop.f32.mrb[0].mxu0
        %v3162 = vpop.f32.mrb[0].mxu0
        %v3163 = vadd.f32 0.0, %v3162
        %v3164 = vpop.f32.mrb[0].mxu0
        %3165 = vmatprep.mubr.bf16.mxu0 %v2888
        %3166 = vmatmul.mubr.bf16.gmra.mrb[0].mxu0 %v2887
        %v3167 = vpop.f32.mrb[0].mxu0
        %v3168 = vadd.f32 0.0, %v3167
        %v3169 = vpop.f32.mrb[0].mxu0
        %v3170 = vpop.f32.mrb[0].mxu0
        %v3171 = vadd.f32 0.0, %v3170
        %v3172 = vpop.f32.mrb[0].mxu0
        %3173 = vmatprep.mubr.bf16.mxu0 %v2891
        %3174 = vmatmul.mubr.bf16.gmra.mrb[0].mxu0 %v2890
        %v3175 = vpop.f32.mrb[0].mxu0
        %v3176 = vadd.f32 0.0, %v3175
        %v3177 = vpop.f32.mrb[0].mxu0
        %v3178 = vpop.f32.mrb[0].mxu0
        %v3179 = vadd.f32 0.0, %v3178
        %v3180 = vpop.f32.mrb[0].mxu0
        %3181 = vmatprep.mubr.bf16.mxu0 %v2894
        %3182 = vmatmul.mubr.bf16.gmra.mrb[0].mxu0 %v2893
        %v3183 = vpop.f32.mrb[0].mxu0
        %v3184 = vadd.f32 0.0, %v3183
        %v3185 = vpop.f32.mrb[0].mxu0
        %v3186 = vpop.f32.mrb[0].mxu0
        %v3187 = vadd.f32 0.0, %v3186
        %v3188 = vpop.f32.mrb[0].mxu0
        %3189 = vmatprep.mubr.bf16.mxu0 %v2897
        %3190 = vmatmul.mubr.bf16.gmra.mrb[0].mxu0 %v2896
        %v3191 = vpop.f32.mrb[0].mxu0
        %v3192 = vadd.f32 0.0, %v3191
        %v3193 = vpop.f32.mrb[0].mxu0
        %v3194 = vpop.f32.mrb[0].mxu0
        %v3195 = vadd.f32 0.0, %v3194
        %v3196 = vpop.f32.mrb[0].mxu0
        %3197 = vmatprep.mubr.bf16.mxu0 %v2900
        %3198 = vmatmul.mubr.bf16.gmra.mrb[0].mxu0 %v2899
        %v3199 = vpop.f32.mrb[0].mxu0
        %v3200 = vadd.f32 0.0, %v3199
        %v3201 = vpop.f32.mrb[0].mxu0
        %v3202 = vpop.f32.mrb[0].mxu0
        %v3203 = vadd.f32 0.0, %v3202
        %v3204 = vpop.f32.mrb[0].mxu0
        %3205 = vmatprep.mubr.bf16.mxu0 %v2903
        %3206 = vmatmul.mubr.bf16.gmra.mrb[0].mxu0 %v2902
        %v3207 = vpop.f32.mrb[0].mxu0
        %v3208 = vadd.f32 0.0, %v3207
        %v3209 = vpop.f32.mrb[0].mxu0
        %v3210 = vpop.f32.mrb[0].mxu0
        %v3211 = vadd.f32 0.0, %v3210
        %v3212 = vpop.f32.mrb[0].mxu0
        %3213 = vmatprep.mubr.bf16.mxu0 %v2906
        %3214 = vmatmul.mubr.bf16.gmra.mrb[0].mxu0 %v2905
        %v3215 = vpop.f32.mrb[0].mxu0
        %v3216 = vadd.f32 0.0, %v3215
        %v3217 = vpop.f32.mrb[0].mxu0
        %v3218 = vpop.f32.mrb[0].mxu0
        %v3219 = vadd.f32 0.0, %v3218
        %v3220 = vpop.f32.mrb[0].mxu0
        %3221 = vmatprep.mubr.bf16.mxu0 %v2909
        %3222 = vmatmul.mubr.bf16.gmra.mrb[0].mxu0 %v2908
        %v3223 = vpop.f32.mrb[0].mxu0
        %v3224 = vadd.f32 0.0, %v3223
        %v3225 = vpop.f32.mrb[0].mxu0
        %v3226 = vpop.f32.mrb[0].mxu0
        %v3227 = vadd.f32 0.0, %v3226
        %v3228 = vpop.f32.mrb[0].mxu0
        %3229 = vmatprep.mubr.bf16.mxu0 %v2912
        %3230 = vmatmul.mubr.bf16.gmra.mrb[0].mxu0 %v2911
        %v3231 = vpop.f32.mrb[0].mxu0
        %v3232 = vadd.f32 0.0, %v3231
        %v3233 = vpop.f32.mrb[0].mxu0
        %v3234 = vpop.f32.mrb[0].mxu0
        %v3235 = vadd.f32 0.0, %v3234
        %v3236 = vpop.f32.mrb[0].mxu0
        %3237 = vmatprep.mubr.bf16.mxu0 %v2915
        %3238 = vmatmul.mubr.bf16.gmra.mrb[0].mxu0 %v2914
        %v3239 = vpop.f32.mrb[0].mxu0
        %v3240 = vadd.f32 0.0, %v3239
        %v3241 = vpop.f32.mrb[0].mxu0
        %v3242 = vpop.f32.mrb[0].mxu0
        %v3243 = vadd.f32 0.0, %v3242
        %v3244 = vpop.f32.mrb[0].mxu0
        %3245 = vmatprep.mubr.bf16.mxu0 %v2918
        %3246 = vmatmul.mubr.bf16.gmra.mrb[0].mxu0 %v2917
        %v3247 = vpop.f32.mrb[0].mxu0
        %v3248 = vadd.f32 0.0, %v3247
        %v3249 = vpop.f32.mrb[0].mxu0
        %v3250 = vpop.f32.mrb[0].mxu0
        %v3251 = vadd.f32 0.0, %v3250
        %v3252 = vpop.f32.mrb[0].mxu0
        %3253 = vmatprep.mubr.bf16.mxu0 %v2921
        %3254 = vmatmul.mubr.bf16.gmra.mrb[0].mxu0 %v2920
        %v3255 = vpop.f32.mrb[0].mxu0
        %v3256 = vadd.f32 0.0, %v3255
        %v3257 = vpop.f32.mrb[0].mxu0
        %v3258 = vpop.f32.mrb[0].mxu0
        %v3259 = vadd.f32 0.0, %v3258
        %v3260 = vpop.f32.mrb[0].mxu0
        %3261 = vmatprep.mubr.bf16.mxu0 %v2924
        %3262 = vmatmul.mubr.bf16.gmra.mrb[0].mxu0 %v2923
        %v3263 = vpop.f32.mrb[0].mxu0
        %v3264 = vadd.f32 0.0, %v3263
        %v3265 = vpop.f32.mrb[0].mxu0
        %v3266 = vpop.f32.mrb[0].mxu0
        %v3267 = vadd.f32 0.0, %v3266
        %v3268 = vpop.f32.mrb[0].mxu0
        %3269 = vmatprep.mubr.bf16.mxu0 %v2927
        %3270 = vmatmul.mubr.bf16.gmra.mrb[0].mxu0 %v2926
        %v3271 = vpop.f32.mrb[0].mxu0
        %v3272 = vadd.f32 0.0, %v3271
        %v3273 = vpop.f32.mrb[0].mxu0
        %v3274 = vpop.f32.mrb[0].mxu0
        %v3275 = vadd.f32 0.0, %v3274
        %v3276 = vpop.f32.mrb[0].mxu0
        %3277 = vmatprep.mubr.bf16.mxu0 %v2930
        %3278 = vmatmul.mubr.bf16.gmra.mrb[0].mxu0 %v2929
        %v3279 = vpop.f32.mrb[0].mxu0
        %v3280 = vadd.f32 0.0, %v3279
        %v3281 = vpop.f32.mrb[0].mxu0
        %v3282 = vpop.f32.mrb[0].mxu0
        %v3283 = vadd.f32 0.0, %v3282
        %v3284 = vpop.f32.mrb[0].mxu0
        %3285 = vdwg.mxu0
        %3286 = vmatprep.subr.bf16.mxu0 0
        %3287 = vmatpush1.bf16.msra.mxu0 %v3093
        %3288 = vmatprep.subr.bf16.mxu0 0
        %3289 = vmatpush1.bf16.msra.mxu0 %v3094
        %3290 = vmatprep.subr.bf16.mxu0 0
        %3291 = vmatpush1.bf16.msra.mxu0 %v3095
        %3292 = vmatprep.subr.bf16.mxu0 0
        %3293 = vmatpush1.bf16.msra.mxu0 %v3096
        %3294 = vmatprep.subr.bf16.mxu0 0
        %3295 = vmatpush1.bf16.msra.mxu0 %v3097
        %3296 = vmatprep.subr.bf16.mxu0 0
        %3297 = vmatpush1.bf16.msra.mxu0 %v3098
        %3298 = vmatprep.subr.bf16.mxu0 0
        %3299 = vmatpush1.bf16.msra.mxu0 %v3099
        %3300 = vmatprep.subr.bf16.mxu0 0
        %3301 = vmatpush1.bf16.msra.mxu0 %v3100
        %3302 = vmatprep.subr.bf16.mxu0 0
        %3303 = vmatpush1.bf16.msra.mxu0 0
        %3304 = vmatprep.subr.bf16.mxu0 0
        %3305 = vmatpush1.bf16.msra.mxu0 0
        %3306 = vmatprep.subr.bf16.mxu0 0
        %3307 = vmatpush1.bf16.msra.mxu0 0
        %3308 = vmatprep.subr.bf16.mxu0 0
        %3309 = vmatpush1.bf16.msra.mxu0 0
        %3310 = vmatprep.subr.bf16.mxu0 0
        %3311 = vmatpush1.bf16.msra.mxu0 0
        %3312 = vmatprep.subr.bf16.mxu0 0
        %3313 = vmatpush1.bf16.msra.mxu0 0
        %3314 = vmatprep.subr.bf16.mxu0 0
        %3315 = vmatpush1.bf16.msra.mxu0 0
        %3316 = vmatprep.subr.bf16.mxu0 0
        %3317 = vmatpush1.bf16.msra.mxu0 0
        %3318 = vmatprep.mubr.bf16.mxu0 0
        %3319 = vmatmul.mubr.bf16.gmra.mrb[0].mxu0 %v2886
        %v3320 = vpop.f32.mrb[0].mxu0
        %v3321 = vadd.f32 %v3160, %v3320
        %v3322 = vpop.f32.mrb[0].mxu0
        %v3323 = vpop.f32.mrb[0].mxu0
        %v3324 = vadd.f32 %v3163, %v3323
        %v3325 = vpop.f32.mrb[0].mxu0
        %3326 = vmatprep.mubr.bf16.mxu0 0
        %3327 = vmatmul.mubr.bf16.gmra.mrb[0].mxu0 %v2889
        %v3328 = vpop.f32.mrb[0].mxu0
        %v3329 = vadd.f32 %v3168, %v3328
        %v3330 = vpop.f32.mrb[0].mxu0
        %v3331 = vpop.f32.mrb[0].mxu0
        %v3332 = vadd.f32 %v3171, %v3331
        %v3333 = vpop.f32.mrb[0].mxu0
        %3334 = vmatprep.mubr.bf16.mxu0 0
        %3335 = vmatmul.mubr.bf16.gmra.mrb[0].mxu0 %v2892
        %v3336 = vpop.f32.mrb[0].mxu0
        %v3337 = vadd.f32 %v3176, %v3336
        %v3338 = vpop.f32.mrb[0].mxu0
        %v3339 = vpop.f32.mrb[0].mxu0
        %v3340 = vadd.f32 %v3179, %v3339
        %v3341 = vpop.f32.mrb[0].mxu0
        %3342 = vmatprep.mubr.bf16.mxu0 0
        %3343 = vmatmul.mubr.bf16.gmra.mrb[0].mxu0 %v2895
        %v3344 = vpop.f32.mrb[0].mxu0
        %v3345 = vadd.f32 %v3184, %v3344
        %v3346 = vpop.f32.mrb[0].mxu0
        %v3347 = vpop.f32.mrb[0].mxu0
        %v3348 = vadd.f32 %v3187, %v3347
        %v3349 = vpop.f32.mrb[0].mxu0
        %3350 = vmatprep.mubr.bf16.mxu0 0
        %3351 = vmatmul.mubr.bf16.gmra.mrb[0].mxu0 %v2898
        %v3352 = vpop.f32.mrb[0].mxu0
        %v3353 = vadd.f32 %v3192, %v3352
        %v3354 = vpop.f32.mrb[0].mxu0
        %v3355 = vpop.f32.mrb[0].mxu0
        %v3356 = vadd.f32 %v3195, %v3355
        %v3357 = vpop.f32.mrb[0].mxu0
        %3358 = vmatprep.mubr.bf16.mxu0 0
        %3359 = vmatmul.mubr.bf16.gmra.mrb[0].mxu0 %v2901
        %v3360 = vpop.f32.mrb[0].mxu0
        %v3361 = vadd.f32 %v3200, %v3360
        %v3362 = vpop.f32.mrb[0].mxu0
        %v3363 = vpop.f32.mrb[0].mxu0
        %v3364 = vadd.f32 %v3203, %v3363
        %v3365 = vpop.f32.mrb[0].mxu0
        %3366 = vmatprep.mubr.bf16.mxu0 0
        %3367 = vmatmul.mubr.bf16.gmra.mrb[0].mxu0 %v2904
        %v3368 = vpop.f32.mrb[0].mxu0
        %v3369 = vadd.f32 %v3208, %v3368
        %v3370 = vpop.f32.mrb[0].mxu0
        %v3371 = vpop.f32.mrb[0].mxu0
        %v3372 = vadd.f32 %v3211, %v3371
        %v3373 = vpop.f32.mrb[0].mxu0
        %3374 = vmatprep.mubr.bf16.mxu0 0
        %3375 = vmatmul.mubr.bf16.gmra.mrb[0].mxu0 %v2907
        %v3376 = vpop.f32.mrb[0].mxu0
        %v3377 = vadd.f32 %v3216, %v3376
        %v3378 = vpop.f32.mrb[0].mxu0
        %v3379 = vpop.f32.mrb[0].mxu0
        %v3380 = vadd.f32 %v3219, %v3379
        %v3381 = vpop.f32.mrb[0].mxu0
        %3382 = vmatprep.mubr.bf16.mxu0 0
        %3383 = vmatmul.mubr.bf16.gmra.mrb[0].mxu0 %v2910
        %v3384 = vpop.f32.mrb[0].mxu0
        %v3385 = vadd.f32 %v3224, %v3384
        %v3386 = vpop.f32.mrb[0].mxu0
        %v3387 = vpop.f32.mrb[0].mxu0
        %v3388 = vadd.f32 %v3227, %v3387
        %v3389 = vpop.f32.mrb[0].mxu0
        %3390 = vmatprep.mubr.bf16.mxu0 0
        %3391 = vmatmul.mubr.bf16.gmra.mrb[0].mxu0 %v2913
        %v3392 = vpop.f32.mrb[0].mxu0
        %v3393 = vadd.f32 %v3232, %v3392
        %v3394 = vpop.f32.mrb[0].mxu0
        %v3395 = vpop.f32.mrb[0].mxu0
        %v3396 = vadd.f32 %v3235, %v3395
        %v3397 = vpop.f32.mrb[0].mxu0
        %3398 = vmatprep.mubr.bf16.mxu0 0
        %3399 = vmatmul.mubr.bf16.gmra.mrb[0].mxu0 %v2916
        %v3400 = vpop.f32.mrb[0].mxu0
        %v3401 = vadd.f32 %v3240, %v3400
        %v3402 = vpop.f32.mrb[0].mxu0
        %v3403 = vpop.f32.mrb[0].mxu0
        %v3404 = vadd.f32 %v3243, %v3403
        %v3405 = vpop.f32.mrb[0].mxu0
        %3406 = vmatprep.mubr.bf16.mxu0 0
        %3407 = vmatmul.mubr.bf16.gmra.mrb[0].mxu0 %v2919
        %v3408 = vpop.f32.mrb[0].mxu0
        %v3409 = vadd.f32 %v3248, %v3408
        %v3410 = vpop.f32.mrb[0].mxu0
        %v3411 = vpop.f32.mrb[0].mxu0
        %v3412 = vadd.f32 %v3251, %v3411
        %v3413 = vpop.f32.mrb[0].mxu0
        %3414 = vmatprep.mubr.bf16.mxu0 0
        %3415 = vmatmul.mubr.bf16.gmra.mrb[0].mxu0 %v2922
        %v3416 = vpop.f32.mrb[0].mxu0
        %v3417 = vadd.f32 %v3256, %v3416
        %v3418 = vpop.f32.mrb[0].mxu0
        %v3419 = vpop.f32.mrb[0].mxu0
        %v3420 = vadd.f32 %v3259, %v3419
        %v3421 = vpop.f32.mrb[0].mxu0
        %3422 = vmatprep.mubr.bf16.mxu0 0
        %3423 = vmatmul.mubr.bf16.gmra.mrb[0].mxu0 %v2925
        %v3424 = vpop.f32.mrb[0].mxu0
        %v3425 = vadd.f32 %v3264, %v3424
        %v3426 = vpop.f32.mrb[0].mxu0
        %v3427 = vpop.f32.mrb[0].mxu0
        %v3428 = vadd.f32 %v3267, %v3427
        %v3429 = vpop.f32.mrb[0].mxu0
        %3430 = vmatprep.mubr.bf16.mxu0 0
        %3431 = vmatmul.mubr.bf16.gmra.mrb[0].mxu0 %v2928
        %v3432 = vpop.f32.mrb[0].mxu0
        %v3433 = vadd.f32 %v3272, %v3432
        %v3434 = vpop.f32.mrb[0].mxu0
        %v3435 = vpop.f32.mrb[0].mxu0
        %v3436 = vadd.f32 %v3275, %v3435
        %v3437 = vpop.f32.mrb[0].mxu0
        %3438 = vmatprep.mubr.bf16.mxu0 0
        %3439 = vmatmul.mubr.bf16.gmra.mrb[0].mxu0 %v2931
        %v3440 = vpop.f32.mrb[0].mxu0
        %v3441 = vadd.f32 %v3280, %v3440
        %v3442 = vpop.f32.mrb[0].mxu0
        %v3443 = vpop.f32.mrb[0].mxu0
        %v3444 = vadd.f32 %v3283, %v3443
        %v3445 = vpop.f32.mrb[0].mxu0
        %3446 = vdwg.mxu0
        %v3495 = vunpack.c.l.b16 %v2836
        %v3496 = vunpack.c.l.b16 %v2837
        %v3497 = vunpack.c.l.b16 %v2838
        %v3498 = vunpack.c.l.b16 %v2839
        %v3499 = vunpack.c.l.b16 %v2840
        %v3500 = vunpack.c.l.b16 %v2841
        %v3501 = vunpack.c.l.b16 %v2842
        %v3502 = vunpack.c.l.b16 %v2843
        %v3503 = vunpack.c.l.b16 %v2844
        %v3504 = vunpack.c.l.b16 %v2845
        %v3505 = vunpack.c.l.b16 %v2846
        %v3506 = vunpack.c.l.b16 %v2847
        %v3507 = vunpack.c.l.b16 %v2848
        %v3508 = vunpack.c.l.b16 %v2849
        %v3509 = vunpack.c.l.b16 %v2850
        %v3510 = vunpack.c.l.b16 %v2851
        %v3511 = vunpack.c.l.b16 %v2852
        %v3512 = vunpack.c.l.b16 %v2853
        %v3513 = vunpack.c.l.b16 %v2854
        %v3514 = vunpack.c.l.b16 %v2855
        %v3515 = vunpack.c.l.b16 %v2856
        %v3516 = vunpack.c.l.b16 %v2857
        %v3517 = vunpack.c.l.b16 %v2858
        %v3518 = vunpack.c.l.b16 %v2859
        %v3519 = vunpack.c.l.b16 %v2860
        %v3520 = vunpack.c.l.b16 %v2861
        %v3521 = vunpack.c.l.b16 %v2862
        %v3522 = vunpack.c.l.b16 %v2863
        %v3523 = vunpack.c.l.b16 %v2864
        %v3524 = vunpack.c.l.b16 %v2865
        %v3525 = vunpack.c.l.b16 %v2866
        %v3526 = vunpack.c.l.b16 %v2867
        %v3527 = vunpack.c.l.b16 %v2868
        %v3528 = vunpack.c.l.b16 %v2869
        %v3529 = vunpack.c.l.b16 %v2870
        %v3530 = vunpack.c.l.b16 %v2871
        %v3531 = vunpack.c.l.b16 %v2872
        %v3532 = vunpack.c.l.b16 %v2873
        %v3533 = vunpack.c.l.b16 %v2874
        %v3534 = vunpack.c.l.b16 %v2875
        %v3535 = vunpack.c.l.b16 %v2876
        %v3536 = vunpack.c.l.b16 %v2877
        %v3537 = vunpack.c.l.b16 %v2878
        %v3538 = vunpack.c.l.b16 %v2879
        %v3539 = vunpack.c.l.b16 %v2880
        %v3540 = vunpack.c.l.b16 %v2881
        %v3541 = vunpack.c.l.b16 %v2882
        %v3542 = vunpack.c.l.b16 %v2883
        %v3543 = vpack.c.b16 %v3496, %v3495
        %v3544 = vpack.c.b16 %v3498, %v3497
        %v3545 = vpack.c.b16 %v3500, %v3499
        %v3546 = vpack.c.b16 %v3502, %v3501
        %v3547 = vpack.c.b16 %v3504, %v3503
        %v3548 = vpack.c.b16 %v3506, %v3505
        %v3549 = vpack.c.b16 %v3508, %v3507
        %v3550 = vpack.c.b16 %v3510, %v3509
        %v3551 = vpack.c.b16 %v3512, %v3511
        %v3552 = vpack.c.b16 %v3514, %v3513
        %v3553 = vpack.c.b16 %v3516, %v3515
        %v3554 = vpack.c.b16 %v3518, %v3517
        %v3555 = vpack.c.b16 %v3520, %v3519
        %v3556 = vpack.c.b16 %v3522, %v3521
        %v3557 = vpack.c.b16 %v3524, %v3523
        %v3558 = vpack.c.b16 %v3526, %v3525
        %v3559 = vpack.c.b16 %v3528, %v3527
        %v3560 = vpack.c.b16 %v3530, %v3529
        %v3561 = vpack.c.b16 %v3532, %v3531
        %v3562 = vpack.c.b16 %v3534, %v3533
        %v3563 = vpack.c.b16 %v3536, %v3535
        %v3564 = vpack.c.b16 %v3538, %v3537
        %v3565 = vpack.c.b16 %v3540, %v3539
        %v3566 = vpack.c.b16 %v3542, %v3541
        %3591 = vmatprep.subr.bf16.mxu0 0
        %3592 = vmatpush1.bf16.msra.mxu0 %v3543
        %3593 = vmatprep.subr.bf16.mxu0 0
        %3594 = vmatpush1.bf16.msra.mxu0 %v3544
        %3595 = vmatprep.subr.bf16.mxu0 0
        %3596 = vmatpush1.bf16.msra.mxu0 %v3545
        %3597 = vmatprep.subr.bf16.mxu0 0
        %3598 = vmatpush1.bf16.msra.mxu0 %v3546
        %3599 = vmatprep.subr.bf16.mxu0 0
        %3600 = vmatpush1.bf16.msra.mxu0 %v3547
        %3601 = vmatprep.subr.bf16.mxu0 0
        %3602 = vmatpush1.bf16.msra.mxu0 %v3548
        %3603 = vmatprep.subr.bf16.mxu0 0
        %3604 = vmatpush1.bf16.msra.mxu0 %v3549
        %3605 = vmatprep.subr.bf16.mxu0 0
        %3606 = vmatpush1.bf16.msra.mxu0 %v3550
        %3607 = vmatprep.subr.bf16.mxu0 0
        %3608 = vmatpush1.bf16.msra.mxu0 %v3551
        %3609 = vmatprep.subr.bf16.mxu0 0
        %3610 = vmatpush1.bf16.msra.mxu0 %v3552
        %3611 = vmatprep.subr.bf16.mxu0 0
        %3612 = vmatpush1.bf16.msra.mxu0 %v3553
        %3613 = vmatprep.subr.bf16.mxu0 0
        %3614 = vmatpush1.bf16.msra.mxu0 %v3554
        %3615 = vmatprep.subr.bf16.mxu0 0
        %3616 = vmatpush1.bf16.msra.mxu0 %v3555
        %3617 = vmatprep.subr.bf16.mxu0 0
        %3618 = vmatpush1.bf16.msra.mxu0 %v3556
        %3619 = vmatprep.subr.bf16.mxu0 0
        %3620 = vmatpush1.bf16.msra.mxu0 %v3557
        %3621 = vmatprep.subr.bf16.mxu0 0
        %3622 = vmatpush1.bf16.msra.mxu0 %v3558
        %3623 = vmatprep.mubr.bf16.mxu0 %v2789
        %3624 = vmatmul.mubr.bf16.gmra.mrb[0].mxu0 %v2788
        %v3625 = vpop.f32.mrb[0].mxu0
        %v3626 = vadd.f32 %v3321, %v3625
        %v3627 = vpop.f32.mrb[0].mxu0
        %v3628 = vpop.f32.mrb[0].mxu0
        %v3629 = vadd.f32 %v3324, %v3628
        %v3630 = vpop.f32.mrb[0].mxu0
        %3631 = vmatprep.mubr.bf16.mxu0 %v2792
        %3632 = vmatmul.mubr.bf16.gmra.mrb[0].mxu0 %v2791
        %v3633 = vpop.f32.mrb[0].mxu0
        %v3634 = vadd.f32 %v3329, %v3633
        %v3635 = vpop.f32.mrb[0].mxu0
        %v3636 = vpop.f32.mrb[0].mxu0
        %v3637 = vadd.f32 %v3332, %v3636
        %v3638 = vpop.f32.mrb[0].mxu0
        %3639 = vmatprep.mubr.bf16.mxu0 %v2795
        %3640 = vmatmul.mubr.bf16.gmra.mrb[0].mxu0 %v2794
        %v3641 = vpop.f32.mrb[0].mxu0
        %v3642 = vadd.f32 %v3337, %v3641
        %v3643 = vpop.f32.mrb[0].mxu0
        %v3644 = vpop.f32.mrb[0].mxu0
        %v3645 = vadd.f32 %v3340, %v3644
        %v3646 = vpop.f32.mrb[0].mxu0
        %3647 = vmatprep.mubr.bf16.mxu0 %v2798
        %3648 = vmatmul.mubr.bf16.gmra.mrb[0].mxu0 %v2797
        %v3649 = vpop.f32.mrb[0].mxu0
        %v3650 = vadd.f32 %v3345, %v3649
        %v3651 = vpop.f32.mrb[0].mxu0
        %v3652 = vpop.f32.mrb[0].mxu0
        %v3653 = vadd.f32 %v3348, %v3652
        %v3654 = vpop.f32.mrb[0].mxu0
        %3655 = vmatprep.mubr.bf16.mxu0 %v2801
        %3656 = vmatmul.mubr.bf16.gmra.mrb[0].mxu0 %v2800
        %v3657 = vpop.f32.mrb[0].mxu0
        %v3658 = vadd.f32 %v3353, %v3657
        %v3659 = vpop.f32.mrb[0].mxu0
        %v3660 = vpop.f32.mrb[0].mxu0
        %v3661 = vadd.f32 %v3356, %v3660
        %v3662 = vpop.f32.mrb[0].mxu0
        %3663 = vmatprep.mubr.bf16.mxu0 %v2804
        %3664 = vmatmul.mubr.bf16.gmra.mrb[0].mxu0 %v2803
        %v3665 = vpop.f32.mrb[0].mxu0
        %v3666 = vadd.f32 %v3361, %v3665
        %v3667 = vpop.f32.mrb[0].mxu0
        %v3668 = vpop.f32.mrb[0].mxu0
        %v3669 = vadd.f32 %v3364, %v3668
        %v3670 = vpop.f32.mrb[0].mxu0
        %3671 = vmatprep.mubr.bf16.mxu0 %v2807
        %3672 = vmatmul.mubr.bf16.gmra.mrb[0].mxu0 %v2806
        %v3673 = vpop.f32.mrb[0].mxu0
        %v3674 = vadd.f32 %v3369, %v3673
        %v3675 = vpop.f32.mrb[0].mxu0
        %v3676 = vpop.f32.mrb[0].mxu0
        %v3677 = vadd.f32 %v3372, %v3676
        %v3678 = vpop.f32.mrb[0].mxu0
        %3679 = vmatprep.mubr.bf16.mxu0 %v2810
        %3680 = vmatmul.mubr.bf16.gmra.mrb[0].mxu0 %v2809
        %v3681 = vpop.f32.mrb[0].mxu0
        %v3682 = vadd.f32 %v3377, %v3681
        %v3683 = vpop.f32.mrb[0].mxu0
        %v3684 = vpop.f32.mrb[0].mxu0
        %v3685 = vadd.f32 %v3380, %v3684
        %v3686 = vpop.f32.mrb[0].mxu0
        %3687 = vmatprep.mubr.bf16.mxu0 %v2813
        %3688 = vmatmul.mubr.bf16.gmra.mrb[0].mxu0 %v2812
        %v3689 = vpop.f32.mrb[0].mxu0
        %v3690 = vadd.f32 %v3385, %v3689
        %v3691 = vpop.f32.mrb[0].mxu0
        %v3692 = vpop.f32.mrb[0].mxu0
        %v3693 = vadd.f32 %v3388, %v3692
        %v3694 = vpop.f32.mrb[0].mxu0
        %3695 = vmatprep.mubr.bf16.mxu0 %v2816
        %3696 = vmatmul.mubr.bf16.gmra.mrb[0].mxu0 %v2815
        %v3697 = vpop.f32.mrb[0].mxu0
        %v3698 = vadd.f32 %v3393, %v3697
        %v3699 = vpop.f32.mrb[0].mxu0
        %v3700 = vpop.f32.mrb[0].mxu0
        %v3701 = vadd.f32 %v3396, %v3700
        %v3702 = vpop.f32.mrb[0].mxu0
        %3703 = vmatprep.mubr.bf16.mxu0 %v2819
        %3704 = vmatmul.mubr.bf16.gmra.mrb[0].mxu0 %v2818
        %v3705 = vpop.f32.mrb[0].mxu0
        %v3706 = vadd.f32 %v3401, %v3705
        %v3707 = vpop.f32.mrb[0].mxu0
        %v3708 = vpop.f32.mrb[0].mxu0
        %v3709 = vadd.f32 %v3404, %v3708
        %v3710 = vpop.f32.mrb[0].mxu0
        %3711 = vmatprep.mubr.bf16.mxu0 %v2822
        %3712 = vmatmul.mubr.bf16.gmra.mrb[0].mxu0 %v2821
        %v3713 = vpop.f32.mrb[0].mxu0
        %v3714 = vadd.f32 %v3409, %v3713
        %v3715 = vpop.f32.mrb[0].mxu0
        %v3716 = vpop.f32.mrb[0].mxu0
        %v3717 = vadd.f32 %v3412, %v3716
        %v3718 = vpop.f32.mrb[0].mxu0
        %3719 = vmatprep.mubr.bf16.mxu0 %v2825
        %3720 = vmatmul.mubr.bf16.gmra.mrb[0].mxu0 %v2824
        %v3721 = vpop.f32.mrb[0].mxu0
        %v3722 = vadd.f32 %v3417, %v3721
        %v3723 = vpop.f32.mrb[0].mxu0
        %v3724 = vpop.f32.mrb[0].mxu0
        %v3725 = vadd.f32 %v3420, %v3724
        %v3726 = vpop.f32.mrb[0].mxu0
        %3727 = vmatprep.mubr.bf16.mxu0 %v2828
        %3728 = vmatmul.mubr.bf16.gmra.mrb[0].mxu0 %v2827
        %v3729 = vpop.f32.mrb[0].mxu0
        %v3730 = vadd.f32 %v3425, %v3729
        %v3731 = vpop.f32.mrb[0].mxu0
        %v3732 = vpop.f32.mrb[0].mxu0
        %v3733 = vadd.f32 %v3428, %v3732
        %v3734 = vpop.f32.mrb[0].mxu0
        %3735 = vmatprep.mubr.bf16.mxu0 %v2831
        %3736 = vmatmul.mubr.bf16.gmra.mrb[0].mxu0 %v2830
        %v3737 = vpop.f32.mrb[0].mxu0
        %v3738 = vadd.f32 %v3433, %v3737
        %v3739 = vpop.f32.mrb[0].mxu0
        %v3740 = vpop.f32.mrb[0].mxu0
        %v3741 = vadd.f32 %v3436, %v3740
        %v3742 = vpop.f32.mrb[0].mxu0
        %3743 = vmatprep.mubr.bf16.mxu0 %v2834
        %3744 = vmatmul.mubr.bf16.gmra.mrb[0].mxu0 %v2833
        %v3745 = vpop.f32.mrb[0].mxu0
        %v3746 = vadd.f32 %v3441, %v3745
        %v3747 = vpop.f32.mrb[0].mxu0
        %v3748 = vpop.f32.mrb[0].mxu0
        %v3749 = vadd.f32 %v3444, %v3748
        %v3750 = vpop.f32.mrb[0].mxu0
        %3751 = vdwg.mxu0
        %3752 = vmatprep.subr.bf16.mxu0 0
        %3753 = vmatpush1.bf16.msra.mxu0 %v3559
        %3754 = vmatprep.subr.bf16.mxu0 0
        %3755 = vmatpush1.bf16.msra.mxu0 %v3560
        %3756 = vmatprep.subr.bf16.mxu0 0
        %3757 = vmatpush1.bf16.msra.mxu0 %v3561
        %3758 = vmatprep.subr.bf16.mxu0 0
        %3759 = vmatpush1.bf16.msra.mxu0 %v3562
        %3760 = vmatprep.subr.bf16.mxu0 0
        %3761 = vmatpush1.bf16.msra.mxu0 %v3563
        %3762 = vmatprep.subr.bf16.mxu0 0
        %3763 = vmatpush1.bf16.msra.mxu0 %v3564
        %3764 = vmatprep.subr.bf16.mxu0 0
        %3765 = vmatpush1.bf16.msra.mxu0 %v3565
        %3766 = vmatprep.subr.bf16.mxu0 0
        %3767 = vmatpush1.bf16.msra.mxu0 %v3566
        %3768 = vmatprep.subr.bf16.mxu0 0
        %3769 = vmatpush1.bf16.msra.mxu0 0
        %3770 = vmatprep.subr.bf16.mxu0 0
        %3771 = vmatpush1.bf16.msra.mxu0 0
        %3772 = vmatprep.subr.bf16.mxu0 0
        %3773 = vmatpush1.bf16.msra.mxu0 0
        %3774 = vmatprep.subr.bf16.mxu0 0
        %3775 = vmatpush1.bf16.msra.mxu0 0
        %3776 = vmatprep.subr.bf16.mxu0 0
        %3777 = vmatpush1.bf16.msra.mxu0 0
        %3778 = vmatprep.subr.bf16.mxu0 0
        %3779 = vmatpush1.bf16.msra.mxu0 0
        %3780 = vmatprep.subr.bf16.mxu0 0
        %3781 = vmatpush1.bf16.msra.mxu0 0
        %3782 = vmatprep.subr.bf16.mxu0 0
        %3783 = vmatpush1.bf16.msra.mxu0 0
        %3784 = vmatprep.mubr.bf16.mxu0 0
        %3785 = vmatmul.mubr.bf16.gmra.mrb[0].mxu0 %v2790
        %v3786 = vpop.f32.mrb[0].mxu0
        %v3787 = vadd.f32 %v3626, %v3786
        %v3788 = vpop.f32.mrb[0].mxu0
        %v3789 = vpop.f32.mrb[0].mxu0
        %v3790 = vadd.f32 %v3629, %v3789
        %v3791 = vpop.f32.mrb[0].mxu0
        %3792 = vmatprep.mubr.bf16.mxu0 0
        %3793 = vmatmul.mubr.bf16.gmra.mrb[0].mxu0 %v2793
        %v3794 = vpop.f32.mrb[0].mxu0
        %v3795 = vadd.f32 %v3634, %v3794
        %v3796 = vpop.f32.mrb[0].mxu0
        %v3797 = vpop.f32.mrb[0].mxu0
        %v3798 = vadd.f32 %v3637, %v3797
        %v3799 = vpop.f32.mrb[0].mxu0
        %3800 = vmatprep.mubr.bf16.mxu0 0
        %3801 = vmatmul.mubr.bf16.gmra.mrb[0].mxu0 %v2796
        %v3802 = vpop.f32.mrb[0].mxu0
        %v3803 = vadd.f32 %v3642, %v3802
        %v3804 = vpop.f32.mrb[0].mxu0
        %v3805 = vpop.f32.mrb[0].mxu0
        %v3806 = vadd.f32 %v3645, %v3805
        %v3807 = vpop.f32.mrb[0].mxu0
        %3808 = vmatprep.mubr.bf16.mxu0 0
        %3809 = vmatmul.mubr.bf16.gmra.mrb[0].mxu0 %v2799
        %v3810 = vpop.f32.mrb[0].mxu0
        %v3811 = vadd.f32 %v3650, %v3810
        %v3812 = vpop.f32.mrb[0].mxu0
        %v3813 = vpop.f32.mrb[0].mxu0
        %v3814 = vadd.f32 %v3653, %v3813
        %v3815 = vpop.f32.mrb[0].mxu0
        %3816 = vmatprep.mubr.bf16.mxu0 0
        %3817 = vmatmul.mubr.bf16.gmra.mrb[0].mxu0 %v2802
        %v3818 = vpop.f32.mrb[0].mxu0
        %v3819 = vadd.f32 %v3658, %v3818
        %v3820 = vpop.f32.mrb[0].mxu0
        %v3821 = vpop.f32.mrb[0].mxu0
        %v3822 = vadd.f32 %v3661, %v3821
        %v3823 = vpop.f32.mrb[0].mxu0
        %3824 = vmatprep.mubr.bf16.mxu0 0
        %3825 = vmatmul.mubr.bf16.gmra.mrb[0].mxu0 %v2805
        %v3826 = vpop.f32.mrb[0].mxu0
        %v3827 = vadd.f32 %v3666, %v3826
        %v3828 = vpop.f32.mrb[0].mxu0
        %v3829 = vpop.f32.mrb[0].mxu0
        %v3830 = vadd.f32 %v3669, %v3829
        %v3831 = vpop.f32.mrb[0].mxu0
        %3832 = vmatprep.mubr.bf16.mxu0 0
        %3833 = vmatmul.mubr.bf16.gmra.mrb[0].mxu0 %v2808
        %v3834 = vpop.f32.mrb[0].mxu0
        %v3835 = vadd.f32 %v3674, %v3834
        %v3836 = vpop.f32.mrb[0].mxu0
        %v3837 = vpop.f32.mrb[0].mxu0
        %v3838 = vadd.f32 %v3677, %v3837
        %v3839 = vpop.f32.mrb[0].mxu0
        %3840 = vmatprep.mubr.bf16.mxu0 0
        %3841 = vmatmul.mubr.bf16.gmra.mrb[0].mxu0 %v2811
        %v3842 = vpop.f32.mrb[0].mxu0
        %v3843 = vadd.f32 %v3682, %v3842
        %v3844 = vpop.f32.mrb[0].mxu0
        %v3845 = vpop.f32.mrb[0].mxu0
        %v3846 = vadd.f32 %v3685, %v3845
        %v3847 = vpop.f32.mrb[0].mxu0
        %3848 = vmatprep.mubr.bf16.mxu0 0
        %3849 = vmatmul.mubr.bf16.gmra.mrb[0].mxu0 %v2814
        %v3850 = vpop.f32.mrb[0].mxu0
        %v3851 = vadd.f32 %v3690, %v3850
        %v3852 = vpop.f32.mrb[0].mxu0
        %v3853 = vpop.f32.mrb[0].mxu0
        %v3854 = vadd.f32 %v3693, %v3853
        %v3855 = vpop.f32.mrb[0].mxu0
        %3856 = vmatprep.mubr.bf16.mxu0 0
        %3857 = vmatmul.mubr.bf16.gmra.mrb[0].mxu0 %v2817
        %v3858 = vpop.f32.mrb[0].mxu0
        %v3859 = vadd.f32 %v3698, %v3858
        %v3860 = vpop.f32.mrb[0].mxu0
        %v3861 = vpop.f32.mrb[0].mxu0
        %v3862 = vadd.f32 %v3701, %v3861
        %v3863 = vpop.f32.mrb[0].mxu0
        %3864 = vmatprep.mubr.bf16.mxu0 0
        %3865 = vmatmul.mubr.bf16.gmra.mrb[0].mxu0 %v2820
        %v3866 = vpop.f32.mrb[0].mxu0
        %v3867 = vadd.f32 %v3706, %v3866
        %v3868 = vpop.f32.mrb[0].mxu0
        %v3869 = vpop.f32.mrb[0].mxu0
        %v3870 = vadd.f32 %v3709, %v3869
        %v3871 = vpop.f32.mrb[0].mxu0
        %3872 = vmatprep.mubr.bf16.mxu0 0
        %3873 = vmatmul.mubr.bf16.gmra.mrb[0].mxu0 %v2823
        %v3874 = vpop.f32.mrb[0].mxu0
        %v3875 = vadd.f32 %v3714, %v3874
        %v3876 = vpop.f32.mrb[0].mxu0
        %v3877 = vpop.f32.mrb[0].mxu0
        %v3878 = vadd.f32 %v3717, %v3877
        %v3879 = vpop.f32.mrb[0].mxu0
        %3880 = vmatprep.mubr.bf16.mxu0 0
        %3881 = vmatmul.mubr.bf16.gmra.mrb[0].mxu0 %v2826
        %v3882 = vpop.f32.mrb[0].mxu0
        %v3883 = vadd.f32 %v3722, %v3882
        %v3884 = vpop.f32.mrb[0].mxu0
        %v3885 = vpop.f32.mrb[0].mxu0
        %v3886 = vadd.f32 %v3725, %v3885
        %v3887 = vpop.f32.mrb[0].mxu0
        %3888 = vmatprep.mubr.bf16.mxu0 0
        %3889 = vmatmul.mubr.bf16.gmra.mrb[0].mxu0 %v2829
        %v3890 = vpop.f32.mrb[0].mxu0
        %v3891 = vadd.f32 %v3730, %v3890
        %v3892 = vpop.f32.mrb[0].mxu0
        %v3893 = vpop.f32.mrb[0].mxu0
        %v3894 = vadd.f32 %v3733, %v3893
        %v3895 = vpop.f32.mrb[0].mxu0
        %3896 = vmatprep.mubr.bf16.mxu0 0
        %3897 = vmatmul.mubr.bf16.gmra.mrb[0].mxu0 %v2832
        %v3898 = vpop.f32.mrb[0].mxu0
        %v3899 = vadd.f32 %v3738, %v3898
        %v3900 = vpop.f32.mrb[0].mxu0
        %v3901 = vpop.f32.mrb[0].mxu0
        %v3902 = vadd.f32 %v3741, %v3901
        %v3903 = vpop.f32.mrb[0].mxu0
        %3904 = vmatprep.mubr.bf16.mxu0 0
        %3905 = vmatmul.mubr.bf16.gmra.mrb[0].mxu0 %v2835
        %v3906 = vpop.f32.mrb[0].mxu0
        %v3907 = vadd.f32 %v3746, %v3906
        %v3908 = vpop.f32.mrb[0].mxu0
        %v3909 = vpop.f32.mrb[0].mxu0
        %v3910 = vadd.f32 %v3749, %v3909
        %v3911 = vpop.f32.mrb[0].mxu0
        %3912 = vdwg.mxu0
        %v3913 = vld [vmem:[%s1695] sm:$0xff]
        %v3914 = vld [vmem:[%s1695 + $0x8] sm:$0xff]
        %v3915 = vld [vmem:[%s1695 + $0x10] sm:$0xff]
        %v3916 = vld [vmem:[%s1695 + $0x18] sm:$0xff]
        %v3917 = vld [vmem:[%s1695 + $0x20] sm:$0xff]
        %v3918 = vld [vmem:[%s1695 + $0x28] sm:$0xff]
        %v3919 = vld [vmem:[%s1695 + $0x30] sm:$0xff]
        %v3920 = vld [vmem:[%s1695 + $0x38] sm:$0xff]
        %v3921 = vld [vmem:[%s1695 + $0x40] sm:$0xff]
        %v3922 = vld [vmem:[%s1695 + $0x48] sm:$0xff]
        %v3923 = vld [vmem:[%s1695 + $0x50] sm:$0xff]
        %v3924 = vld [vmem:[%s1695 + $0x58] sm:$0xff]
        %v3925 = vld [vmem:[%s1695 + $0x60] sm:$0xff]
        %v3926 = vld [vmem:[%s1695 + $0x68] sm:$0xff]
        %v3927 = vld [vmem:[%s1695 + $0x70] sm:$0xff]
        %v3928 = vld [vmem:[%s1695 + $0x78] sm:$0xff]
        %v3929 = vld [vmem:[%s1695 + $0x80] sm:$0xff]
        %v3930 = vld [vmem:[%s1695 + $0x88] sm:$0xff]
        %v3931 = vld [vmem:[%s1695 + $0x90] sm:$0xff]
        %v3932 = vld [vmem:[%s1695 + $0x98] sm:$0xff]
        %v3933 = vld [vmem:[%s1695 + $0xa0] sm:$0xff]
        %v3934 = vld [vmem:[%s1695 + $0xa8] sm:$0xff]
        %v3935 = vld [vmem:[%s1695 + $0xb0] sm:$0xff]
        %v3936 = vld [vmem:[%s1695 + $0xb8] sm:$0xff]
        %v3937 = vld [vmem:[%s1695 + $0xc0] sm:$0xff]
        %v3938 = vld [vmem:[%s1695 + $0xc8] sm:$0xff]
        %v3939 = vld [vmem:[%s1695 + $0xd0] sm:$0xff]
        %v3940 = vld [vmem:[%s1695 + $0xd8] sm:$0xff]
        %v3941 = vld [vmem:[%s1695 + $0xe0] sm:$0xff]
        %v3942 = vld [vmem:[%s1695 + $0xe8] sm:$0xff]
        %v3943 = vld [vmem:[%s1695 + $0xf0] sm:$0xff]
        %v3944 = vld [vmem:[%s1695 + $0xf8] sm:$0xff]
        %v3945 = vld [vmem:[%s1695 + $0x100] sm:$0xff]
        %v3946 = vld [vmem:[%s1695 + $0x108] sm:$0xff]
        %v3947 = vld [vmem:[%s1695 + $0x110] sm:$0xff]
        %v3948 = vld [vmem:[%s1695 + $0x118] sm:$0xff]
        %v3949 = vld [vmem:[%s1695 + $0x120] sm:$0xff]
        %v3950 = vld [vmem:[%s1695 + $0x128] sm:$0xff]
        %v3951 = vld [vmem:[%s1695 + $0x130] sm:$0xff]
        %v3952 = vld [vmem:[%s1695 + $0x138] sm:$0xff]
        %v3953 = vld [vmem:[%s1695 + $0x140] sm:$0xff]
        %v3954 = vld [vmem:[%s1695 + $0x148] sm:$0xff]
        %v3955 = vld [vmem:[%s1695 + $0x150] sm:$0xff]
        %v3956 = vld [vmem:[%s1695 + $0x158] sm:$0xff]
        %v3957 = vld [vmem:[%s1695 + $0x160] sm:$0xff]
        %v3958 = vld [vmem:[%s1695 + $0x168] sm:$0xff]
        %v3959 = vld [vmem:[%s1695 + $0x170] sm:$0xff]
        %v3960 = vld [vmem:[%s1695 + $0x178] sm:$0xff]
        %s3961 = scalar_lea.vmem [#allocation8], 384
        %v3962 = vld [vmem:[%s3961] sm:$0xf]
        %v3963 = vld [vmem:[%s3961 + $0x4] sm:$0xf]
        %v3964 = vld [vmem:[%s3961 + $0x8] sm:$0xf]
        %v3965 = vld [vmem:[%s3961 + $0xc] sm:$0xf]
        %v3966 = vld [vmem:[%s3961 + $0x10] sm:$0xf]
        %v3967 = vld [vmem:[%s3961 + $0x14] sm:$0xf]
        %v3968 = vld [vmem:[%s3961 + $0x18] sm:$0xf]
        %v3969 = vld [vmem:[%s3961 + $0x1c] sm:$0xf]
        %v3970 = vld [vmem:[%s3961 + $0x20] sm:$0xf]
        %v3971 = vld [vmem:[%s3961 + $0x24] sm:$0xf]
        %v3972 = vld [vmem:[%s3961 + $0x28] sm:$0xf]
        %v3973 = vld [vmem:[%s3961 + $0x2c] sm:$0xf]
        %v3974 = vld [vmem:[%s3961 + $0x30] sm:$0xf]
        %v3975 = vld [vmem:[%s3961 + $0x34] sm:$0xf]
        %v3976 = vld [vmem:[%s3961 + $0x38] sm:$0xf]
        %v3977 = vld [vmem:[%s3961 + $0x3c] sm:$0xf]
        %v3978 = vld [vmem:[%s3961 + $0x40] sm:$0xf]
        %v3979 = vld [vmem:[%s3961 + $0x44] sm:$0xf]
        %v3980 = vld [vmem:[%s3961 + $0x48] sm:$0xf]
        %v3981 = vld [vmem:[%s3961 + $0x4c] sm:$0xf]
        %v3982 = vld [vmem:[%s3961 + $0x50] sm:$0xf]
        %v3983 = vld [vmem:[%s3961 + $0x54] sm:$0xf]
        %v3984 = vld [vmem:[%s3961 + $0x58] sm:$0xf]
        %v3985 = vld [vmem:[%s3961 + $0x5c] sm:$0xf]
        %v3986 = vld [vmem:[%s3961 + $0x60] sm:$0xf]
        %v3987 = vld [vmem:[%s3961 + $0x64] sm:$0xf]
        %v3988 = vld [vmem:[%s3961 + $0x68] sm:$0xf]
        %v3989 = vld [vmem:[%s3961 + $0x6c] sm:$0xf]
        %v3990 = vld [vmem:[%s3961 + $0x70] sm:$0xf]
        %v3991 = vld [vmem:[%s3961 + $0x74] sm:$0xf]
        %v3992 = vld [vmem:[%s3961 + $0x78] sm:$0xf]
        %v3993 = vld [vmem:[%s3961 + $0x7c] sm:$0xf]
        %v3994 = vld [vmem:[%s3961 + $0x80] sm:$0xf]
        %v3995 = vld [vmem:[%s3961 + $0x84] sm:$0xf]
        %v3996 = vld [vmem:[%s3961 + $0x88] sm:$0xf]
        %v3997 = vld [vmem:[%s3961 + $0x8c] sm:$0xf]
        %v3998 = vld [vmem:[%s3961 + $0x90] sm:$0xf]
        %v3999 = vld [vmem:[%s3961 + $0x94] sm:$0xf]
        %v4000 = vld [vmem:[%s3961 + $0x98] sm:$0xf]
        %v4001 = vld [vmem:[%s3961 + $0x9c] sm:$0xf]
        %v4002 = vld [vmem:[%s3961 + $0xa0] sm:$0xf]
        %v4003 = vld [vmem:[%s3961 + $0xa4] sm:$0xf]
        %v4004 = vld [vmem:[%s3961 + $0xa8] sm:$0xf]
        %v4005 = vld [vmem:[%s3961 + $0xac] sm:$0xf]
        %v4006 = vld [vmem:[%s3961 + $0xb0] sm:$0xf]
        %v4007 = vld [vmem:[%s3961 + $0xb4] sm:$0xf]
        %v4008 = vld [vmem:[%s3961 + $0xb8] sm:$0xf]
        %v4009 = vld [vmem:[%s3961 + $0xbc] sm:$0xf]
        %v4058 = vunpack.c.l.b16 %v3962
        %v4059 = vunpack.c.l.b16 %v3963
        %v4060 = vunpack.c.l.b16 %v3964
        %v4061 = vunpack.c.l.b16 %v3965
        %v4062 = vunpack.c.l.b16 %v3966
        %v4063 = vunpack.c.l.b16 %v3967
        %v4064 = vunpack.c.l.b16 %v3968
        %v4065 = vunpack.c.l.b16 %v3969
        %v4066 = vunpack.c.l.b16 %v3970
        %v4067 = vunpack.c.l.b16 %v3971
        %v4068 = vunpack.c.l.b16 %v3972
        %v4069 = vunpack.c.l.b16 %v3973
        %v4070 = vunpack.c.l.b16 %v3974
        %v4071 = vunpack.c.l.b16 %v3975
        %v4072 = vunpack.c.l.b16 %v3976
        %v4073 = vunpack.c.l.b16 %v3977
        %v4074 = vunpack.c.l.b16 %v3978
        %v4075 = vunpack.c.l.b16 %v3979
        %v4076 = vunpack.c.l.b16 %v3980
        %v4077 = vunpack.c.l.b16 %v3981
        %v4078 = vunpack.c.l.b16 %v3982
        %v4079 = vunpack.c.l.b16 %v3983
        %v4080 = vunpack.c.l.b16 %v3984
        %v4081 = vunpack.c.l.b16 %v3985
        %v4082 = vunpack.c.l.b16 %v3986
        %v4083 = vunpack.c.l.b16 %v3987
        %v4084 = vunpack.c.l.b16 %v3988
        %v4085 = vunpack.c.l.b16 %v3989
        %v4086 = vunpack.c.l.b16 %v3990
        %v4087 = vunpack.c.l.b16 %v3991
        %v4088 = vunpack.c.l.b16 %v3992
        %v4089 = vunpack.c.l.b16 %v3993
        %v4090 = vunpack.c.l.b16 %v3994
        %v4091 = vunpack.c.l.b16 %v3995
        %v4092 = vunpack.c.l.b16 %v3996
        %v4093 = vunpack.c.l.b16 %v3997
        %v4094 = vunpack.c.l.b16 %v3998
        %v4095 = vunpack.c.l.b16 %v3999
        %v4096 = vunpack.c.l.b16 %v4000
        %v4097 = vunpack.c.l.b16 %v4001
        %v4098 = vunpack.c.l.b16 %v4002
        %v4099 = vunpack.c.l.b16 %v4003
        %v4100 = vunpack.c.l.b16 %v4004
        %v4101 = vunpack.c.l.b16 %v4005
        %v4102 = vunpack.c.l.b16 %v4006
        %v4103 = vunpack.c.l.b16 %v4007
        %v4104 = vunpack.c.l.b16 %v4008
        %v4105 = vunpack.c.l.b16 %v4009
        %v4106 = vpack.c.b16 %v4059, %v4058
        %v4107 = vpack.c.b16 %v4061, %v4060
        %v4108 = vpack.c.b16 %v4063, %v4062
        %v4109 = vpack.c.b16 %v4065, %v4064
        %v4110 = vpack.c.b16 %v4067, %v4066
        %v4111 = vpack.c.b16 %v4069, %v4068
        %v4112 = vpack.c.b16 %v4071, %v4070
        %v4113 = vpack.c.b16 %v4073, %v4072
        %v4114 = vpack.c.b16 %v4075, %v4074
        %v4115 = vpack.c.b16 %v4077, %v4076
        %v4116 = vpack.c.b16 %v4079, %v4078
        %v4117 = vpack.c.b16 %v4081, %v4080
        %v4118 = vpack.c.b16 %v4083, %v4082
        %v4119 = vpack.c.b16 %v4085, %v4084
        %v4120 = vpack.c.b16 %v4087, %v4086
        %v4121 = vpack.c.b16 %v4089, %v4088
        %v4122 = vpack.c.b16 %v4091, %v4090
        %v4123 = vpack.c.b16 %v4093, %v4092
        %v4124 = vpack.c.b16 %v4095, %v4094
        %v4125 = vpack.c.b16 %v4097, %v4096
        %v4126 = vpack.c.b16 %v4099, %v4098
        %v4127 = vpack.c.b16 %v4101, %v4100
        %v4128 = vpack.c.b16 %v4103, %v4102
        %v4129 = vpack.c.b16 %v4105, %v4104
        %4154 = vmatprep.subr.bf16.mxu0 0
        %4155 = vmatpush1.bf16.msra.mxu0 %v4106
        %4156 = vmatprep.subr.bf16.mxu0 0
        %4157 = vmatpush1.bf16.msra.mxu0 %v4107
        %4158 = vmatprep.subr.bf16.mxu0 0
        %4159 = vmatpush1.bf16.msra.mxu0 %v4108
        %4160 = vmatprep.subr.bf16.mxu0 0
        %4161 = vmatpush1.bf16.msra.mxu0 %v4109
        %4162 = vmatprep.subr.bf16.mxu0 0
        %4163 = vmatpush1.bf16.msra.mxu0 %v4110
        %4164 = vmatprep.subr.bf16.mxu0 0
        %4165 = vmatpush1.bf16.msra.mxu0 %v4111
        %4166 = vmatprep.subr.bf16.mxu0 0
        %4167 = vmatpush1.bf16.msra.mxu0 %v4112
        %4168 = vmatprep.subr.bf16.mxu0 0
        %4169 = vmatpush1.bf16.msra.mxu0 %v4113
        %4170 = vmatprep.subr.bf16.mxu0 0
        %4171 = vmatpush1.bf16.msra.mxu0 %v4114
        %4172 = vmatprep.subr.bf16.mxu0 0
        %4173 = vmatpush1.bf16.msra.mxu0 %v4115
        %4174 = vmatprep.subr.bf16.mxu0 0
        %4175 = vmatpush1.bf16.msra.mxu0 %v4116
        %4176 = vmatprep.subr.bf16.mxu0 0
        %4177 = vmatpush1.bf16.msra.mxu0 %v4117
        %4178 = vmatprep.subr.bf16.mxu0 0
        %4179 = vmatpush1.bf16.msra.mxu0 %v4118
        %4180 = vmatprep.subr.bf16.mxu0 0
        %4181 = vmatpush1.bf16.msra.mxu0 %v4119
        %4182 = vmatprep.subr.bf16.mxu0 0
        %4183 = vmatpush1.bf16.msra.mxu0 %v4120
        %4184 = vmatprep.subr.bf16.mxu0 0
        %4185 = vmatpush1.bf16.msra.mxu0 %v4121
        %4186 = vmatprep.mubr.bf16.mxu0 %v3914
        %4187 = vmatmul.mubr.bf16.gmra.mrb[0].mxu0 %v3913
        %v4188 = vpop.f32.mrb[0].mxu0
        %v4189 = vadd.f32 0.0, %v4188
        %v4190 = vpop.f32.mrb[0].mxu0
        %v4191 = vpop.f32.mrb[0].mxu0
        %v4192 = vadd.f32 0.0, %v4191
        %v4193 = vpop.f32.mrb[0].mxu0
        %4194 = vmatprep.mubr.bf16.mxu0 %v3917
        %4195 = vmatmul.mubr.bf16.gmra.mrb[0].mxu0 %v3916
        %v4196 = vpop.f32.mrb[0].mxu0
        %v4197 = vadd.f32 0.0, %v4196
        %v4198 = vpop.f32.mrb[0].mxu0
        %v4199 = vpop.f32.mrb[0].mxu0
        %v4200 = vadd.f32 0.0, %v4199
        %v4201 = vpop.f32.mrb[0].mxu0
        %4202 = vmatprep.mubr.bf16.mxu0 %v3920
        %4203 = vmatmul.mubr.bf16.gmra.mrb[0].mxu0 %v3919
        %v4204 = vpop.f32.mrb[0].mxu0
        %v4205 = vadd.f32 0.0, %v4204
        %v4206 = vpop.f32.mrb[0].mxu0
        %v4207 = vpop.f32.mrb[0].mxu0
        %v4208 = vadd.f32 0.0, %v4207
        %v4209 = vpop.f32.mrb[0].mxu0
        %4210 = vmatprep.mubr.bf16.mxu0 %v3923
        %4211 = vmatmul.mubr.bf16.gmra.mrb[0].mxu0 %v3922
        %v4212 = vpop.f32.mrb[0].mxu0
        %v4213 = vadd.f32 0.0, %v4212
        %v4214 = vpop.f32.mrb[0].mxu0
        %v4215 = vpop.f32.mrb[0].mxu0
        %v4216 = vadd.f32 0.0, %v4215
        %v4217 = vpop.f32.mrb[0].mxu0
        %4218 = vmatprep.mubr.bf16.mxu0 %v3926
        %4219 = vmatmul.mubr.bf16.gmra.mrb[0].mxu0 %v3925
        %v4220 = vpop.f32.mrb[0].mxu0
        %v4221 = vadd.f32 0.0, %v4220
        %v4222 = vpop.f32.mrb[0].mxu0
        %v4223 = vpop.f32.mrb[0].mxu0
        %v4224 = vadd.f32 0.0, %v4223
        %v4225 = vpop.f32.mrb[0].mxu0
        %4226 = vmatprep.mubr.bf16.mxu0 %v3929
        %4227 = vmatmul.mubr.bf16.gmra.mrb[0].mxu0 %v3928
        %v4228 = vpop.f32.mrb[0].mxu0
        %v4229 = vadd.f32 0.0, %v4228
        %v4230 = vpop.f32.mrb[0].mxu0
        %v4231 = vpop.f32.mrb[0].mxu0
        %v4232 = vadd.f32 0.0, %v4231
        %v4233 = vpop.f32.mrb[0].mxu0
        %4234 = vmatprep.mubr.bf16.mxu0 %v3932
        %4235 = vmatmul.mubr.bf16.gmra.mrb[0].mxu0 %v3931
        %v4236 = vpop.f32.mrb[0].mxu0
        %v4237 = vadd.f32 0.0, %v4236
        %v4238 = vpop.f32.mrb[0].mxu0
        %v4239 = vpop.f32.mrb[0].mxu0
        %v4240 = vadd.f32 0.0, %v4239
        %v4241 = vpop.f32.mrb[0].mxu0
        %4242 = vmatprep.mubr.bf16.mxu0 %v3935
        %4243 = vmatmul.mubr.bf16.gmra.mrb[0].mxu0 %v3934
        %v4244 = vpop.f32.mrb[0].mxu0
        %v4245 = vadd.f32 0.0, %v4244
        %v4246 = vpop.f32.mrb[0].mxu0
        %v4247 = vpop.f32.mrb[0].mxu0
        %v4248 = vadd.f32 0.0, %v4247
        %v4249 = vpop.f32.mrb[0].mxu0
        %4250 = vmatprep.mubr.bf16.mxu0 %v3938
        %4251 = vmatmul.mubr.bf16.gmra.mrb[0].mxu0 %v3937
        %v4252 = vpop.f32.mrb[0].mxu0
        %v4253 = vadd.f32 0.0, %v4252
        %v4254 = vpop.f32.mrb[0].mxu0
        %v4255 = vpop.f32.mrb[0].mxu0
        %v4256 = vadd.f32 0.0, %v4255
        %v4257 = vpop.f32.mrb[0].mxu0
        %4258 = vmatprep.mubr.bf16.mxu0 %v3941
        %4259 = vmatmul.mubr.bf16.gmra.mrb[0].mxu0 %v3940
        %v4260 = vpop.f32.mrb[0].mxu0
        %v4261 = vadd.f32 0.0, %v4260
        %v4262 = vpop.f32.mrb[0].mxu0
        %v4263 = vpop.f32.mrb[0].mxu0
        %v4264 = vadd.f32 0.0, %v4263
        %v4265 = vpop.f32.mrb[0].mxu0
        %4266 = vmatprep.mubr.bf16.mxu0 %v3944
        %4267 = vmatmul.mubr.bf16.gmra.mrb[0].mxu0 %v3943
        %v4268 = vpop.f32.mrb[0].mxu0
        %v4269 = vadd.f32 0.0, %v4268
        %v4270 = vpop.f32.mrb[0].mxu0
        %v4271 = vpop.f32.mrb[0].mxu0
        %v4272 = vadd.f32 0.0, %v4271
        %v4273 = vpop.f32.mrb[0].mxu0
        %4274 = vmatprep.mubr.bf16.mxu0 %v3947
        %4275 = vmatmul.mubr.bf16.gmra.mrb[0].mxu0 %v3946
        %v4276 = vpop.f32.mrb[0].mxu0
        %v4277 = vadd.f32 0.0, %v4276
        %v4278 = vpop.f32.mrb[0].mxu0
        %v4279 = vpop.f32.mrb[0].mxu0
        %v4280 = vadd.f32 0.0, %v4279
        %v4281 = vpop.f32.mrb[0].mxu0
        %4282 = vmatprep.mubr.bf16.mxu0 %v3950
        %4283 = vmatmul.mubr.bf16.gmra.mrb[0].mxu0 %v3949
        %v4284 = vpop.f32.mrb[0].mxu0
        %v4285 = vadd.f32 0.0, %v4284
        %v4286 = vpop.f32.mrb[0].mxu0
        %v4287 = vpop.f32.mrb[0].mxu0
        %v4288 = vadd.f32 0.0, %v4287
        %v4289 = vpop.f32.mrb[0].mxu0
        %4290 = vmatprep.mubr.bf16.mxu0 %v3953
        %4291 = vmatmul.mubr.bf16.gmra.mrb[0].mxu0 %v3952
        %v4292 = vpop.f32.mrb[0].mxu0
        %v4293 = vadd.f32 0.0, %v4292
        %v4294 = vpop.f32.mrb[0].mxu0
        %v4295 = vpop.f32.mrb[0].mxu0
        %v4296 = vadd.f32 0.0, %v4295
        %v4297 = vpop.f32.mrb[0].mxu0
        %4298 = vmatprep.mubr.bf16.mxu0 %v3956
        %4299 = vmatmul.mubr.bf16.gmra.mrb[0].mxu0 %v3955
        %v4300 = vpop.f32.mrb[0].mxu0
        %v4301 = vadd.f32 0.0, %v4300
        %v4302 = vpop.f32.mrb[0].mxu0
        %v4303 = vpop.f32.mrb[0].mxu0
        %v4304 = vadd.f32 0.0, %v4303
        %v4305 = vpop.f32.mrb[0].mxu0
        %4306 = vmatprep.mubr.bf16.mxu0 %v3959
        %4307 = vmatmul.mubr.bf16.gmra.mrb[0].mxu0 %v3958
        %v4308 = vpop.f32.mrb[0].mxu0
        %v4309 = vadd.f32 0.0, %v4308
        %v4310 = vpop.f32.mrb[0].mxu0
        %v4311 = vpop.f32.mrb[0].mxu0
        %v4312 = vadd.f32 0.0, %v4311
        %v4313 = vpop.f32.mrb[0].mxu0
        %4314 = vdwg.mxu0
        %4315 = vmatprep.subr.bf16.mxu0 0
        %4316 = vmatpush1.bf16.msra.mxu0 %v4122
        %4317 = vmatprep.subr.bf16.mxu0 0
        %4318 = vmatpush1.bf16.msra.mxu0 %v4123
        %4319 = vmatprep.subr.bf16.mxu0 0
        %4320 = vmatpush1.bf16.msra.mxu0 %v4124
        %4321 = vmatprep.subr.bf16.mxu0 0
        %4322 = vmatpush1.bf16.msra.mxu0 %v4125
        %4323 = vmatprep.subr.bf16.mxu0 0
        %4324 = vmatpush1.bf16.msra.mxu0 %v4126
        %4325 = vmatprep.subr.bf16.mxu0 0
        %4326 = vmatpush1.bf16.msra.mxu0 %v4127
        %4327 = vmatprep.subr.bf16.mxu0 0
        %4328 = vmatpush1.bf16.msra.mxu0 %v4128
        %4329 = vmatprep.subr.bf16.mxu0 0
        %4330 = vmatpush1.bf16.msra.mxu0 %v4129
        %4331 = vmatprep.subr.bf16.mxu0 0
        %4332 = vmatpush1.bf16.msra.mxu0 0
        %4333 = vmatprep.subr.bf16.mxu0 0
        %4334 = vmatpush1.bf16.msra.mxu0 0
        %4335 = vmatprep.subr.bf16.mxu0 0
        %4336 = vmatpush1.bf16.msra.mxu0 0
        %4337 = vmatprep.subr.bf16.mxu0 0
        %4338 = vmatpush1.bf16.msra.mxu0 0
        %4339 = vmatprep.subr.bf16.mxu0 0
        %4340 = vmatpush1.bf16.msra.mxu0 0
        %4341 = vmatprep.subr.bf16.mxu0 0
        %4342 = vmatpush1.bf16.msra.mxu0 0
        %4343 = vmatprep.subr.bf16.mxu0 0
        %4344 = vmatpush1.bf16.msra.mxu0 0
        %4345 = vmatprep.subr.bf16.mxu0 0
        %4346 = vmatpush1.bf16.msra.mxu0 0
        %4347 = vmatprep.mubr.bf16.mxu0 0
        %4348 = vmatmul.mubr.bf16.gmra.mrb[0].mxu0 %v3915
        %v4349 = vpop.f32.mrb[0].mxu0
        %v4350 = vadd.f32 %v4189, %v4349
        %v4351 = vpop.f32.mrb[0].mxu0
        %v4352 = vpop.f32.mrb[0].mxu0
        %v4353 = vadd.f32 %v4192, %v4352
        %v4354 = vpop.f32.mrb[0].mxu0
        %4355 = vmatprep.mubr.bf16.mxu0 0
        %4356 = vmatmul.mubr.bf16.gmra.mrb[0].mxu0 %v3918
        %v4357 = vpop.f32.mrb[0].mxu0
        %v4358 = vadd.f32 %v4197, %v4357
        %v4359 = vpop.f32.mrb[0].mxu0
        %v4360 = vpop.f32.mrb[0].mxu0
        %v4361 = vadd.f32 %v4200, %v4360
        %v4362 = vpop.f32.mrb[0].mxu0
        %4363 = vmatprep.mubr.bf16.mxu0 0
        %4364 = vmatmul.mubr.bf16.gmra.mrb[0].mxu0 %v3921
        %v4365 = vpop.f32.mrb[0].mxu0
        %v4366 = vadd.f32 %v4205, %v4365
        %v4367 = vpop.f32.mrb[0].mxu0
        %v4368 = vpop.f32.mrb[0].mxu0
        %v4369 = vadd.f32 %v4208, %v4368
        %v4370 = vpop.f32.mrb[0].mxu0
        %4371 = vmatprep.mubr.bf16.mxu0 0
        %4372 = vmatmul.mubr.bf16.gmra.mrb[0].mxu0 %v3924
        %v4373 = vpop.f32.mrb[0].mxu0
        %v4374 = vadd.f32 %v4213, %v4373
        %v4375 = vpop.f32.mrb[0].mxu0
        %v4376 = vpop.f32.mrb[0].mxu0
        %v4377 = vadd.f32 %v4216, %v4376
        %v4378 = vpop.f32.mrb[0].mxu0
        %4379 = vmatprep.mubr.bf16.mxu0 0
        %4380 = vmatmul.mubr.bf16.gmra.mrb[0].mxu0 %v3927
        %v4381 = vpop.f32.mrb[0].mxu0
        %v4382 = vadd.f32 %v4221, %v4381
        %v4383 = vpop.f32.mrb[0].mxu0
        %v4384 = vpop.f32.mrb[0].mxu0
        %v4385 = vadd.f32 %v4224, %v4384
        %v4386 = vpop.f32.mrb[0].mxu0
        %4387 = vmatprep.mubr.bf16.mxu0 0
        %4388 = vmatmul.mubr.bf16.gmra.mrb[0].mxu0 %v3930
        %v4389 = vpop.f32.mrb[0].mxu0
        %v4390 = vadd.f32 %v4229, %v4389
        %v4391 = vpop.f32.mrb[0].mxu0
        %v4392 = vpop.f32.mrb[0].mxu0
        %v4393 = vadd.f32 %v4232, %v4392
        %v4394 = vpop.f32.mrb[0].mxu0
        %4395 = vmatprep.mubr.bf16.mxu0 0
        %4396 = vmatmul.mubr.bf16.gmra.mrb[0].mxu0 %v3933
        %v4397 = vpop.f32.mrb[0].mxu0
        %v4398 = vadd.f32 %v4237, %v4397
        %v4399 = vpop.f32.mrb[0].mxu0
        %v4400 = vpop.f32.mrb[0].mxu0
        %v4401 = vadd.f32 %v4240, %v4400
        %v4402 = vpop.f32.mrb[0].mxu0
        %4403 = vmatprep.mubr.bf16.mxu0 0
        %4404 = vmatmul.mubr.bf16.gmra.mrb[0].mxu0 %v3936
        %v4405 = vpop.f32.mrb[0].mxu0
        %v4406 = vadd.f32 %v4245, %v4405
        %v4407 = vpop.f32.mrb[0].mxu0
        %v4408 = vpop.f32.mrb[0].mxu0
        %v4409 = vadd.f32 %v4248, %v4408
        %v4410 = vpop.f32.mrb[0].mxu0
        %4411 = vmatprep.mubr.bf16.mxu0 0
        %4412 = vmatmul.mubr.bf16.gmra.mrb[0].mxu0 %v3939
        %v4413 = vpop.f32.mrb[0].mxu0
        %v4414 = vadd.f32 %v4253, %v4413
        %v4415 = vpop.f32.mrb[0].mxu0
        %v4416 = vpop.f32.mrb[0].mxu0
        %v4417 = vadd.f32 %v4256, %v4416
        %v4418 = vpop.f32.mrb[0].mxu0
        %4419 = vmatprep.mubr.bf16.mxu0 0
        %4420 = vmatmul.mubr.bf16.gmra.mrb[0].mxu0 %v3942
        %v4421 = vpop.f32.mrb[0].mxu0
        %v4422 = vadd.f32 %v4261, %v4421
        %v4423 = vpop.f32.mrb[0].mxu0
        %v4424 = vpop.f32.mrb[0].mxu0
        %v4425 = vadd.f32 %v4264, %v4424
        %v4426 = vpop.f32.mrb[0].mxu0
        %4427 = vmatprep.mubr.bf16.mxu0 0
        %4428 = vmatmul.mubr.bf16.gmra.mrb[0].mxu0 %v3945
        %v4429 = vpop.f32.mrb[0].mxu0
        %v4430 = vadd.f32 %v4269, %v4429
        %v4431 = vpop.f32.mrb[0].mxu0
        %v4432 = vpop.f32.mrb[0].mxu0
        %v4433 = vadd.f32 %v4272, %v4432
        %v4434 = vpop.f32.mrb[0].mxu0
        %4435 = vmatprep.mubr.bf16.mxu0 0
        %4436 = vmatmul.mubr.bf16.gmra.mrb[0].mxu0 %v3948
        %v4437 = vpop.f32.mrb[0].mxu0
        %v4438 = vadd.f32 %v4277, %v4437
        %v4439 = vpop.f32.mrb[0].mxu0
        %v4440 = vpop.f32.mrb[0].mxu0
        %v4441 = vadd.f32 %v4280, %v4440
        %v4442 = vpop.f32.mrb[0].mxu0
        %4443 = vmatprep.mubr.bf16.mxu0 0
        %4444 = vmatmul.mubr.bf16.gmra.mrb[0].mxu0 %v3951
        %v4445 = vpop.f32.mrb[0].mxu0
        %v4446 = vadd.f32 %v4285, %v4445
        %v4447 = vpop.f32.mrb[0].mxu0
        %v4448 = vpop.f32.mrb[0].mxu0
        %v4449 = vadd.f32 %v4288, %v4448
        %v4450 = vpop.f32.mrb[0].mxu0
        %4451 = vmatprep.mubr.bf16.mxu0 0
        %4452 = vmatmul.mubr.bf16.gmra.mrb[0].mxu0 %v3954
        %v4453 = vpop.f32.mrb[0].mxu0
        %v4454 = vadd.f32 %v4293, %v4453
        %v4455 = vpop.f32.mrb[0].mxu0
        %v4456 = vpop.f32.mrb[0].mxu0
        %v4457 = vadd.f32 %v4296, %v4456
        %v4458 = vpop.f32.mrb[0].mxu0
        %4459 = vmatprep.mubr.bf16.mxu0 0
        %4460 = vmatmul.mubr.bf16.gmra.mrb[0].mxu0 %v3957
        %v4461 = vpop.f32.mrb[0].mxu0
        %v4462 = vadd.f32 %v4301, %v4461
        %v4463 = vpop.f32.mrb[0].mxu0
        %v4464 = vpop.f32.mrb[0].mxu0
        %v4465 = vadd.f32 %v4304, %v4464
        %v4466 = vpop.f32.mrb[0].mxu0
        %4467 = vmatprep.mubr.bf16.mxu0 0
        %4468 = vmatmul.mubr.bf16.gmra.mrb[0].mxu0 %v3960
        %v4469 = vpop.f32.mrb[0].mxu0
        %v4470 = vadd.f32 %v4309, %v4469
        %v4471 = vpop.f32.mrb[0].mxu0
        %v4472 = vpop.f32.mrb[0].mxu0
        %v4473 = vadd.f32 %v4312, %v4472
        %v4474 = vpop.f32.mrb[0].mxu0
        %4475 = vdwg.mxu0
        %v4476 = vadd.f32 %v3787, %v4350
        %v4477 = vadd.f32 %v3790, %v4353
        %v4478 = vadd.f32 %v3795, %v4358
        %v4479 = vadd.f32 %v3798, %v4361
        %v4480 = vadd.f32 %v3803, %v4366
        %v4481 = vadd.f32 %v3806, %v4369
        %v4482 = vadd.f32 %v3811, %v4374
        %v4483 = vadd.f32 %v3814, %v4377
        %v4484 = vadd.f32 %v3819, %v4382
        %v4485 = vadd.f32 %v3822, %v4385
        %v4486 = vadd.f32 %v3827, %v4390
        %v4487 = vadd.f32 %v3830, %v4393
        %v4488 = vadd.f32 %v3835, %v4398
        %v4489 = vadd.f32 %v3838, %v4401
        %v4490 = vadd.f32 %v3843, %v4406
        %v4491 = vadd.f32 %v3846, %v4409
        %v4492 = vadd.f32 %v3851, %v4414
        %v4493 = vadd.f32 %v3854, %v4417
        %v4494 = vadd.f32 %v3859, %v4422
        %v4495 = vadd.f32 %v3862, %v4425
        %v4496 = vadd.f32 %v3867, %v4430
        %v4497 = vadd.f32 %v3870, %v4433
        %v4498 = vadd.f32 %v3875, %v4438
        %v4499 = vadd.f32 %v3878, %v4441
        %v4500 = vadd.f32 %v3883, %v4446
        %v4501 = vadd.f32 %v3886, %v4449
        %v4502 = vadd.f32 %v3891, %v4454
        %v4503 = vadd.f32 %v3894, %v4457
        %v4504 = vadd.f32 %v3899, %v4462
        %v4505 = vadd.f32 %v3902, %v4465
        %v4506 = vadd.f32 %v3907, %v4470
        %v4507 = vadd.f32 %v3910, %v4473
        %v4508 = vadd.f32 %v4476, %v4477
        %v4509 = vadd.f32 %v4508, %v4478
        %v4510 = vadd.f32 %v4509, %v4479
        %v4511 = vadd.f32 %v4510, %v4480
        %v4512 = vadd.f32 %v4511, %v4481
        %v4513 = vadd.f32 %v4512, %v4482
        %v4514 = vadd.f32 %v4513, %v4483
        %v4515 = vadd.f32 %v4514, %v4484
        %v4516 = vadd.f32 %v4515, %v4485
        %v4517 = vadd.f32 %v4516, %v4486
        %v4518 = vadd.f32 %v4517, %v4487
        %v4519 = vadd.f32 %v4518, %v4488
        %v4520 = vadd.f32 %v4519, %v4489
        %v4521 = vadd.f32 %v4520, %v4490
        %v4522 = vadd.f32 %v4521, %v4491
        %v4523 = vadd.f32 %v4522, %v4492
        %v4524 = vadd.f32 %v4523, %v4493
        %v4525 = vadd.f32 %v4524, %v4494
        %v4526 = vadd.f32 %v4525, %v4495
        %v4527 = vadd.f32 %v4526, %v4496
        %v4528 = vadd.f32 %v4527, %v4497
        %v4529 = vadd.f32 %v4528, %v4498
        %v4530 = vadd.f32 %v4529, %v4499
        %v4531 = vadd.f32 %v4530, %v4500
        %v4532 = vadd.f32 %v4531, %v4501
        %v4533 = vadd.f32 %v4532, %v4502
        %v4534 = vadd.f32 %v4533, %v4503
        %v4535 = vadd.f32 %v4534, %v4504
        %v4536 = vadd.f32 %v4535, %v4505
        %v4537 = vadd.f32 %v4536, %v4506
        %v4538 = vadd.f32 %v4537, %v4507
        %v4539 = vrot.slane %v4538, 4
        %v4540 = vadd.f32 %v4538, %v4539
        %v4541 = vrot.slane %v4540, 2
        %v4542 = vadd.f32 %v4540, %v4541
        %v4543 = vrot.slane %v4542, 1
        %v4544 = vadd.f32 %v4542, %v4543
        %v4545 = vmul.f32 %v4476, %v4476
        %v4546 = vmul.f32 %v4477, %v4477
        %v4547 = vmul.f32 %v4478, %v4478
        %v4548 = vmul.f32 %v4479, %v4479
        %v4549 = vmul.f32 %v4480, %v4480
        %v4550 = vmul.f32 %v4481, %v4481
        %v4551 = vmul.f32 %v4482, %v4482
        %v4552 = vmul.f32 %v4483, %v4483
        %v4553 = vmul.f32 %v4484, %v4484
        %v4554 = vmul.f32 %v4485, %v4485
        %v4555 = vmul.f32 %v4486, %v4486
        %v4556 = vmul.f32 %v4487, %v4487
        %v4557 = vmul.f32 %v4488, %v4488
        %v4558 = vmul.f32 %v4489, %v4489
        %v4559 = vmul.f32 %v4490, %v4490
        %v4560 = vmul.f32 %v4491, %v4491
        %v4561 = vmul.f32 %v4492, %v4492
        %v4562 = vmul.f32 %v4493, %v4493
        %v4563 = vmul.f32 %v4494, %v4494
        %v4564 = vmul.f32 %v4495, %v4495
        %v4565 = vmul.f32 %v4496, %v4496
        %v4566 = vmul.f32 %v4497, %v4497
        %v4567 = vmul.f32 %v4498, %v4498
        %v4568 = vmul.f32 %v4499, %v4499
        %v4569 = vmul.f32 %v4500, %v4500
        %v4570 = vmul.f32 %v4501, %v4501
        %v4571 = vmul.f32 %v4502, %v4502
        %v4572 = vmul.f32 %v4503, %v4503
        %v4573 = vmul.f32 %v4504, %v4504
        %v4574 = vmul.f32 %v4505, %v4505
        %v4575 = vmul.f32 %v4506, %v4506
        %v4576 = vmul.f32 %v4507, %v4507
        %v4577 = vadd.f32 %v4545, %v4546
        %v4578 = vadd.f32 %v4577, %v4547
        %v4579 = vadd.f32 %v4578, %v4548
        %v4580 = vadd.f32 %v4579, %v4549
        %v4581 = vadd.f32 %v4580, %v4550
        %v4582 = vadd.f32 %v4581, %v4551
        %v4583 = vadd.f32 %v4582, %v4552
        %v4584 = vadd.f32 %v4583, %v4553
        %v4585 = vadd.f32 %v4584, %v4554
        %v4586 = vadd.f32 %v4585, %v4555
        %v4587 = vadd.f32 %v4586, %v4556
        %v4588 = vadd.f32 %v4587, %v4557
        %v4589 = vadd.f32 %v4588, %v4558
        %v4590 = vadd.f32 %v4589, %v4559
        %v4591 = vadd.f32 %v4590, %v4560
        %v4592 = vadd.f32 %v4591, %v4561
        %v4593 = vadd.f32 %v4592, %v4562
        %v4594 = vadd.f32 %v4593, %v4563
        %v4595 = vadd.f32 %v4594, %v4564
        %v4596 = vadd.f32 %v4595, %v4565
        %v4597 = vadd.f32 %v4596, %v4566
        %v4598 = vadd.f32 %v4597, %v4567
        %v4599 = vadd.f32 %v4598, %v4568
        %v4600 = vadd.f32 %v4599, %v4569
        %v4601 = vadd.f32 %v4600, %v4570
        %v4602 = vadd.f32 %v4601, %v4571
        %v4603 = vadd.f32 %v4602, %v4572
        %v4604 = vadd.f32 %v4603, %v4573
        %v4605 = vadd.f32 %v4604, %v4574
        %v4606 = vadd.f32 %v4605, %v4575
        %v4607 = vadd.f32 %v4606, %v4576
        %v4608 = vrot.slane %v4607, 4
        %v4609 = vadd.f32 %v4607, %v4608
        %v4610 = vrot.slane %v4609, 2
        %v4611 = vadd.f32 %v4609, %v4610
        %v4612 = vrot.slane %v4611, 1
        %v4613 = vadd.f32 %v4611, %v4612
        %v4614 = vmul.f32 %v4544, 0.00390625
        %v4615 = vmul.f32 %v4613, 0.00390625
        %v4616 = vmul.f32 %v4614, %v4614
        %v4617 = vsub.f32 %v4615, %v4616
        %v4618 = vmax.f32 %v4617, 0.0
        %v4619 = vsub.f32 %v4476, %v4614
        %v4620 = vsub.f32 %v4477, %v4614
        %v4621 = vsub.f32 %v4478, %v4614
        %v4622 = vsub.f32 %v4479, %v4614
        %v4623 = vsub.f32 %v4480, %v4614
        %v4624 = vsub.f32 %v4481, %v4614
        %v4625 = vsub.f32 %v4482, %v4614
        %v4626 = vsub.f32 %v4483, %v4614
        %v4627 = vsub.f32 %v4484, %v4614
        %v4628 = vsub.f32 %v4485, %v4614
        %v4629 = vsub.f32 %v4486, %v4614
        %v4630 = vsub.f32 %v4487, %v4614
        %v4631 = vsub.f32 %v4488, %v4614
        %v4632 = vsub.f32 %v4489, %v4614
        %v4633 = vsub.f32 %v4490, %v4614
        %v4634 = vsub.f32 %v4491, %v4614
        %v4635 = vsub.f32 %v4492, %v4614
        %v4636 = vsub.f32 %v4493, %v4614
        %v4637 = vsub.f32 %v4494, %v4614
        %v4638 = vsub.f32 %v4495, %v4614
        %v4639 = vsub.f32 %v4496, %v4614
        %v4640 = vsub.f32 %v4497, %v4614
        %v4641 = vsub.f32 %v4498, %v4614
        %v4642 = vsub.f32 %v4499, %v4614
        %v4643 = vsub.f32 %v4500, %v4614
        %v4644 = vsub.f32 %v4501, %v4614
        %v4645 = vsub.f32 %v4502, %v4614
        %v4646 = vsub.f32 %v4503, %v4614
        %v4647 = vsub.f32 %v4504, %v4614
        %v4648 = vsub.f32 %v4505, %v4614
        %v4649 = vsub.f32 %v4506, %v4614
        %v4650 = vsub.f32 %v4507, %v4614
        %v4651 = vadd.f32 %v4618, 1e-05
        %v4652 = vrsqrt.pop %v4651
        %v4653 = vmul.f32 %v4619, %v4652
        %v4654 = vmul.f32 %v4620, %v4652
        %v4655 = vmul.f32 %v4621, %v4652
        %v4656 = vmul.f32 %v4622, %v4652
        %v4657 = vmul.f32 %v4623, %v4652
        %v4658 = vmul.f32 %v4624, %v4652
        %v4659 = vmul.f32 %v4625, %v4652
        %v4660 = vmul.f32 %v4626, %v4652
        %v4661 = vmul.f32 %v4627, %v4652
        %v4662 = vmul.f32 %v4628, %v4652
        %v4663 = vmul.f32 %v4629, %v4652
        %v4664 = vmul.f32 %v4630, %v4652
        %v4665 = vmul.f32 %v4631, %v4652
        %v4666 = vmul.f32 %v4632, %v4652
        %v4667 = vmul.f32 %v4633, %v4652
        %v4668 = vmul.f32 %v4634, %v4652
        %v4669 = vmul.f32 %v4635, %v4652
        %v4670 = vmul.f32 %v4636, %v4652
        %v4671 = vmul.f32 %v4637, %v4652
        %v4672 = vmul.f32 %v4638, %v4652
        %v4673 = vmul.f32 %v4639, %v4652
        %v4674 = vmul.f32 %v4640, %v4652
        %v4675 = vmul.f32 %v4641, %v4652
        %v4676 = vmul.f32 %v4642, %v4652
        %v4677 = vmul.f32 %v4643, %v4652
        %v4678 = vmul.f32 %v4644, %v4652
        %v4679 = vmul.f32 %v4645, %v4652
        %v4680 = vmul.f32 %v4646, %v4652
        %v4681 = vmul.f32 %v4647, %v4652
        %v4682 = vmul.f32 %v4648, %v4652
        %v4683 = vmul.f32 %v4649, %v4652
        %v4684 = vmul.f32 %v4650, %v4652
        %v4685 = vadd.f32 %v235, %v4653
        %v4686 = vadd.f32 %v236, %v4654
        %v4687 = vadd.f32 %v237, %v4655
        %v4688 = vadd.f32 %v238, %v4656
        %v4689 = vadd.f32 %v239, %v4657
        %v4690 = vadd.f32 %v240, %v4658
        %v4691 = vadd.f32 %v241, %v4659
        %v4692 = vadd.f32 %v242, %v4660
        %v4693 = vadd.f32 %v243, %v4661
        %v4694 = vadd.f32 %v244, %v4662
        %v4695 = vadd.f32 %v245, %v4663
        %v4696 = vadd.f32 %v246, %v4664
        %v4697 = vadd.f32 %v247, %v4665
        %v4698 = vadd.f32 %v248, %v4666
        %v4699 = vadd.f32 %v249, %v4667
        %v4700 = vadd.f32 %v250, %v4668
        %v4701 = vadd.f32 %v251, %v4669
        %v4702 = vadd.f32 %v252, %v4670
        %v4703 = vadd.f32 %v253, %v4671
        %v4704 = vadd.f32 %v254, %v4672
        %v4705 = vadd.f32 %v255, %v4673
        %v4706 = vadd.f32 %v256, %v4674
        %v4707 = vadd.f32 %v257, %v4675
        %v4708 = vadd.f32 %v258, %v4676
        %v4709 = vadd.f32 %v259, %v4677
        %v4710 = vadd.f32 %v260, %v4678
        %v4711 = vadd.f32 %v261, %v4679
        %v4712 = vadd.f32 %v262, %v4680
        %v4713 = vadd.f32 %v263, %v4681
        %v4714 = vadd.f32 %v264, %v4682
        %v4715 = vadd.f32 %v265, %v4683
        %v4716 = vadd.f32 %v266, %v4684
        %4717 = vst [vmem:[%s217] sm:$0xff] %v4685
        %4718 = vst [vmem:[%s217 + $0x8] sm:$0xff] %v4686
        %4719 = vst [vmem:[%s217 + $0x10] sm:$0xff] %v4687
        %4720 = vst [vmem:[%s217 + $0x18] sm:$0xff] %v4688
        %4721 = vst [vmem:[%s217 + $0x20] sm:$0xff] %v4689
        %4722 = vst [vmem:[%s217 + $0x28] sm:$0xff] %v4690
        %4723 = vst [vmem:[%s217 + $0x30] sm:$0xff] %v4691
        %4724 = vst [vmem:[%s217 + $0x38] sm:$0xff] %v4692
        %4725 = vst [vmem:[%s217 + $0x40] sm:$0xff] %v4693
        %4726 = vst [vmem:[%s217 + $0x48] sm:$0xff] %v4694
        %4727 = vst [vmem:[%s217 + $0x50] sm:$0xff] %v4695
        %4728 = vst [vmem:[%s217 + $0x58] sm:$0xff] %v4696
        %4729 = vst [vmem:[%s217 + $0x60] sm:$0xff] %v4697
        %4730 = vst [vmem:[%s217 + $0x68] sm:$0xff] %v4698
        %4731 = vst [vmem:[%s217 + $0x70] sm:$0xff] %v4699
        %4732 = vst [vmem:[%s217 + $0x78] sm:$0xff] %v4700
        %4733 = vst [vmem:[%s217 + $0x80] sm:$0xff] %v4701
        %4734 = vst [vmem:[%s217 + $0x88] sm:$0xff] %v4702
        %4735 = vst [vmem:[%s217 + $0x90] sm:$0xff] %v4703
        %4736 = vst [vmem:[%s217 + $0x98] sm:$0xff] %v4704
        %4737 = vst [vmem:[%s217 + $0xa0] sm:$0xff] %v4705
        %4738 = vst [vmem:[%s217 + $0xa8] sm:$0xff] %v4706
        %4739 = vst [vmem:[%s217 + $0xb0] sm:$0xff] %v4707
        %4740 = vst [vmem:[%s217 + $0xb8] sm:$0xff] %v4708
        %4741 = vst [vmem:[%s217 + $0xc0] sm:$0xff] %v4709
        %4742 = vst [vmem:[%s217 + $0xc8] sm:$0xff] %v4710
        %4743 = vst [vmem:[%s217 + $0xd0] sm:$0xff] %v4711
        %4744 = vst [vmem:[%s217 + $0xd8] sm:$0xff] %v4712
        %4745 = vst [vmem:[%s217 + $0xe0] sm:$0xff] %v4713
        %4746 = vst [vmem:[%s217 + $0xe8] sm:$0xff] %v4714
        %4747 = vst [vmem:[%s217 + $0xf0] sm:$0xff] %v4715
        %4748 = vst [vmem:[%s217 + $0xf8] sm:$0xff] %v4716
        %s4749 = sand.u32 %s97, 1
        %s4750 = scalar_lea.sflag [#allocation5], %s4749
        %s4751 = sand.u32 %s97, 1
        %s4752 = smul.addr %s4751, 256
        %s4753 = scalar_lea.vmem [#allocation9], %s4752
        // Predicated region
        $region45: #{tpu_custom_call.1} parent=31 // pred_check
          %p4754 = pneg %p107
        $region46: #{tpu_custom_call.1} parent=31 // pred_check_branch
          %4756 = sbr.rel (%p4754) target = $region48
        $region47: #{tpu_custom_call.1} parent=31 // pred_region
          %s4758 = ssub.s32 4096, 4096
          %4759 = vsyncadd %s4750, %s4758
          %s4760 = smul.addr %s21, 32
          %s4761 = smul.addr %s4760, 128
          %s4762 = scalar_lea.hbm %s3, %s4761
          %s4763 = sshll.u32 %s4753, 4
          %s4764 = int_to_ptr.vmem [resolvable:$true] %s4763
          %4769 = dma.vmem_to_hbm [thread:$0]  %s4764, 4096, %s4762, %s4750, 128, 128, 8
        $region48: #{tpu_custom_call.1} parent=31 // pred_fallthru
          _
      $region32: #{tpu_custom_call.1} parent=5 // pred_fallthru
        _
      %p4770 = scmp.le.s32.totalorder 2, %s16
      // Predicated region
      $region49: #{tpu_custom_call.1} parent=5 // pred_check
        %p4771 = pneg %p4770
      $region50: #{tpu_custom_call.1} parent=5 // pred_check_branch
        %4773 = sbr.rel (%p4771) target = $region52
      $region51: #{tpu_custom_call.1} parent=5 // pred_region
        %s4774 = ssub.s32 %s16, 2
        // Predicated region
        $region53: #{tpu_custom_call.1} parent=51 // pred_check
          %p4775 = pneg %p113
        $region54: #{tpu_custom_call.1} parent=51 // pred_check_branch
          %4777 = sbr.rel (%p4775) target = $region56
        $region55: #{tpu_custom_call.1} parent=51 // pred_region
          %s4778 = sand.u32 %s98, 1
          %s4779 = scalar_lea.sflag [#allocation5], %s4778
          %s4780 = sand.u32 %s98, 1
          %s4781 = smul.addr %s4780, 256
          %s4782 = scalar_lea.vmem [#allocation9], %s4781
          %4783 = dma.done %s4779, 4096
        $region56: #{tpu_custom_call.1} parent=51 // pred_fallthru
          _
      $region52: #{tpu_custom_call.1} parent=5 // pred_fallthru
        _
    $region6: #{tpu_custom_call.1} parent=1 // loop_footer
      %s20 = sadd.s32 1, %s16
    $region7: #{tpu_custom_call.1} parent=1 // loop_footer_branch
      %15 = sbr.rel target = $region3
    $region8: #{tpu_custom_call.1} parent=1 // loop_exit
      _
    %4784 = vsyncpa [#allocation4], 1
    %s4785 = scalar_lea.sflag [#allocation4], 1
    %4786 = vsyncpa %s4785, 1
    %4787 = vsyncpa [#allocation7], 1
    %4788 = vsyncpa [#allocation5], 1
    %s4789 = scalar_lea.sflag [#allocation5], 1
    %4790 = vsyncpa %s4789, 1

</llo_original>
